<compile_context>
chip_gen: v7x
topology: tpu7x:2x2x1
jax: 0.10.0
libtpu: 0.0.40
codegen_flags: <defaults>
</compile_context>

<pallas_src>
import math
import functools

import jax
import jax.numpy as jnp
from jax.experimental import pallas as pl
from jax.experimental.pallas import tpu as pltpu


# ----------------------------- tiling helpers -----------------------------

def _tile_sub(dim: int, target: int) -> int:
    """Tile for a second-to-last (sublane) dim: multiple of 8 or the full dim."""
    t = min(target, dim)
    while t > 8 and dim % t:
        t //= 2
    return t if dim % t == 0 else dim


def _tile_lane(dim: int, target: int) -> int:
    """Tile for a last (lane) dim: multiple of 128 or the full dim."""
    t = min(target, dim)
    while t > 128 and dim % t:
        t //= 2
    if dim % t or t % 128:
        return dim
    return t


def _heads_per_block(num_heads: int, dk: int) -> int:
    """Smallest head group whose column width is 128-lane aligned; else all heads."""
    for g in range(1, num_heads + 1):
        if num_heads % g == 0 and (g * dk) % 128 == 0:
            return g
    return num_heads


# ----------------------------- kernel: tiled matmul + bias -----------------------------

def _matmul_kernel(x_ref, w_ref, b_ref, o_ref, acc_ref):
    @pl.when(pl.program_id(2) == 0)
    def _():
        acc_ref[...] = jnp.zeros(acc_ref.shape, acc_ref.dtype)

    acc_ref[...] += jnp.dot(x_ref[...].astype(jnp.bfloat16), w_ref[...],
                            preferred_element_type=jnp.float32)

    @pl.when(pl.program_id(2) == pl.num_programs(2) - 1)
    def _():
        o_ref[...] = (acc_ref[...] + b_ref[...]).astype(o_ref.dtype)


def matmul_bias(x, w, b, out_dtype=jnp.float32, tm=256, tn=256, tk=512):
    """(M,K) @ (K,N) + b; bf16 MXU inputs / f32 accumulation; N padded to a tile multiple."""
    M, K = x.shape
    N = w.shape[1]
    tm = _tile_sub(M, tm)
    tk = _tile_lane(K, tk)
    pad_n = 0
    Np = N
    if N <= tn:
        tn = N                                    # full-dim block (always legal)
    elif N % tn != 0:
        Np = pl.cdiv(N, tn) * tn                  # pad: keeps weight tiles bounded
        pad_n = Np - N
        w = jnp.pad(w, ((0, 0), (0, pad_n)))
        b = jnp.pad(b, (0, pad_n))

    out = pl.pallas_call(
        _matmul_kernel,
        out_shape=jax.ShapeDtypeStruct((M, Np), out_dtype),
        grid=(M // tm, Np // tn, K // tk),
        in_specs=[
            pl.BlockSpec((tm, tk), lambda i, j, k: (i, k)),
            pl.BlockSpec((tk, tn), lambda i, j, k: (k, j)),
            pl.BlockSpec((1, tn), lambda i, j, k: (0, j)),
        ],
        out_specs=pl.BlockSpec((tm, tn), lambda i, j, k: (i, j)),
        scratch_shapes=[pltpu.VMEM((tm, tn), jnp.float32)],
        compiler_params=pltpu.CompilerParams(
            dimension_semantics=("parallel", "parallel", "arbitrary")),
    )(x, w, b.reshape(1, Np))
    return out[:, :N] if pad_n else out


# ----------------------------- kernel: fused split projection (QKV / KV) -----------------------------

def _split_proj_kernel(x_ref, w_ref, b_ref, *rest, nsplit):
    out_refs = rest[:nsplit]
    acc_ref = rest[nsplit]

    @pl.when(pl.program_id(1) == 0)
    def _():
        acc_ref[...] = jnp.zeros(acc_ref.shape, acc_ref.dtype)

    acc_ref[...] += jnp.dot(x_ref[...].astype(jnp.bfloat16), w_ref[...],
                            preferred_element_type=jnp.float32)

    @pl.when(pl.program_id(1) == pl.num_programs(1) - 1)
    def _():
        y = acc_ref[...] + b_ref[...]
        do = out_refs[0].shape[1]
        for s in range(nsplit):
            out_refs[s][...] = y[:, s * do:(s + 1) * do].astype(out_refs[s].dtype)


def split_proj(x, w, b, nsplit, out_dtype=jnp.bfloat16, tm=128, tk=256):
    """x @ w + b where w fuses `nsplit` projections; writes each (M, D) output separately
    (no XLA slice copies of a fused activation buffer)."""
    M, K = x.shape
    N = w.shape[1]
    do = N // nsplit
    tm = _tile_sub(M, tm)
    tk = _tile_lane(K, tk)
    kernel = functools.partial(_split_proj_kernel, nsplit=nsplit)
    return pl.pallas_call(
        kernel,
        out_shape=tuple(jax.ShapeDtypeStruct((M, do), out_dtype) for _ in range(nsplit)),
        grid=(M // tm, K // tk),
        in_specs=[
            pl.BlockSpec((tm, tk), lambda i, k: (i, k)),
            pl.BlockSpec((tk, N), lambda i, k: (k, 0)),
            pl.BlockSpec((1, N), lambda i, k: (0, 0)),
        ],
        out_specs=tuple(pl.BlockSpec((tm, do), lambda i, k: (i, 0)) for _ in range(nsplit)),
        scratch_shapes=[pltpu.VMEM((tm, N), jnp.float32)],
        compiler_params=pltpu.CompilerParams(
            dimension_semantics=("parallel", "arbitrary")),
    )(x, w, b.reshape(1, N))


# ----------------------------- kernel: matmul + bias + residual-add + LayerNorm -----------------------------

def _matmul_add_ln_kernel(x_ref, w_ref, b_ref, r_ref, g_ref, be_ref, o_ref, acc_ref):
    @pl.when(pl.program_id(1) == 0)
    def _():
        acc_ref[...] = jnp.zeros(acc_ref.shape, acc_ref.dtype)

    acc_ref[...] += jnp.dot(x_ref[...].astype(jnp.bfloat16), w_ref[...],
                            preferred_element_type=jnp.float32)

    @pl.when(pl.program_id(1) == pl.num_programs(1) - 1)
    def _():
        z = acc_ref[...] + b_ref[...] + r_ref[...]
        mu = jnp.mean(z, axis=-1, keepdims=True)
        var = jnp.mean((z - mu) ** 2, axis=-1, keepdims=True)
        y = (z - mu) * jax.lax.rsqrt(var + 1e-5) * g_ref[...] + be_ref[...]
        o_ref[...] = y.astype(o_ref.dtype)


def matmul_add_ln(x, w, b, residual, gamma, beta, tm=256, tk=512):
    """LayerNorm(residual + (x @ w + b)); N (= d_model) un-tiled so LN sees full rows."""
    M, K = x.shape
    N = w.shape[1]
    tm, tk = _tile_sub(M, tm), _tile_lane(K, tk)
    return pl.pallas_call(
        _matmul_add_ln_kernel,
        out_shape=jax.ShapeDtypeStruct((M, N), jnp.float32),
        grid=(M // tm, K // tk),
        in_specs=[
            pl.BlockSpec((tm, tk), lambda i, k: (i, k)),
            pl.BlockSpec((tk, N), lambda i, k: (k, 0)),
            pl.BlockSpec((1, N), lambda i, k: (0, 0)),
            pl.BlockSpec((tm, N), lambda i, k: (i, 0)),
            pl.BlockSpec((1, N), lambda i, k: (0, 0)),
            pl.BlockSpec((1, N), lambda i, k: (0, 0)),
        ],
        out_specs=pl.BlockSpec((tm, N), lambda i, k: (i, 0)),
        scratch_shapes=[pltpu.VMEM((tm, N), jnp.float32)],
        compiler_params=pltpu.CompilerParams(
            dimension_semantics=("parallel", "arbitrary")),
    )(x, w, b.reshape(1, N), residual, gamma.reshape(1, N), beta.reshape(1, N))


# ----------------------------- kernel: d_ff-tiled FFN + residual-add + LayerNorm -----------------------------

def _ffn_ln_kernel(x_ref, w1_ref, b1_ref, w2_ref, b2_ref, r_ref, g_ref, be_ref,
                   o_ref, acc_ref):
    f = pl.program_id(1)

    @pl.when(f == 0)
    def _():
        acc_ref[...] = jnp.zeros(acc_ref.shape, acc_ref.dtype)

    # hidden (tm, tf) tile: l1 + ReLU; never materialized at full d_ff width
    h = jnp.dot(x_ref[...].astype(jnp.bfloat16), w1_ref[...],
                preferred_element_type=jnp.float32) + b1_ref[...]
    h = jnp.maximum(h, 0.0)
    # TODO(synk): dropout on h is identity (PyTorch eval semantics).
    acc_ref[...] += jnp.dot(h.astype(jnp.bfloat16), w2_ref[...],
                            preferred_element_type=jnp.float32)

    @pl.when(f == pl.num_programs(1) - 1)
    def _():
        z = acc_ref[...] + b2_ref[...] + r_ref[...]
        mu = jnp.mean(z, axis=-1, keepdims=True)
        var = jnp.mean((z - mu) ** 2, axis=-1, keepdims=True)
        o_ref[...] = ((z - mu) * jax.lax.rsqrt(var + 1e-5) * g_ref[...] + be_ref[...]
                      ).astype(o_ref.dtype)


def ffn_add_ln(x, w1, b1, w2, b2, residual, gamma, beta, tm=256, tf=512):
    """LayerNorm(residual + l2(relu(l1(x)))), tiled over d_ff with a (tm, D) f32 accumulator."""
    M, D = x.shape
    F = w1.shape[1]
    tm = _tile_sub(M, tm)
    tf = _tile_lane(F, tf)
    return pl.pallas_call(
        _ffn_ln_kernel,
        out_shape=jax.ShapeDtypeStruct((M, D), jnp.float32),
        grid=(M // tm, F // tf),
        in_specs=[
            pl.BlockSpec((tm, D), lambda i, f: (i, 0)),
            pl.BlockSpec((D, tf), lambda i, f: (0, f)),
            pl.BlockSpec((1, tf), lambda i, f: (0, f)),
            pl.BlockSpec((tf, D), lambda i, f: (f, 0)),
            pl.BlockSpec((1, D), lambda i, f: (0, 0)),
            pl.BlockSpec((tm, D), lambda i, f: (i, 0)),
            pl.BlockSpec((1, D), lambda i, f: (0, 0)),
            pl.BlockSpec((1, D), lambda i, f: (0, 0)),
        ],
        out_specs=pl.BlockSpec((tm, D), lambda i, f: (i, 0)),
        scratch_shapes=[pltpu.VMEM((tm, D), jnp.float32)],
        compiler_params=pltpu.CompilerParams(
            dimension_semantics=("parallel", "arbitrary")),
    )(x, w1, b1.reshape(1, F), w2, b2.reshape(1, D),
      residual, gamma.reshape(1, D), beta.reshape(1, D))


# ----------------------------- kernel: flash-style multi-head attention -----------------------------

def _flash_attn_kernel(q_ref, k_ref, v_ref, mask_ref, o_ref, m_sc, l_sc, acc_sc,
                       *, hpb, dk, causal):
    i = pl.program_id(2)
    j = pl.program_id(3)
    tq = q_ref.shape[1]
    tkv = k_ref.shape[1]

    @pl.when(j == 0)
    def _():
        m_sc[...] = jnp.full(m_sc.shape, -jnp.inf, m_sc.dtype)
        l_sc[...] = jnp.zeros(l_sc.shape, l_sc.dtype)
        acc_sc[...] = jnp.zeros(acc_sc.shape, acc_sc.dtype)

    def compute():
        q = q_ref[0]                         # (tq, hpb*dk) bf16, 1/sqrt(dk) folded into weights
        k = k_ref[0]                         # (tkv, hpb*dk) bf16
        v = v_ref[0]                         # (tkv, hpb*dk) bf16
        pad = mask_ref[0] != 0               # (1, tkv)
        if causal:
            row = jax.lax.broadcasted_iota(jnp.int32, (tq, tkv), 0) + i * tq
            col = jax.lax.broadcasted_iota(jnp.int32, (tq, tkv), 1) + j * tkv
            valid = jnp.logical_and(pad, col <= row)
        else:
            valid = jnp.broadcast_to(pad, (tq, tkv))

        for hl in range(hpb):                # small bounded group (1-4 heads)
            lo = hl * dk
            qh = q[:, lo:lo + dk]
            kh = k[:, lo:lo + dk]
            vh = v[:, lo:lo + dk]
            s = jax.lax.dot_general(qh, kh, (((1,), (1,)), ((), ())),
                                    preferred_element_type=jnp.float32)
            s = jnp.where(valid, s, -1e9)                     # masked_fill(mask==0, -1e9)
            m_prev = m_sc[hl]
            m_new = jnp.maximum(m_prev, jnp.max(s, axis=-1, keepdims=True))
            alpha = jnp.exp(m_prev - m_new)
            p = jnp.exp(s - m_new)
            l_sc[hl] = alpha * l_sc[hl] + jnp.sum(p, axis=-1, keepdims=True)
            acc_sc[hl] = alpha * acc_sc[hl] + jnp.dot(p.astype(jnp.bfloat16), vh,
                                                      preferred_element_type=jnp.float32)
            m_sc[hl] = m_new

    if causal:
        # Skip KV tiles strictly above the causal diagonal (fully masked anyway).
        pl.when(j * tkv <= i * tq + (tq - 1))(compute)
    else:
        compute()

    @pl.when(j == pl.num_programs(3) - 1)
    def _():
        outs = [acc_sc[hl] * pl.reciprocal(l_sc[hl], approx=True) for hl in range(hpb)]
        o_ref[0] = jnp.concatenate(outs, axis=-1).astype(o_ref.dtype)


def attention(q, k, v, key_pad_mask, num_heads, causal, tq=256, tkv=256):
    """q:(B,Sq,D), k/v:(B,Sk,D) bf16, head-interleaved layout; key_pad_mask:(B,1,Sk) int32.
    Flash-style: grid over (batch, head-group, q-tiles, kv-tiles); running softmax in VMEM."""
    B, Sq, D = q.shape
    Sk = k.shape[1]
    dk = D // num_heads
    hpb = _heads_per_block(num_heads, dk)
    gw = hpb * dk
    G = num_heads // hpb
    tq = _tile_sub(Sq, tq)
    tkv = _tile_lane(Sk, tkv)     # also the mask's lane dim -> 128-multiple or full Sk

    kernel = functools.partial(_flash_attn_kernel, hpb=hpb, dk=dk, causal=causal)
    return pl.pallas_call(
        kernel,
        out_shape=jax.ShapeDtypeStruct((B, Sq, D), jnp.bfloat16),
        grid=(B, G, Sq // tq, Sk // tkv),
        in_specs=[
            pl.BlockSpec((1, tq, gw), lambda b, g, i, j: (b, i, g)),
            pl.BlockSpec((1, tkv, gw), lambda b, g, i, j: (b, j, g)),
            pl.BlockSpec((1, tkv, gw), lambda b, g, i, j: (b, j, g)),
            pl.BlockSpec((1, 1, tkv), lambda b, g, i, j: (b, 0, j)),
        ],
        out_specs=pl.BlockSpec((1, tq, gw), lambda b, g, i, j: (b, i, g)),
        scratch_shapes=[
            pltpu.VMEM((hpb, tq, 1), jnp.float32),
            pltpu.VMEM((hpb, tq, 1), jnp.float32),
            pltpu.VMEM((hpb, tq, dk), jnp.float32),
        ],
        compiler_params=pltpu.CompilerParams(
            dimension_semantics=("parallel", "parallel", "parallel", "arbitrary")),
    )(q, k, v, key_pad_mask)


# ----------------------------- model glue (plain JAX, no extra HBM round trips) -----------------------------

def encoder_layer(p, x, src_mask, num_heads):
    B, S, D = x.shape
    x2 = x.reshape(B * S, D)
    q, k, v = split_proj(x2, p["sa"]["qkv_w"], p["sa"]["qkv_b"], 3)      # bf16 q/k/v, no slices
    o = attention(q.reshape(B, S, D), k.reshape(B, S, D), v.reshape(B, S, D),
                  src_mask, num_heads, causal=False).reshape(B * S, D)
    x2 = matmul_add_ln(o, p["sa"]["o_w"], p["sa"]["o_b"], x2,
                       p["ln1"]["g"], p["ln1"]["b"])                      # out-proj + add + LN
    x2 = ffn_add_ln(x2, p["ff"]["w1"], p["ff"]["b1"], p["ff"]["w2"], p["ff"]["b2"],
                    x2, p["ln2"]["g"], p["ln2"]["b"])                     # d_ff-tiled FFN + add + LN
    return x2.reshape(B, S, D)


def decoder_layer(p, x, enc_out, src_mask, tgt_mask, num_heads):
    B, S, D = x.shape
    Se = enc_out.shape[1]
    x2 = x.reshape(B * S, D)

    # causal self-attention
    q, k, v = split_proj(x2, p["sa"]["qkv_w"], p["sa"]["qkv_b"], 3)
    o = attention(q.reshape(B, S, D), k.reshape(B, S, D), v.reshape(B, S, D),
                  tgt_mask, num_heads, causal=True).reshape(B * S, D)
    x2 = matmul_add_ln(o, p["sa"]["o_w"], p["sa"]["o_b"], x2,
                       p["ln1"]["g"], p["ln1"]["b"])

    # cross-attention (fused KV GEMM over encoder output)
    enc2 = enc_out.reshape(B * Se, D)
    q = matmul_bias(x2, p["ca"]["q_w"], p["ca"]["q_b"], out_dtype=jnp.bfloat16)
    k, v = split_proj(enc2, p["ca"]["kv_w"], p["ca"]["kv_b"], 2)
    o = attention(q.reshape(B, S, D), k.reshape(B, Se, D), v.reshape(B, Se, D),
                  src_mask, num_heads, causal=False).reshape(B * S, D)
    x2 = matmul_add_ln(o, p["ca"]["o_w"], p["ca"]["o_b"], x2,
                       p["ln2"]["g"], p["ln2"]["b"])

    # FFN
    x2 = ffn_add_ln(x2, p["ff"]["w1"], p["ff"]["b1"], p["ff"]["w2"], p["ff"]["b2"],
                    x2, p["ln3"]["g"], p["ln3"]["b"])
    return x2.reshape(B, S, D)


def positional_encoding(max_len, d_model):
    position = jnp.arange(max_len, dtype=jnp.float32)[:, None]
    div_term = jnp.exp(jnp.arange(0, d_model, 2, dtype=jnp.float32)
                       * -(math.log(10000.0) / d_model))
    pe = jnp.zeros((max_len, d_model), jnp.float32)
    pe = pe.at[:, 0::2].set(jnp.sin(position * div_term))
    pe = pe.at[:, 1::2].set(jnp.cos(position * div_term))
    return pe


def transformer_forward(params, src, tgt, *, src_pad_idx, tgt_pad_idx, num_heads):
    d_model = params["enc_emb"].shape[1]
    B, Ss = src.shape
    St = tgt.shape[1]

    # compact key-pad masks (B,1,S); the causal triangle lives inside the attention kernel
    src_mask = (src != src_pad_idx).astype(jnp.int32).reshape(B, 1, Ss)
    tgt_mask = (tgt != tgt_pad_idx).astype(jnp.int32).reshape(B, 1, St)

    pe = params["pe"]

    # encoder (embedding gather + PE add are glue)
    x = params["enc_emb"][src] * math.sqrt(d_model) + pe[None, :Ss, :]
    for lp in params["enc_layers"]:
        x = encoder_layer(lp, x, src_mask, num_heads)
    enc_out = x

    # decoder
    y = params["dec_emb"][tgt] * math.sqrt(d_model) + pe[None, :St, :]
    for lp in params["dec_layers"]:
        y = decoder_layer(lp, y, enc_out, src_mask, tgt_mask, num_heads)

    logits = matmul_bias(y.reshape(B * St, d_model),
                         params["fc_out"]["w"], params["fc_out"]["b"],
                         out_dtype=jnp.float32)
    return logits.reshape(B, St, -1)


# ----------------------------- deterministic init (PyTorch-like, f32) -----------------------------

def init_linear(key, d_in, d_out):
    k1, k2 = jax.random.split(key)
    bound = 1.0 / math.sqrt(d_in)
    w = jax.random.uniform(k1, (d_in, d_out), jnp.float32, -bound, bound)
    b = jax.random.uniform(k2, (d_out,), jnp.float32, -bound, bound)
    return w, b


def init_self_mha(key, d_model):
    ks = jax.random.split(key, 4)
    wq, bq = init_linear(ks[0], d_model, d_model)
    wk, bk = init_linear(ks[1], d_model, d_model)
    wv, bv = init_linear(ks[2], d_model, d_model)
    wo, bo = init_linear(ks[3], d_model, d_model)
    return {"qkv_w": jnp.concatenate([wq, wk, wv], axis=1),
            "qkv_b": jnp.concatenate([bq, bk, bv]),
            "o_w": wo, "o_b": bo}


def init_cross_mha(key, d_model):
    ks = jax.random.split(key, 4)
    wq, bq = init_linear(ks[0], d_model, d_model)
    wk, bk = init_linear(ks[1], d_model, d_model)
    wv, bv = init_linear(ks[2], d_model, d_model)
    wo, bo = init_linear(ks[3], d_model, d_model)
    return {"q_w": wq, "q_b": bq,
            "kv_w": jnp.concatenate([wk, wv], axis=1),
            "kv_b": jnp.concatenate([bk, bv]),
            "o_w": wo, "o_b": bo}


def init_ln(d_model):
    return {"g": jnp.ones((d_model,), jnp.float32), "b": jnp.zeros((d_model,), jnp.float32)}


def init_ff(key, d_model, d_ff):
    k1, k2 = jax.random.split(key)
    w1, b1 = init_linear(k1, d_model, d_ff)
    w2, b2 = init_linear(k2, d_ff, d_model)
    return {"w1": w1, "b1": b1, "w2": w2, "b2": b2}


def init_enc_layer(key, d_model, d_ff):
    k1, k2 = jax.random.split(key)
    return {"sa": init_self_mha(k1, d_model), "ff": init_ff(k2, d_model, d_ff),
            "ln1": init_ln(d_model), "ln2": init_ln(d_model)}


def init_dec_layer(key, d_model, d_ff):
    k1, k2, k3 = jax.random.split(key, 3)
    return {"sa": init_self_mha(k1, d_model), "ca": init_cross_mha(k2, d_model),
            "ff": init_ff(k3, d_model, d_ff),
            "ln1": init_ln(d_model), "ln2": init_ln(d_model), "ln3": init_ln(d_model)}


def init_transformer(key, src_vocab, tgt_vocab, d_model, num_layers, d_ff, max_len):
    keys = jax.random.split(key, 3 + 2 * num_layers)
    fw, fb = init_linear(keys[2], d_model, tgt_vocab)
    return {
        "enc_emb": jax.random.normal(keys[0], (src_vocab, d_model), jnp.float32),
        "dec_emb": jax.random.normal(keys[1], (tgt_vocab, d_model), jnp.float32),
        "fc_out": {"w": fw, "b": fb},
        "pe": positional_encoding(max_len, d_model),
        "enc_layers": [init_enc_layer(keys[3 + i], d_model, d_ff)
                       for i in range(num_layers)],
        "dec_layers": [init_dec_layer(keys[3 + num_layers + i], d_model, d_ff)
                       for i in range(num_layers)],
    }


# ----------------------------- parameter preparation (one-time) -----------------------------

def prepare_params(params, num_heads):
    """Pre-cast GEMM weights to bf16 and fold 1/sqrt(d_k) into the Q projections.
    Biases / LayerNorm params / embeddings stay f32 (tiny; adds happen in f32 epilogues)."""
    d_model = params["enc_emb"].shape[1]
    scale = 1.0 / math.sqrt(d_model // num_heads)
    bf = lambda a: a.astype(jnp.bfloat16)

    def prep_self(sa):
        w = sa["qkv_w"].at[:, :d_model].multiply(scale)
        b = sa["qkv_b"].at[:d_model].multiply(scale)
        return {"qkv_w": bf(w), "qkv_b": b, "o_w": bf(sa["o_w"]), "o_b": sa["o_b"]}

    def prep_cross(ca):
        return {"q_w": bf(ca["q_w"] * scale), "q_b": ca["q_b"] * scale,
                "kv_w": bf(ca["kv_w"]), "kv_b": ca["kv_b"],
                "o_w": bf(ca["o_w"]), "o_b": ca["o_b"]}

    def prep_ff(ff):
        return {"w1": bf(ff["w1"]), "b1": ff["b1"], "w2": bf(ff["w2"]), "b2": ff["b2"]}

    def prep_enc(lp):
        return {"sa": prep_self(lp["sa"]), "ff": prep_ff(lp["ff"]),
                "ln1": lp["ln1"], "ln2": lp["ln2"]}

    def prep_dec(lp):
        return {"sa": prep_self(lp["sa"]), "ca": prep_cross(lp["ca"]), "ff": prep_ff(lp["ff"]),
                "ln1": lp["ln1"], "ln2": lp["ln2"], "ln3": lp["ln3"]}

    return {
        "enc_emb": params["enc_emb"],
        "dec_emb": params["dec_emb"],
        "pe": params["pe"],
        "fc_out": {"w": bf(params["fc_out"]["w"]), "b": params["fc_out"]["b"]},
        "enc_layers": [prep_enc(lp) for lp in params["enc_layers"]],
        "dec_layers": [prep_dec(lp) for lp in params["dec_layers"]],
    }


# ----------------------------- main -----------------------------

if __name__ == "__main__":
    src_vocab, tgt_vocab = 32, 32
    src_pad_idx, tgt_pad_idx = 0, 0
    d_model, num_heads, num_layers, d_ff, max_len = 128, 4, 2, 256, 64
    B, Ss, St = 2, 8, 8

    key = jax.random.PRNGKey(0)
    kp, ks, kt = jax.random.split(key, 3)
    params = init_transformer(kp, src_vocab, tgt_vocab, d_model, num_layers, d_ff, max_len)
    params = prepare_params(params, num_heads)

    src = jax.random.randint(ks, (B, Ss), 1, src_vocab)      # avoid pad idx 0
    tgt = jax.random.randint(kt, (B, St), 1, tgt_vocab)

    fwd = jax.jit(functools.partial(transformer_forward,
                                    src_pad_idx=src_pad_idx,
                                    tgt_pad_idx=tgt_pad_idx,
                                    num_heads=num_heads))
    out = fwd(params, src, tgt)
    out = jax.block_until_ready(out)
    assert out.shape == (B, St, tgt_vocab), out.shape
    assert bool(jnp.all(jnp.isfinite(out)))
    print("KERNEL_OK")
</pallas_src>

<mosaic_0001>
module attributes {stable_mosaic.version = 11 : i64} {
  func.func @_matmul_add_ln_kernel(%arg0: i32, %arg1: i32, %arg2: memref<16x128xbf16, #tpu.memory_space<vmem>>, %arg3: memref<128x128xbf16, #tpu.memory_space<vmem>>, %arg4: memref<1x128xf32, #tpu.memory_space<vmem>>, %arg5: memref<16x128xf32, #tpu.memory_space<vmem>>, %arg6: memref<1x128xf32, #tpu.memory_space<vmem>>, %arg7: memref<1x128xf32, #tpu.memory_space<vmem>>, %arg8: memref<16x128xf32, #tpu.memory_space<vmem>>, %arg9: memref<16x128xf32, #tpu.memory_space<vmem>>) attributes {dimension_semantics = [#tpu.dimension_semantics<parallel>, #tpu.dimension_semantics<arbitrary>], iteration_bounds = array<i64: 1, 1>, scalar_prefetch = 0 : i64, scratch_operands = 1 : i64, tpu.core_type = #tpu.core_type<tc>, window_params = [{transform_indices = @transform_0, window_bounds = array<i64: 16, 128>}, {transform_indices = @transform_1, window_bounds = array<i64: 128, 128>}, {pipeline_mode = #tpu.pipeline_mode<synchronous>, transform_indices = @transform_2, window_bounds = array<i64: 1, 128>}, {transform_indices = @transform_3, window_bounds = array<i64: 16, 128>}, {pipeline_mode = #tpu.pipeline_mode<synchronous>, transform_indices = @transform_4, window_bounds = array<i64: 1, 128>}, {pipeline_mode = #tpu.pipeline_mode<synchronous>, transform_indices = @transform_5, window_bounds = array<i64: 1, 128>}, {transform_indices = @transform_6, window_bounds = array<i64: 16, 128>}]} {
    %c0_i32 = arith.constant 0 : i32
    %0 = arith.cmpi eq, %arg1, %c0_i32 : i32
    %1 = arith.extui %0 : i1 to i32
    %c0_i32_0 = arith.constant 0 : i32
    %2 = arith.cmpi ne, %1, %c0_i32_0 : i32
    scf.if %2 {
      %cst_10 = arith.constant 0.000000e+00 : f32
      %12 = vector.broadcast %cst_10 : f32 to vector<16x128xf32>
      %c0_11 = arith.constant 0 : index
      %c0_12 = arith.constant 0 : index
      %13 = vector.load %arg9[%c0_11, %c0_12] : memref<16x128xf32, #tpu.memory_space<vmem>>, vector<16x128xf32>
      tpu.vector_store %arg9[%c0_11, %c0_12], %12 {strides = array<i32>} : memref<16x128xf32, #tpu.memory_space<vmem>>, vector<16x128xf32>,
    } else {
    }
    %c0 = arith.constant 0 : index
    %c0_1 = arith.constant 0 : index
    %3 = vector.load %arg9[%c0, %c0_1] : memref<16x128xf32, #tpu.memory_space<vmem>>, vector<16x128xf32>
    %c0_2 = arith.constant 0 : index
    %c0_3 = arith.constant 0 : index
    %4 = vector.load %arg2[%c0_2, %c0_3] : memref<16x128xbf16, #tpu.memory_space<vmem>>, vector<16x128xbf16>
    %c0_4 = arith.constant 0 : index
    %c0_5 = arith.constant 0 : index
    %5 = vector.load %arg3[%c0_4, %c0_5] : memref<128x128xbf16, #tpu.memory_space<vmem>>, vector<128x128xbf16>
    %cst = arith.constant dense<0.000000e+00> : vector<16x128xf32>
    %6 = tpu.matmul %4, %5, %cst {dimension_numbers = #tpu.dot_dimension_numbers<[1], [0], [0], [1], [0, 0, 1, 1], [], []>} : vector<16x128xbf16>, vector<128x128xbf16>, vector<16x128xf32> -> vector<16x128xf32>
    %7 = arith.addf %3, %6 : vector<16x128xf32>
    %c0_6 = arith.constant 0 : index
    %c0_7 = arith.constant 0 : index
    %8 = vector.load %arg9[%c0_6, %c0_7] : memref<16x128xf32, #tpu.memory_space<vmem>>, vector<16x128xf32>
    tpu.vector_store %arg9[%c0_6, %c0_7], %7 {strides = array<i32>} : memref<16x128xf32, #tpu.memory_space<vmem>>, vector<16x128xf32>,
    %c0_i32_8 = arith.constant 0 : i32
    %9 = arith.cmpi eq, %arg1, %c0_i32_8 : i32
    %10 = arith.extui %9 : i1 to i32
    %c0_i32_9 = arith.constant 0 : i32
    %11 = arith.cmpi ne, %10, %c0_i32_9 : i32
    scf.if %11 {
      %c0_10 = arith.constant 0 : index
      %c0_11 = arith.constant 0 : index
      %12 = vector.load %arg9[%c0_10, %c0_11] : memref<16x128xf32, #tpu.memory_space<vmem>>, vector<16x128xf32>
      %c0_12 = arith.constant 0 : index
      %c0_13 = arith.constant 0 : index
      %13 = vector.load %arg4[%c0_12, %c0_13] : memref<1x128xf32, #tpu.memory_space<vmem>>, vector<1x128xf32>
      %14 = vector.broadcast %13 : vector<1x128xf32> to vector<16x128xf32>
      %15 = arith.addf %12, %14 : vector<16x128xf32>
      %c0_14 = arith.constant 0 : index
      %c0_15 = arith.constant 0 : index
      %16 = vector.load %arg5[%c0_14, %c0_15] : memref<16x128xf32, #tpu.memory_space<vmem>>, vector<16x128xf32>
      %17 = arith.addf %15, %16 : vector<16x128xf32>
      %cst_16 = arith.constant dense<0.000000e+00> : vector<16xf32>
      %18 = vector.multi_reduction <add>, %17, %cst_16 [1] : vector<16x128xf32> to vector<16xf32>
      %19 = vector.shape_cast %18 : vector<16xf32> to vector<16x1xf32>
      %cst_17 = arith.constant 1.280000e+02 : f32
      %20 = vector.broadcast %cst_17 : f32 to vector<16x1xf32>
      %21 = arith.divf %19, %20 : vector<16x1xf32>
      %22 = vector.broadcast %21 : vector<16x1xf32> to vector<16x128xf32>
      %23 = arith.subf %17, %22 : vector<16x128xf32>
      %24 = arith.mulf %23, %23 : vector<16x128xf32>
      %cst_18 = arith.constant dense<0.000000e+00> : vector<16xf32>
      %25 = vector.multi_reduction <add>, %24, %cst_18 [1] : vector<16x128xf32> to vector<16xf32>
      %26 = vector.shape_cast %25 : vector<16xf32> to vector<16x1xf32>
      %cst_19 = arith.constant 1.280000e+02 : f32
      %27 = vector.broadcast %cst_19 : f32 to vector<16x1xf32>
      %28 = arith.divf %26, %27 : vector<16x1xf32>
      %29 = vector.broadcast %21 : vector<16x1xf32> to vector<16x128xf32>
      %30 = arith.subf %17, %29 : vector<16x128xf32>
      %cst_20 = arith.constant 9.99999974E-6 : f32
      %31 = vector.broadcast %cst_20 : f32 to vector<16x1xf32>
      %32 = arith.addf %28, %31 : vector<16x1xf32>
      %33 = math.rsqrt %32 : vector<16x1xf32>
      %34 = vector.broadcast %33 : vector<16x1xf32> to vector<16x128xf32>
      %35 = arith.mulf %30, %34 : vector<16x128xf32>
      %c0_21 = arith.constant 0 : index
      %c0_22 = arith.constant 0 : index
      %36 = vector.load %arg6[%c0_21, %c0_22] : memref<1x128xf32, #tpu.memory_space<vmem>>, vector<1x128xf32>
      %37 = vector.broadcast %36 : vector<1x128xf32> to vector<16x128xf32>
      %38 = arith.mulf %35, %37 : vector<16x128xf32>
      %c0_23 = arith.constant 0 : index
      %c0_24 = arith.constant 0 : index
      %39 = vector.load %arg7[%c0_23, %c0_24] : memref<1x128xf32, #tpu.memory_space<vmem>>, vector<1x128xf32>
      %40 = vector.broadcast %39 : vector<1x128xf32> to vector<16x128xf32>
      %41 = arith.addf %38, %40 : vector<16x128xf32>
      %c0_25 = arith.constant 0 : index
      %c0_26 = arith.constant 0 : index
      %42 = vector.load %arg8[%c0_25, %c0_26] : memref<16x128xf32, #tpu.memory_space<vmem>>, vector<16x128xf32>
      tpu.vector_store %arg8[%c0_25, %c0_26], %41 {strides = array<i32>} : memref<16x128xf32, #tpu.memory_space<vmem>>, vector<16x128xf32>,
    } else {
    }
    return
  }
  func.func @transform_0(%arg0: i32, %arg1: i32) -> (i32, i32) {
    %c0_i32 = arith.constant 0 : i32
    return %arg0, %arg1 : i32, i32
  }
  func.func @transform_1(%arg0: i32, %arg1: i32) -> (i32, i32) {
    %c0_i32 = arith.constant 0 : i32
    %c0_i32_0 = arith.constant 0 : i32
    return %arg1, %c0_i32 : i32, i32
  }
  func.func @transform_2(%arg0: i32, %arg1: i32) -> (i32, i32) {
    %c0_i32 = arith.constant 0 : i32
    %c0_i32_0 = arith.constant 0 : i32
    %c0_i32_1 = arith.constant 0 : i32
    return %c0_i32, %c0_i32_0 : i32, i32
  }
  func.func @transform_3(%arg0: i32, %arg1: i32) -> (i32, i32) {
    %c0_i32 = arith.constant 0 : i32
    %c0_i32_0 = arith.constant 0 : i32
    return %arg0, %c0_i32 : i32, i32
  }
  func.func @transform_4(%arg0: i32, %arg1: i32) -> (i32, i32) {
    %c0_i32 = arith.constant 0 : i32
    %c0_i32_0 = arith.constant 0 : i32
    %c0_i32_1 = arith.constant 0 : i32
    return %c0_i32, %c0_i32_0 : i32, i32
  }
  func.func @transform_5(%arg0: i32, %arg1: i32) -> (i32, i32) {
    %c0_i32 = arith.constant 0 : i32
    %c0_i32_0 = arith.constant 0 : i32
    %c0_i32_1 = arith.constant 0 : i32
    return %c0_i32, %c0_i32_0 : i32, i32
  }
  func.func @transform_6(%arg0: i32, %arg1: i32) -> (i32, i32) {
    %c0_i32 = arith.constant 0 : i32
    %c0_i32_0 = arith.constant 0 : i32
    return %arg0, %c0_i32 : i32, i32
  }
}

module attributes {stable_mosaic.version = 11 : i64} {
  func.func @_split_proj_kernel(%arg0: i32, %arg1: i32, %arg2: memref<16x128xf32, #tpu.memory_space<vmem>>, %arg3: memref<128x384xbf16, #tpu.memory_space<vmem>>, %arg4: memref<1x384xf32, #tpu.memory_space<vmem>>, %arg5: memref<16x128xbf16, #tpu.memory_space<vmem>>, %arg6: memref<16x128xbf16, #tpu.memory_space<vmem>>, %arg7: memref<16x128xbf16, #tpu.memory_space<vmem>>, %arg8: memref<16x384xf32, #tpu.memory_space<vmem>>) attributes {dimension_semantics = [#tpu.dimension_semantics<parallel>, #tpu.dimension_semantics<arbitrary>], iteration_bounds = array<i64: 1, 1>, scalar_prefetch = 0 : i64, scratch_operands = 1 : i64, tpu.core_type = #tpu.core_type<tc>, window_params = [{transform_indices = @transform_0, window_bounds = array<i64: 16, 128>}, {transform_indices = @transform_1, window_bounds = array<i64: 128, 384>}, {pipeline_mode = #tpu.pipeline_mode<synchronous>, transform_indices = @transform_2, window_bounds = array<i64: 1, 384>}, {transform_indices = @transform_3, window_bounds = array<i64: 16, 128>}, {transform_indices = @transform_4, window_bounds = array<i64: 16, 128>}, {transform_indices = @transform_5, window_bounds = array<i64: 16, 128>}]} {
    %c0_i32 = arith.constant 0 : i32
    %0 = arith.cmpi eq, %arg1, %c0_i32 : i32
    %1 = arith.extui %0 : i1 to i32
    %c0_i32_0 = arith.constant 0 : i32
    %2 = arith.cmpi ne, %1, %c0_i32_0 : i32
    scf.if %2 {
      %cst_10 = arith.constant 0.000000e+00 : f32
      %13 = vector.broadcast %cst_10 : f32 to vector<16x384xf32>
      %c0_11 = arith.constant 0 : index
      %c0_12 = arith.constant 0 : index
      %14 = vector.load %arg8[%c0_11, %c0_12] : memref<16x384xf32, #tpu.memory_space<vmem>>, vector<16x384xf32>
      tpu.vector_store %arg8[%c0_11, %c0_12], %13 {strides = array<i32>} : memref<16x384xf32, #tpu.memory_space<vmem>>, vector<16x384xf32>,
    } else {
    }
    %c0 = arith.constant 0 : index
    %c0_1 = arith.constant 0 : index
    %3 = vector.load %arg8[%c0, %c0_1] : memref<16x384xf32, #tpu.memory_space<vmem>>, vector<16x384xf32>
    %c0_2 = arith.constant 0 : index
    %c0_3 = arith.constant 0 : index
    %4 = vector.load %arg2[%c0_2, %c0_3] : memref<16x128xf32, #tpu.memory_space<vmem>>, vector<16x128xf32>
    %5 = arith.truncf %4 : vector<16x128xf32> to vector<16x128xbf16>
    %c0_4 = arith.constant 0 : index
    %c0_5 = arith.constant 0 : index
    %6 = vector.load %arg3[%c0_4, %c0_5] : memref<128x384xbf16, #tpu.memory_space<vmem>>, vector<128x384xbf16>
    %cst = arith.constant dense<0.000000e+00> : vector<16x384xf32>
    %7 = tpu.matmul %5, %6, %cst {dimension_numbers = #tpu.dot_dimension_numbers<[1], [0], [0], [1], [0, 0, 1, 1], [], []>} : vector<16x128xbf16>, vector<128x384xbf16>, vector<16x384xf32> -> vector<16x384xf32>
    %8 = arith.addf %3, %7 : vector<16x384xf32>
    %c0_6 = arith.constant 0 : index
    %c0_7 = arith.constant 0 : index
    %9 = vector.load %arg8[%c0_6, %c0_7] : memref<16x384xf32, #tpu.memory_space<vmem>>, vector<16x384xf32>
    tpu.vector_store %arg8[%c0_6, %c0_7], %8 {strides = array<i32>} : memref<16x384xf32, #tpu.memory_space<vmem>>, vector<16x384xf32>,
    %c0_i32_8 = arith.constant 0 : i32
    %10 = arith.cmpi eq, %arg1, %c0_i32_8 : i32
    %11 = arith.extui %10 : i1 to i32
    %c0_i32_9 = arith.constant 0 : i32
    %12 = arith.cmpi ne, %11, %c0_i32_9 : i32
    scf.if %12 {
      %c0_10 = arith.constant 0 : index
      %c0_11 = arith.constant 0 : index
      %13 = vector.load %arg8[%c0_10, %c0_11] : memref<16x384xf32, #tpu.memory_space<vmem>>, vector<16x384xf32>
      %c0_12 = arith.constant 0 : index
      %c0_13 = arith.constant 0 : index
      %14 = vector.load %arg4[%c0_12, %c0_13] : memref<1x384xf32, #tpu.memory_space<vmem>>, vector<1x384xf32>
      %15 = vector.broadcast %14 : vector<1x384xf32> to vector<16x384xf32>
      %16 = arith.addf %13, %15 : vector<16x384xf32>
      %17 = vector.extract_strided_slice %16 {offsets = [0, 0], sizes = [16, 128], strides = [1, 1]} : vector<16x384xf32> to vector<16x128xf32>
      %18 = arith.truncf %17 : vector<16x128xf32> to vector<16x128xbf16>
      %c0_14 = arith.constant 0 : index
      %c0_15 = arith.constant 0 : index
      %19 = vector.load %arg5[%c0_14, %c0_15] : memref<16x128xbf16, #tpu.memory_space<vmem>>, vector<16x128xbf16>
      tpu.vector_store %arg5[%c0_14, %c0_15], %18 {strides = array<i32>} : memref<16x128xbf16, #tpu.memory_space<vmem>>, vector<16x128xbf16>,
      %20 = vector.extract_strided_slice %16 {offsets = [0, 128], sizes = [16, 128], strides = [1, 1]} : vector<16x384xf32> to vector<16x128xf32>
      %21 = arith.truncf %20 : vector<16x128xf32> to vector<16x128xbf16>
      %c0_16 = arith.constant 0 : index
      %c0_17 = arith.constant 0 : index
      %22 = vector.load %arg6[%c0_16, %c0_17] : memref<16x128xbf16, #tpu.memory_space<vmem>>, vector<16x128xbf16>
      tpu.vector_store %arg6[%c0_16, %c0_17], %21 {strides = array<i32>} : memref<16x128xbf16, #tpu.memory_space<vmem>>, vector<16x128xbf16>,
      %23 = vector.extract_strided_slice %16 {offsets = [0, 256], sizes = [16, 128], strides = [1, 1]} : vector<16x384xf32> to vector<16x128xf32>
      %24 = arith.truncf %23 : vector<16x128xf32> to vector<16x128xbf16>
      %c0_18 = arith.constant 0 : index
      %c0_19 = arith.constant 0 : index
      %25 = vector.load %arg7[%c0_18, %c0_19] : memref<16x128xbf16, #tpu.memory_space<vmem>>, vector<16x128xbf16>
      tpu.vector_store %arg7[%c0_18, %c0_19], %24 {strides = array<i32>} : memref<16x128xbf16, #tpu.memory_space<vmem>>, vector<16x128xbf16>,
    } else {
    }
    return
  }
  func.func @transform_0(%arg0: i32, %arg1: i32) -> (i32, i32) {
    %c0_i32 = arith.constant 0 : i32
    return %arg0, %arg1 : i32, i32
  }
  func.func @transform_1(%arg0: i32, %arg1: i32) -> (i32, i32) {
    %c0_i32 = arith.constant 0 : i32
    %c0_i32_0 = arith.constant 0 : i32
    return %arg1, %c0_i32 : i32, i32
  }
  func.func @transform_2(%arg0: i32, %arg1: i32) -> (i32, i32) {
    %c0_i32 = arith.constant 0 : i32
    %c0_i32_0 = arith.constant 0 : i32
    %c0_i32_1 = arith.constant 0 : i32
    return %c0_i32, %c0_i32_0 : i32, i32
  }
  func.func @transform_3(%arg0: i32, %arg1: i32) -> (i32, i32) {
    %c0_i32 = arith.constant 0 : i32
    %c0_i32_0 = arith.constant 0 : i32
    return %arg0, %c0_i32 : i32, i32
  }
  func.func @transform_4(%arg0: i32, %arg1: i32) -> (i32, i32) {
    %c0_i32 = arith.constant 0 : i32
    %c0_i32_0 = arith.constant 0 : i32
    return %arg0, %c0_i32 : i32, i32
  }
  func.func @transform_5(%arg0: i32, %arg1: i32) -> (i32, i32) {
    %c0_i32 = arith.constant 0 : i32
    %c0_i32_0 = arith.constant 0 : i32
    return %arg0, %c0_i32 : i32, i32
  }
}

module attributes {stable_mosaic.version = 11 : i64} {
  func.func @_ffn_ln_kernel(%arg0: i32, %arg1: i32, %arg2: memref<16x128xf32, #tpu.memory_space<vmem>>, %arg3: memref<128x256xbf16, #tpu.memory_space<vmem>>, %arg4: memref<1x256xf32, #tpu.memory_space<vmem>>, %arg5: memref<256x128xbf16, #tpu.memory_space<vmem>>, %arg6: memref<1x128xf32, #tpu.memory_space<vmem>>, %arg7: memref<16x128xf32, #tpu.memory_space<vmem>>, %arg8: memref<1x128xf32, #tpu.memory_space<vmem>>, %arg9: memref<1x128xf32, #tpu.memory_space<vmem>>, %arg10: memref<16x128xf32, #tpu.memory_space<vmem>>, %arg11: memref<16x128xf32, #tpu.memory_space<vmem>>) attributes {dimension_semantics = [#tpu.dimension_semantics<parallel>, #tpu.dimension_semantics<arbitrary>], iteration_bounds = array<i64: 1, 1>, scalar_prefetch = 0 : i64, scratch_operands = 1 : i64, tpu.core_type = #tpu.core_type<tc>, window_params = [{transform_indices = @transform_0, window_bounds = array<i64: 16, 128>}, {transform_indices = @transform_1, window_bounds = array<i64: 128, 256>}, {transform_indices = @transform_2, window_bounds = array<i64: 1, 256>}, {transform_indices = @transform_3, window_bounds = array<i64: 256, 128>}, {pipeline_mode = #tpu.pipeline_mode<synchronous>, transform_indices = @transform_4, window_bounds = array<i64: 1, 128>}, {transform_indices = @transform_5, window_bounds = array<i64: 16, 128>}, {pipeline_mode = #tpu.pipeline_mode<synchronous>, transform_indices = @transform_6, window_bounds = array<i64: 1, 128>}, {pipeline_mode = #tpu.pipeline_mode<synchronous>, transform_indices = @transform_7, window_bounds = array<i64: 1, 128>}, {transform_indices = @transform_8, window_bounds = array<i64: 16, 128>}]} {
    %c0_i32 = arith.constant 0 : i32
    %0 = arith.cmpi eq, %arg1, %c0_i32 : i32
    %1 = arith.extui %0 : i1 to i32
    %c0_i32_0 = arith.constant 0 : i32
    %2 = arith.cmpi ne, %1, %c0_i32_0 : i32
    scf.if %2 {
      %cst_16 = arith.constant 0.000000e+00 : f32
      %21 = vector.broadcast %cst_16 : f32 to vector<16x128xf32>
      %c0_17 = arith.constant 0 : index
      %c0_18 = arith.constant 0 : index
      %22 = vector.load %arg11[%c0_17, %c0_18] : memref<16x128xf32, #tpu.memory_space<vmem>>, vector<16x128xf32>
      tpu.vector_store %arg11[%c0_17, %c0_18], %21 {strides = array<i32>} : memref<16x128xf32, #tpu.memory_space<vmem>>, vector<16x128xf32>,
    } else {
    }
    %c0 = arith.constant 0 : index
    %c0_1 = arith.constant 0 : index
    %3 = vector.load %arg2[%c0, %c0_1] : memref<16x128xf32, #tpu.memory_space<vmem>>, vector<16x128xf32>
    %4 = arith.truncf %3 : vector<16x128xf32> to vector<16x128xbf16>
    %c0_2 = arith.constant 0 : index
    %c0_3 = arith.constant 0 : index
    %5 = vector.load %arg3[%c0_2, %c0_3] : memref<128x256xbf16, #tpu.memory_space<vmem>>, vector<128x256xbf16>
    %cst = arith.constant dense<0.000000e+00> : vector<16x256xf32>
    %6 = tpu.matmul %4, %5, %cst {dimension_numbers = #tpu.dot_dimension_numbers<[1], [0], [0], [1], [0, 0, 1, 1], [], []>} : vector<16x128xbf16>, vector<128x256xbf16>, vector<16x256xf32> -> vector<16x256xf32>
    %c0_4 = arith.constant 0 : index
    %c0_5 = arith.constant 0 : index
    %7 = vector.load %arg4[%c0_4, %c0_5] : memref<1x256xf32, #tpu.memory_space<vmem>>, vector<1x256xf32>
    %8 = vector.broadcast %7 : vector<1x256xf32> to vector<16x256xf32>
    %9 = arith.addf %6, %8 : vector<16x256xf32>
    %cst_6 = arith.constant 0.000000e+00 : f32
    %10 = vector.broadcast %cst_6 : f32 to vector<16x256xf32>
    %11 = arith.maximumf %9, %10 : vector<16x256xf32>
    %c0_7 = arith.constant 0 : index
    %c0_8 = arith.constant 0 : index
    %12 = vector.load %arg11[%c0_7, %c0_8] : memref<16x128xf32, #tpu.memory_space<vmem>>, vector<16x128xf32>
    %13 = arith.truncf %11 : vector<16x256xf32> to vector<16x256xbf16>
    %c0_9 = arith.constant 0 : index
    %c0_10 = arith.constant 0 : index
    %14 = vector.load %arg5[%c0_9, %c0_10] : memref<256x128xbf16, #tpu.memory_space<vmem>>, vector<256x128xbf16>
    %cst_11 = arith.constant dense<0.000000e+00> : vector<16x128xf32>
    %15 = tpu.matmul %13, %14, %cst_11 {dimension_numbers = #tpu.dot_dimension_numbers<[1], [0], [0], [1], [0, 0, 1, 1], [], []>} : vector<16x256xbf16>, vector<256x128xbf16>, vector<16x128xf32> -> vector<16x128xf32>
    %16 = arith.addf %12, %15 : vector<16x128xf32>
    %c0_12 = arith.constant 0 : index
    %c0_13 = arith.constant 0 : index
    %17 = vector.load %arg11[%c0_12, %c0_13] : memref<16x128xf32, #tpu.memory_space<vmem>>, vector<16x128xf32>
    tpu.vector_store %arg11[%c0_12, %c0_13], %16 {strides = array<i32>} : memref<16x128xf32, #tpu.memory_space<vmem>>, vector<16x128xf32>,
    %c0_i32_14 = arith.constant 0 : i32
    %18 = arith.cmpi eq, %arg1, %c0_i32_14 : i32
    %19 = arith.extui %18 : i1 to i32
    %c0_i32_15 = arith.constant 0 : i32
    %20 = arith.cmpi ne, %19, %c0_i32_15 : i32
    scf.if %20 {
      %c0_16 = arith.constant 0 : index
      %c0_17 = arith.constant 0 : index
      %21 = vector.load %arg11[%c0_16, %c0_17] : memref<16x128xf32, #tpu.memory_space<vmem>>, vector<16x128xf32>
      %c0_18 = arith.constant 0 : index
      %c0_19 = arith.constant 0 : index
      %22 = vector.load %arg6[%c0_18, %c0_19] : memref<1x128xf32, #tpu.memory_space<vmem>>, vector<1x128xf32>
      %23 = vector.broadcast %22 : vector<1x128xf32> to vector<16x128xf32>
      %24 = arith.addf %21, %23 : vector<16x128xf32>
      %c0_20 = arith.constant 0 : index
      %c0_21 = arith.constant 0 : index
      %25 = vector.load %arg7[%c0_20, %c0_21] : memref<16x128xf32, #tpu.memory_space<vmem>>, vector<16x128xf32>
      %26 = arith.addf %24, %25 : vector<16x128xf32>
      %cst_22 = arith.constant dense<0.000000e+00> : vector<16xf32>
      %27 = vector.multi_reduction <add>, %26, %cst_22 [1] : vector<16x128xf32> to vector<16xf32>
      %28 = vector.shape_cast %27 : vector<16xf32> to vector<16x1xf32>
      %cst_23 = arith.constant 1.280000e+02 : f32
      %29 = vector.broadcast %cst_23 : f32 to vector<16x1xf32>
      %30 = arith.divf %28, %29 : vector<16x1xf32>
      %31 = vector.broadcast %30 : vector<16x1xf32> to vector<16x128xf32>
      %32 = arith.subf %26, %31 : vector<16x128xf32>
      %33 = arith.mulf %32, %32 : vector<16x128xf32>
      %cst_24 = arith.constant dense<0.000000e+00> : vector<16xf32>
      %34 = vector.multi_reduction <add>, %33, %cst_24 [1] : vector<16x128xf32> to vector<16xf32>
      %35 = vector.shape_cast %34 : vector<16xf32> to vector<16x1xf32>
      %cst_25 = arith.constant 1.280000e+02 : f32
      %36 = vector.broadcast %cst_25 : f32 to vector<16x1xf32>
      %37 = arith.divf %35, %36 : vector<16x1xf32>
      %38 = vector.broadcast %30 : vector<16x1xf32> to vector<16x128xf32>
      %39 = arith.subf %26, %38 : vector<16x128xf32>
      %cst_26 = arith.constant 9.99999974E-6 : f32
      %40 = vector.broadcast %cst_26 : f32 to vector<16x1xf32>
      %41 = arith.addf %37, %40 : vector<16x1xf32>
      %42 = math.rsqrt %41 : vector<16x1xf32>
      %43 = vector.broadcast %42 : vector<16x1xf32> to vector<16x128xf32>
      %44 = arith.mulf %39, %43 : vector<16x128xf32>
      %c0_27 = arith.constant 0 : index
      %c0_28 = arith.constant 0 : index
      %45 = vector.load %arg8[%c0_27, %c0_28] : memref<1x128xf32, #tpu.memory_space<vmem>>, vector<1x128xf32>
      %46 = vector.broadcast %45 : vector<1x128xf32> to vector<16x128xf32>
      %47 = arith.mulf %44, %46 : vector<16x128xf32>
      %c0_29 = arith.constant 0 : index
      %c0_30 = arith.constant 0 : index
      %48 = vector.load %arg9[%c0_29, %c0_30] : memref<1x128xf32, #tpu.memory_space<vmem>>, vector<1x128xf32>
      %49 = vector.broadcast %48 : vector<1x128xf32> to vector<16x128xf32>
      %50 = arith.addf %47, %49 : vector<16x128xf32>
      %c0_31 = arith.constant 0 : index
      %c0_32 = arith.constant 0 : index
      %51 = vector.load %arg10[%c0_31, %c0_32] : memref<16x128xf32, #tpu.memory_space<vmem>>, vector<16x128xf32>
      tpu.vector_store %arg10[%c0_31, %c0_32], %50 {strides = array<i32>} : memref<16x128xf32, #tpu.memory_space<vmem>>, vector<16x128xf32>,
    } else {
    }
    return
  }
  func.func @transform_0(%arg0: i32, %arg1: i32) -> (i32, i32) {
    %c0_i32 = arith.constant 0 : i32
    %c0_i32_0 = arith.constant 0 : i32
    return %arg0, %c0_i32 : i32, i32
  }
  func.func @transform_1(%arg0: i32, %arg1: i32) -> (i32, i32) {
    %c0_i32 = arith.constant 0 : i32
    %c0_i32_0 = arith.constant 0 : i32
    return %c0_i32, %arg1 : i32, i32
  }
  func.func @transform_2(%arg0: i32, %arg1: i32) -> (i32, i32) {
    %c0_i32 = arith.constant 0 : i32
    %c0_i32_0 = arith.constant 0 : i32
    return %c0_i32, %arg1 : i32, i32
  }
  func.func @transform_3(%arg0: i32, %arg1: i32) -> (i32, i32) {
    %c0_i32 = arith.constant 0 : i32
    %c0_i32_0 = arith.constant 0 : i32
    return %arg1, %c0_i32 : i32, i32
  }
  func.func @transform_4(%arg0: i32, %arg1: i32) -> (i32, i32) {
    %c0_i32 = arith.constant 0 : i32
    %c0_i32_0 = arith.constant 0 : i32
    %c0_i32_1 = arith.constant 0 : i32
    return %c0_i32, %c0_i32_0 : i32, i32
  }
  func.func @transform_5(%arg0: i32, %arg1: i32) -> (i32, i32) {
    %c0_i32 = arith.constant 0 : i32
    %c0_i32_0 = arith.constant 0 : i32
    return %arg0, %c0_i32 : i32, i32
  }
  func.func @transform_6(%arg0: i32, %arg1: i32) -> (i32, i32) {
    %c0_i32 = arith.constant 0 : i32
    %c0_i32_0 = arith.constant 0 : i32
    %c0_i32_1 = arith.constant 0 : i32
    return %c0_i32, %c0_i32_0 : i32, i32
  }
  func.func @transform_7(%arg0: i32, %arg1: i32) -> (i32, i32) {
    %c0_i32 = arith.constant 0 : i32
    %c0_i32_0 = arith.constant 0 : i32
    %c0_i32_1 = arith.constant 0 : i32
    return %c0_i32, %c0_i32_0 : i32, i32
  }
  func.func @transform_8(%arg0: i32, %arg1: i32) -> (i32, i32) {
    %c0_i32 = arith.constant 0 : i32
    %c0_i32_0 = arith.constant 0 : i32
    return %arg0, %c0_i32 : i32, i32
  }
}

module attributes {stable_mosaic.version = 11 : i64} {
  func.func @_flash_attn_kernel(%arg0: i32, %arg1: i32, %arg2: i32, %arg3: i32, %arg4: memref<1x8x128xbf16, #tpu.memory_space<vmem>>, %arg5: memref<1x8x128xbf16, #tpu.memory_space<vmem>>, %arg6: memref<1x8x128xbf16, #tpu.memory_space<vmem>>, %arg7: memref<1x1x8xi32, #tpu.memory_space<vmem>>, %arg8: memref<1x8x128xbf16, #tpu.memory_space<vmem>>, %arg9: memref<4x8x1xf32, #tpu.memory_space<vmem>>, %arg10: memref<4x8x1xf32, #tpu.memory_space<vmem>>, %arg11: memref<4x8x32xf32, #tpu.memory_space<vmem>>) attributes {dimension_semantics = [#tpu.dimension_semantics<parallel>, #tpu.dimension_semantics<parallel>, #tpu.dimension_semantics<parallel>, #tpu.dimension_semantics<arbitrary>], iteration_bounds = array<i64: 2, 1, 1, 1>, scalar_prefetch = 0 : i64, scratch_operands = 3 : i64, tpu.core_type = #tpu.core_type<tc>, window_params = [{transform_indices = @transform_0, window_bounds = array<i64: 1, 8, 128>}, {transform_indices = @transform_1, window_bounds = array<i64: 1, 8, 128>}, {transform_indices = @transform_2, window_bounds = array<i64: 1, 8, 128>}, {transform_indices = @transform_3, window_bounds = array<i64: 1, 1, 8>}, {transform_indices = @transform_4, window_bounds = array<i64: 1, 8, 128>}]} {
    %c0_i32 = arith.constant 0 : i32
    %0 = arith.cmpi eq, %arg3, %c0_i32 : i32
    %1 = arith.extui %0 : i1 to i32
    %c0_i32_0 = arith.constant 0 : i32
    %2 = arith.cmpi ne, %1, %c0_i32_0 : i32
    scf.if %2 {
      %cst_103 = arith.constant 0xFF800000 : f32
      %170 = vector.broadcast %cst_103 : f32 to vector<4x8x1xf32>
      %c0_104 = arith.constant 0 : index
      %c0_105 = arith.constant 0 : index
      %c0_106 = arith.constant 0 : index
      %171 = vector.load %arg9[%c0_104, %c0_105, %c0_106] : memref<4x8x1xf32, #tpu.memory_space<vmem>>, vector<4x8x1xf32>
      tpu.vector_store %arg9[%c0_104, %c0_105, %c0_106], %170 {strides = array<i32>} : memref<4x8x1xf32, #tpu.memory_space<vmem>>, vector<4x8x1xf32>,
      %cst_107 = arith.constant 0.000000e+00 : f32
      %172 = vector.broadcast %cst_107 : f32 to vector<4x8x1xf32>
      %c0_108 = arith.constant 0 : index
      %c0_109 = arith.constant 0 : index
      %c0_110 = arith.constant 0 : index
      %173 = vector.load %arg10[%c0_108, %c0_109, %c0_110] : memref<4x8x1xf32, #tpu.memory_space<vmem>>, vector<4x8x1xf32>
      tpu.vector_store %arg10[%c0_108, %c0_109, %c0_110], %172 {strides = array<i32>} : memref<4x8x1xf32, #tpu.memory_space<vmem>>, vector<4x8x1xf32>,
      %cst_111 = arith.constant 0.000000e+00 : f32
      %174 = vector.broadcast %cst_111 : f32 to vector<4x8x32xf32>
      %c0_112 = arith.constant 0 : index
      %c0_113 = arith.constant 0 : index
      %c0_114 = arith.constant 0 : index
      %175 = vector.load %arg11[%c0_112, %c0_113, %c0_114] : memref<4x8x32xf32, #tpu.memory_space<vmem>>, vector<4x8x32xf32>
      tpu.vector_store %arg11[%c0_112, %c0_113, %c0_114], %174 {strides = array<i32>} : memref<4x8x32xf32, #tpu.memory_space<vmem>>, vector<4x8x32xf32>,
    } else {
    }
    %c0 = arith.constant 0 : index
    %c0_1 = arith.constant 0 : index
    %c0_2 = arith.constant 0 : index
    %3 = vector.load %arg4[%c0, %c0_1, %c0_2] : memref<1x8x128xbf16, #tpu.memory_space<vmem>>, vector<1x8x128xbf16>
    %4 = vector.shape_cast %3 : vector<1x8x128xbf16> to vector<8x128xbf16>
    %c0_3 = arith.constant 0 : index
    %c0_4 = arith.constant 0 : index
    %c0_5 = arith.constant 0 : index
    %5 = vector.load %arg5[%c0_3, %c0_4, %c0_5] : memref<1x8x128xbf16, #tpu.memory_space<vmem>>, vector<1x8x128xbf16>
    %6 = vector.shape_cast %5 : vector<1x8x128xbf16> to vector<8x128xbf16>
    %c0_6 = arith.constant 0 : index
    %c0_7 = arith.constant 0 : index
    %c0_8 = arith.constant 0 : index
    %7 = vector.load %arg6[%c0_6, %c0_7, %c0_8] : memref<1x8x128xbf16, #tpu.memory_space<vmem>>, vector<1x8x128xbf16>
    %8 = vector.shape_cast %7 : vector<1x8x128xbf16> to vector<8x128xbf16>
    %c0_9 = arith.constant 0 : index
    %c0_10 = arith.constant 0 : index
    %c0_11 = arith.constant 0 : index
    %9 = vector.load %arg7[%c0_9, %c0_10, %c0_11] : memref<1x1x8xi32, #tpu.memory_space<vmem>>, vector<1x1x8xi32>
    %10 = vector.shape_cast %9 : vector<1x1x8xi32> to vector<1x8xi32>
    %c0_i32_12 = arith.constant 0 : i32
    %11 = vector.broadcast %c0_i32_12 : i32 to vector<1x8xi32>
    %12 = arith.cmpi ne, %10, %11 : vector<1x8xi32>
    %13 = vector.shape_cast %12 : vector<1x8xi1> to vector<1x8xi1>
    %14 = vector.broadcast %13 : vector<1x8xi1> to vector<8x8xi1>
    %15 = vector.extract_strided_slice %4 {offsets = [0, 0], sizes = [8, 32], strides = [1, 1]} : vector<8x128xbf16> to vector<8x32xbf16>
    %16 = vector.extract_strided_slice %6 {offsets = [0, 0], sizes = [8, 32], strides = [1, 1]} : vector<8x128xbf16> to vector<8x32xbf16>
    %17 = vector.extract_strided_slice %8 {offsets = [0, 0], sizes = [8, 32], strides = [1, 1]} : vector<8x128xbf16> to vector<8x32xbf16>
    %cst = arith.constant dense<0.000000e+00> : vector<8x8xf32>
    %18 = tpu.matmul %15, %16, %cst {dimension_numbers = #tpu.dot_dimension_numbers<[1], [1], [0], [0], [0, 0, 1, 0], [], []>} : vector<8x32xbf16>, vector<8x32xbf16>, vector<8x8xf32> -> vector<8x8xf32>
    %cst_13 = arith.constant -1.000000e+09 : f32
    %19 = vector.broadcast %cst_13 : f32 to vector<8x8xf32>
    %20 = arith.select %14, %18, %19 : vector<8x8xi1>, vector<8x8xf32>
    %c0_14 = arith.constant 0 : index
    %c0_15 = arith.constant 0 : index
    %c0_16 = arith.constant 0 : index
    %21 = vector.load %arg9[%c0_14, %c0_15, %c0_16] : memref<4x8x1xf32, #tpu.memory_space<vmem>>, vector<1x8x1xf32>
    %22 = vector.shape_cast %21 : vector<1x8x1xf32> to vector<8x1xf32>
    %cst_17 = arith.constant dense<0xFF800000> : vector<8xf32>
    %23 = vector.multi_reduction <maximumf>, %20, %cst_17 [1] : vector<8x8xf32> to vector<8xf32>
    %24 = vector.shape_cast %23 : vector<8xf32> to vector<8x1xf32>
    %25 = arith.maximumf %22, %24 : vector<8x1xf32>
    %26 = arith.subf %22, %25 : vector<8x1xf32>
    %27 = math.exp %26 : vector<8x1xf32>
    %28 = vector.broadcast %25 : vector<8x1xf32> to vector<8x8xf32>
    %29 = arith.subf %20, %28 : vector<8x8xf32>
    %30 = math.exp %29 : vector<8x8xf32>
    %c0_18 = arith.constant 0 : index
    %c0_19 = arith.constant 0 : index
    %c0_20 = arith.constant 0 : index
    %31 = vector.load %arg10[%c0_18, %c0_19, %c0_20] : memref<4x8x1xf32, #tpu.memory_space<vmem>>, vector<1x8x1xf32>
    %32 = vector.shape_cast %31 : vector<1x8x1xf32> to vector<8x1xf32>
    %33 = arith.mulf %27, %32 : vector<8x1xf32>
    %cst_21 = arith.constant dense<0.000000e+00> : vector<8xf32>
    %34 = vector.multi_reduction <add>, %30, %cst_21 [1] : vector<8x8xf32> to vector<8xf32>
    %35 = vector.shape_cast %34 : vector<8xf32> to vector<8x1xf32>
    %36 = arith.addf %33, %35 : vector<8x1xf32>
    %c0_22 = arith.constant 0 : index
    %c0_23 = arith.constant 0 : index
    %c0_24 = arith.constant 0 : index
    %37 = vector.load %arg10[%c0_22, %c0_23, %c0_24] : memref<4x8x1xf32, #tpu.memory_space<vmem>>, vector<1x8x1xf32>
    %38 = vector.shape_cast %37 : vector<1x8x1xf32> to vector<8x1xf32>
    %39 = vector.shape_cast %36 : vector<8x1xf32> to vector<1x8x1xf32>
    tpu.vector_store %arg10[%c0_22, %c0_23, %c0_24], %39 {strides = array<i32>} : memref<4x8x1xf32, #tpu.memory_space<vmem>>, vector<1x8x1xf32>,
    %c0_25 = arith.constant 0 : index
    %c0_26 = arith.constant 0 : index
    %c0_27 = arith.constant 0 : index
    %40 = vector.load %arg11[%c0_25, %c0_26, %c0_27] : memref<4x8x32xf32, #tpu.memory_space<vmem>>, vector<1x8x32xf32>
    %41 = vector.shape_cast %40 : vector<1x8x32xf32> to vector<8x32xf32>
    %42 = vector.broadcast %27 : vector<8x1xf32> to vector<8x32xf32>
    %43 = arith.mulf %42, %41 : vector<8x32xf32>
    %44 = arith.truncf %30 : vector<8x8xf32> to vector<8x8xbf16>
    %cst_28 = arith.constant dense<0.000000e+00> : vector<8x32xf32>
    %45 = tpu.matmul %44, %17, %cst_28 {dimension_numbers = #tpu.dot_dimension_numbers<[1], [0], [0], [1], [0, 0, 1, 1], [], []>} : vector<8x8xbf16>, vector<8x32xbf16>, vector<8x32xf32> -> vector<8x32xf32>
    %46 = arith.addf %43, %45 : vector<8x32xf32>
    %c0_29 = arith.constant 0 : index
    %c0_30 = arith.constant 0 : index
    %c0_31 = arith.constant 0 : index
    %47 = vector.load %arg11[%c0_29, %c0_30, %c0_31] : memref<4x8x32xf32, #tpu.memory_space<vmem>>, vector<1x8x32xf32>
    %48 = vector.shape_cast %47 : vector<1x8x32xf32> to vector<8x32xf32>
    %49 = vector.shape_cast %46 : vector<8x32xf32> to vector<1x8x32xf32>
    tpu.vector_store %arg11[%c0_29, %c0_30, %c0_31], %49 {strides = array<i32>} : memref<4x8x32xf32, #tpu.memory_space<vmem>>, vector<1x8x32xf32>,
    %c0_32 = arith.constant 0 : index
    %c0_33 = arith.constant 0 : index
    %c0_34 = arith.constant 0 : index
    %50 = vector.load %arg9[%c0_32, %c0_33, %c0_34] : memref<4x8x1xf32, #tpu.memory_space<vmem>>, vector<1x8x1xf32>
    %51 = vector.shape_cast %50 : vector<1x8x1xf32> to vector<8x1xf32>
    %52 = vector.shape_cast %25 : vector<8x1xf32> to vector<1x8x1xf32>
    tpu.vector_store %arg9[%c0_32, %c0_33, %c0_34], %52 {strides = array<i32>} : memref<4x8x1xf32, #tpu.memory_space<vmem>>, vector<1x8x1xf32>,
    %53 = vector.extract_strided_slice %4 {offsets = [0, 32], sizes = [8, 32], strides = [1, 1]} : vector<8x128xbf16> to vector<8x32xbf16>
    %54 = vector.extract_strided_slice %6 {offsets = [0, 32], sizes = [8, 32], strides = [1, 1]} : vector<8x128xbf16> to vector<8x32xbf16>
    %55 = vector.extract_strided_slice %8 {offsets = [0, 32], sizes = [8, 32], strides = [1, 1]} : vector<8x128xbf16> to vector<8x32xbf16>
    %cst_35 = arith.constant dense<0.000000e+00> : vector<8x8xf32>
    %56 = tpu.matmul %53, %54, %cst_35 {dimension_numbers = #tpu.dot_dimension_numbers<[1], [1], [0], [0], [0, 0, 1, 0], [], []>} : vector<8x32xbf16>, vector<8x32xbf16>, vector<8x8xf32> -> vector<8x8xf32>
    %cst_36 = arith.constant -1.000000e+09 : f32
    %57 = vector.broadcast %cst_36 : f32 to vector<8x8xf32>
    %58 = arith.select %14, %56, %57 : vector<8x8xi1>, vector<8x8xf32>
    %c1 = arith.constant 1 : index
    %c0_37 = arith.constant 0 : index
    %c0_38 = arith.constant 0 : index
    %59 = vector.load %arg9[%c1, %c0_37, %c0_38] : memref<4x8x1xf32, #tpu.memory_space<vmem>>, vector<1x8x1xf32>
    %60 = vector.shape_cast %59 : vector<1x8x1xf32> to vector<8x1xf32>
    %cst_39 = arith.constant dense<0xFF800000> : vector<8xf32>
    %61 = vector.multi_reduction <maximumf>, %58, %cst_39 [1] : vector<8x8xf32> to vector<8xf32>
    %62 = vector.shape_cast %61 : vector<8xf32> to vector<8x1xf32>
    %63 = arith.maximumf %60, %62 : vector<8x1xf32>
    %64 = arith.subf %60, %63 : vector<8x1xf32>
    %65 = math.exp %64 : vector<8x1xf32>
    %66 = vector.broadcast %63 : vector<8x1xf32> to vector<8x8xf32>
    %67 = arith.subf %58, %66 : vector<8x8xf32>
    %68 = math.exp %67 : vector<8x8xf32>
    %c1_40 = arith.constant 1 : index
    %c0_41 = arith.constant 0 : index
    %c0_42 = arith.constant 0 : index
    %69 = vector.load %arg10[%c1_40, %c0_41, %c0_42] : memref<4x8x1xf32, #tpu.memory_space<vmem>>, vector<1x8x1xf32>
    %70 = vector.shape_cast %69 : vector<1x8x1xf32> to vector<8x1xf32>
    %71 = arith.mulf %65, %70 : vector<8x1xf32>
    %cst_43 = arith.constant dense<0.000000e+00> : vector<8xf32>
    %72 = vector.multi_reduction <add>, %68, %cst_43 [1] : vector<8x8xf32> to vector<8xf32>
    %73 = vector.shape_cast %72 : vector<8xf32> to vector<8x1xf32>
    %74 = arith.addf %71, %73 : vector<8x1xf32>
    %c1_44 = arith.constant 1 : index
    %c0_45 = arith.constant 0 : index
    %c0_46 = arith.constant 0 : index
    %75 = vector.load %arg10[%c1_44, %c0_45, %c0_46] : memref<4x8x1xf32, #tpu.memory_space<vmem>>, vector<1x8x1xf32>
    %76 = vector.shape_cast %75 : vector<1x8x1xf32> to vector<8x1xf32>
    %77 = vector.shape_cast %74 : vector<8x1xf32> to vector<1x8x1xf32>
    tpu.vector_store %arg10[%c1_44, %c0_45, %c0_46], %77 {strides = array<i32>} : memref<4x8x1xf32, #tpu.memory_space<vmem>>, vector<1x8x1xf32>,
    %c1_47 = arith.constant 1 : index
    %c0_48 = arith.constant 0 : index
    %c0_49 = arith.constant 0 : index
    %78 = vector.load %arg11[%c1_47, %c0_48, %c0_49] : memref<4x8x32xf32, #tpu.memory_space<vmem>>, vector<1x8x32xf32>
    %79 = vector.shape_cast %78 : vector<1x8x32xf32> to vector<8x32xf32>
    %80 = vector.broadcast %65 : vector<8x1xf32> to vector<8x32xf32>
    %81 = arith.mulf %80, %79 : vector<8x32xf32>
    %82 = arith.truncf %68 : vector<8x8xf32> to vector<8x8xbf16>
    %cst_50 = arith.constant dense<0.000000e+00> : vector<8x32xf32>
    %83 = tpu.matmul %82, %55, %cst_50 {dimension_numbers = #tpu.dot_dimension_numbers<[1], [0], [0], [1], [0, 0, 1, 1], [], []>} : vector<8x8xbf16>, vector<8x32xbf16>, vector<8x32xf32> -> vector<8x32xf32>
    %84 = arith.addf %81, %83 : vector<8x32xf32>
    %c1_51 = arith.constant 1 : index
    %c0_52 = arith.constant 0 : index
    %c0_53 = arith.constant 0 : index
    %85 = vector.load %arg11[%c1_51, %c0_52, %c0_53] : memref<4x8x32xf32, #tpu.memory_space<vmem>>, vector<1x8x32xf32>
    %86 = vector.shape_cast %85 : vector<1x8x32xf32> to vector<8x32xf32>
    %87 = vector.shape_cast %84 : vector<8x32xf32> to vector<1x8x32xf32>
    tpu.vector_store %arg11[%c1_51, %c0_52, %c0_53], %87 {strides = array<i32>} : memref<4x8x32xf32, #tpu.memory_space<vmem>>, vector<1x8x32xf32>,
    %c1_54 = arith.constant 1 : index
    %c0_55 = arith.constant 0 : index
    %c0_56 = arith.constant 0 : index
    %88 = vector.load %arg9[%c1_54, %c0_55, %c0_56] : memref<4x8x1xf32, #tpu.memory_space<vmem>>, vector<1x8x1xf32>
    %89 = vector.shape_cast %88 : vector<1x8x1xf32> to vector<8x1xf32>
    %90 = vector.shape_cast %63 : vector<8x1xf32> to vector<1x8x1xf32>
    tpu.vector_store %arg9[%c1_54, %c0_55, %c0_56], %90 {strides = array<i32>} : memref<4x8x1xf32, #tpu.memory_space<vmem>>, vector<1x8x1xf32>,
    %91 = vector.extract_strided_slice %4 {offsets = [0, 64], sizes = [8, 32], strides = [1, 1]} : vector<8x128xbf16> to vector<8x32xbf16>
    %92 = vector.extract_strided_slice %6 {offsets = [0, 64], sizes = [8, 32], strides = [1, 1]} : vector<8x128xbf16> to vector<8x32xbf16>
    %93 = vector.extract_strided_slice %8 {offsets = [0, 64], sizes = [8, 32], strides = [1, 1]} : vector<8x128xbf16> to vector<8x32xbf16>
    %cst_57 = arith.constant dense<0.000000e+00> : vector<8x8xf32>
    %94 = tpu.matmul %91, %92, %cst_57 {dimension_numbers = #tpu.dot_dimension_numbers<[1], [1], [0], [0], [0, 0, 1, 0], [], []>} : vector<8x32xbf16>, vector<8x32xbf16>, vector<8x8xf32> -> vector<8x8xf32>
    %cst_58 = arith.constant -1.000000e+09 : f32
    %95 = vector.broadcast %cst_58 : f32 to vector<8x8xf32>
    %96 = arith.select %14, %94, %95 : vector<8x8xi1>, vector<8x8xf32>
    %c2 = arith.constant 2 : index
    %c0_59 = arith.constant 0 : index
    %c0_60 = arith.constant 0 : index
    %97 = vector.load %arg9[%c2, %c0_59, %c0_60] : memref<4x8x1xf32, #tpu.memory_space<vmem>>, vector<1x8x1xf32>
    %98 = vector.shape_cast %97 : vector<1x8x1xf32> to vector<8x1xf32>
    %cst_61 = arith.constant dense<0xFF800000> : vector<8xf32>
    %99 = vector.multi_reduction <maximumf>, %96, %cst_61 [1] : vector<8x8xf32> to vector<8xf32>
    %100 = vector.shape_cast %99 : vector<8xf32> to vector<8x1xf32>
    %101 = arith.maximumf %98, %100 : vector<8x1xf32>
    %102 = arith.subf %98, %101 : vector<8x1xf32>
    %103 = math.exp %102 : vector<8x1xf32>
    %104 = vector.broadcast %101 : vector<8x1xf32> to vector<8x8xf32>
    %105 = arith.subf %96, %104 : vector<8x8xf32>
    %106 = math.exp %105 : vector<8x8xf32>
    %c2_62 = arith.constant 2 : index
    %c0_63 = arith.constant 0 : index
    %c0_64 = arith.constant 0 : index
    %107 = vector.load %arg10[%c2_62, %c0_63, %c0_64] : memref<4x8x1xf32, #tpu.memory_space<vmem>>, vector<1x8x1xf32>
    %108 = vector.shape_cast %107 : vector<1x8x1xf32> to vector<8x1xf32>
    %109 = arith.mulf %103, %108 : vector<8x1xf32>
    %cst_65 = arith.constant dense<0.000000e+00> : vector<8xf32>
    %110 = vector.multi_reduction <add>, %106, %cst_65 [1] : vector<8x8xf32> to vector<8xf32>
    %111 = vector.shape_cast %110 : vector<8xf32> to vector<8x1xf32>
    %112 = arith.addf %109, %111 : vector<8x1xf32>
    %c2_66 = arith.constant 2 : index
    %c0_67 = arith.constant 0 : index
    %c0_68 = arith.constant 0 : index
    %113 = vector.load %arg10[%c2_66, %c0_67, %c0_68] : memref<4x8x1xf32, #tpu.memory_space<vmem>>, vector<1x8x1xf32>
    %114 = vector.shape_cast %113 : vector<1x8x1xf32> to vector<8x1xf32>
    %115 = vector.shape_cast %112 : vector<8x1xf32> to vector<1x8x1xf32>
    tpu.vector_store %arg10[%c2_66, %c0_67, %c0_68], %115 {strides = array<i32>} : memref<4x8x1xf32, #tpu.memory_space<vmem>>, vector<1x8x1xf32>,
    %c2_69 = arith.constant 2 : index
    %c0_70 = arith.constant 0 : index
    %c0_71 = arith.constant 0 : index
    %116 = vector.load %arg11[%c2_69, %c0_70, %c0_71] : memref<4x8x32xf32, #tpu.memory_space<vmem>>, vector<1x8x32xf32>
    %117 = vector.shape_cast %116 : vector<1x8x32xf32> to vector<8x32xf32>
    %118 = vector.broadcast %103 : vector<8x1xf32> to vector<8x32xf32>
    %119 = arith.mulf %118, %117 : vector<8x32xf32>
    %120 = arith.truncf %106 : vector<8x8xf32> to vector<8x8xbf16>
    %cst_72 = arith.constant dense<0.000000e+00> : vector<8x32xf32>
    %121 = tpu.matmul %120, %93, %cst_72 {dimension_numbers = #tpu.dot_dimension_numbers<[1], [0], [0], [1], [0, 0, 1, 1], [], []>} : vector<8x8xbf16>, vector<8x32xbf16>, vector<8x32xf32> -> vector<8x32xf32>
    %122 = arith.addf %119, %121 : vector<8x32xf32>
    %c2_73 = arith.constant 2 : index
    %c0_74 = arith.constant 0 : index
    %c0_75 = arith.constant 0 : index
    %123 = vector.load %arg11[%c2_73, %c0_74, %c0_75] : memref<4x8x32xf32, #tpu.memory_space<vmem>>, vector<1x8x32xf32>
    %124 = vector.shape_cast %123 : vector<1x8x32xf32> to vector<8x32xf32>
    %125 = vector.shape_cast %122 : vector<8x32xf32> to vector<1x8x32xf32>
    tpu.vector_store %arg11[%c2_73, %c0_74, %c0_75], %125 {strides = array<i32>} : memref<4x8x32xf32, #tpu.memory_space<vmem>>, vector<1x8x32xf32>,
    %c2_76 = arith.constant 2 : index
    %c0_77 = arith.constant 0 : index
    %c0_78 = arith.constant 0 : index
    %126 = vector.load %arg9[%c2_76, %c0_77, %c0_78] : memref<4x8x1xf32, #tpu.memory_space<vmem>>, vector<1x8x1xf32>
    %127 = vector.shape_cast %126 : vector<1x8x1xf32> to vector<8x1xf32>
    %128 = vector.shape_cast %101 : vector<8x1xf32> to vector<1x8x1xf32>
    tpu.vector_store %arg9[%c2_76, %c0_77, %c0_78], %128 {strides = array<i32>} : memref<4x8x1xf32, #tpu.memory_space<vmem>>, vector<1x8x1xf32>,
    %129 = vector.extract_strided_slice %4 {offsets = [0, 96], sizes = [8, 32], strides = [1, 1]} : vector<8x128xbf16> to vector<8x32xbf16>
    %130 = vector.extract_strided_slice %6 {offsets = [0, 96], sizes = [8, 32], strides = [1, 1]} : vector<8x128xbf16> to vector<8x32xbf16>
    %131 = vector.extract_strided_slice %8 {offsets = [0, 96], sizes = [8, 32], strides = [1, 1]} : vector<8x128xbf16> to vector<8x32xbf16>
    %cst_79 = arith.constant dense<0.000000e+00> : vector<8x8xf32>
    %132 = tpu.matmul %129, %130, %cst_79 {dimension_numbers = #tpu.dot_dimension_numbers<[1], [1], [0], [0], [0, 0, 1, 0], [], []>} : vector<8x32xbf16>, vector<8x32xbf16>, vector<8x8xf32> -> vector<8x8xf32>
    %cst_80 = arith.constant -1.000000e+09 : f32
    %133 = vector.broadcast %cst_80 : f32 to vector<8x8xf32>
    %134 = arith.select %14, %132, %133 : vector<8x8xi1>, vector<8x8xf32>
    %c3 = arith.constant 3 : index
    %c0_81 = arith.constant 0 : index
    %c0_82 = arith.constant 0 : index
    %135 = vector.load %arg9[%c3, %c0_81, %c0_82] : memref<4x8x1xf32, #tpu.memory_space<vmem>>, vector<1x8x1xf32>
    %136 = vector.shape_cast %135 : vector<1x8x1xf32> to vector<8x1xf32>
    %cst_83 = arith.constant dense<0xFF800000> : vector<8xf32>
    %137 = vector.multi_reduction <maximumf>, %134, %cst_83 [1] : vector<8x8xf32> to vector<8xf32>
    %138 = vector.shape_cast %137 : vector<8xf32> to vector<8x1xf32>
    %139 = arith.maximumf %136, %138 : vector<8x1xf32>
    %140 = arith.subf %136, %139 : vector<8x1xf32>
    %141 = math.exp %140 : vector<8x1xf32>
    %142 = vector.broadcast %139 : vector<8x1xf32> to vector<8x8xf32>
    %143 = arith.subf %134, %142 : vector<8x8xf32>
    %144 = math.exp %143 : vector<8x8xf32>
    %c3_84 = arith.constant 3 : index
    %c0_85 = arith.constant 0 : index
    %c0_86 = arith.constant 0 : index
    %145 = vector.load %arg10[%c3_84, %c0_85, %c0_86] : memref<4x8x1xf32, #tpu.memory_space<vmem>>, vector<1x8x1xf32>
    %146 = vector.shape_cast %145 : vector<1x8x1xf32> to vector<8x1xf32>
    %147 = arith.mulf %141, %146 : vector<8x1xf32>
    %cst_87 = arith.constant dense<0.000000e+00> : vector<8xf32>
    %148 = vector.multi_reduction <add>, %144, %cst_87 [1] : vector<8x8xf32> to vector<8xf32>
    %149 = vector.shape_cast %148 : vector<8xf32> to vector<8x1xf32>
    %150 = arith.addf %147, %149 : vector<8x1xf32>
    %c3_88 = arith.constant 3 : index
    %c0_89 = arith.constant 0 : index
    %c0_90 = arith.constant 0 : index
    %151 = vector.load %arg10[%c3_88, %c0_89, %c0_90] : memref<4x8x1xf32, #tpu.memory_space<vmem>>, vector<1x8x1xf32>
    %152 = vector.shape_cast %151 : vector<1x8x1xf32> to vector<8x1xf32>
    %153 = vector.shape_cast %150 : vector<8x1xf32> to vector<1x8x1xf32>
    tpu.vector_store %arg10[%c3_88, %c0_89, %c0_90], %153 {strides = array<i32>} : memref<4x8x1xf32, #tpu.memory_space<vmem>>, vector<1x8x1xf32>,
    %c3_91 = arith.constant 3 : index
    %c0_92 = arith.constant 0 : index
    %c0_93 = arith.constant 0 : index
    %154 = vector.load %arg11[%c3_91, %c0_92, %c0_93] : memref<4x8x32xf32, #tpu.memory_space<vmem>>, vector<1x8x32xf32>
    %155 = vector.shape_cast %154 : vector<1x8x32xf32> to vector<8x32xf32>
    %156 = vector.broadcast %141 : vector<8x1xf32> to vector<8x32xf32>
    %157 = arith.mulf %156, %155 : vector<8x32xf32>
    %158 = arith.truncf %144 : vector<8x8xf32> to vector<8x8xbf16>
    %cst_94 = arith.constant dense<0.000000e+00> : vector<8x32xf32>
    %159 = tpu.matmul %158, %131, %cst_94 {dimension_numbers = #tpu.dot_dimension_numbers<[1], [0], [0], [1], [0, 0, 1, 1], [], []>} : vector<8x8xbf16>, vector<8x32xbf16>, vector<8x32xf32> -> vector<8x32xf32>
    %160 = arith.addf %157, %159 : vector<8x32xf32>
    %c3_95 = arith.constant 3 : index
    %c0_96 = arith.constant 0 : index
    %c0_97 = arith.constant 0 : index
    %161 = vector.load %arg11[%c3_95, %c0_96, %c0_97] : memref<4x8x32xf32, #tpu.memory_space<vmem>>, vector<1x8x32xf32>
    %162 = vector.shape_cast %161 : vector<1x8x32xf32> to vector<8x32xf32>
    %163 = vector.shape_cast %160 : vector<8x32xf32> to vector<1x8x32xf32>
    tpu.vector_store %arg11[%c3_95, %c0_96, %c0_97], %163 {strides = array<i32>} : memref<4x8x32xf32, #tpu.memory_space<vmem>>, vector<1x8x32xf32>,
    %c3_98 = arith.constant 3 : index
    %c0_99 = arith.constant 0 : index
    %c0_100 = arith.constant 0 : index
    %164 = vector.load %arg9[%c3_98, %c0_99, %c0_100] : memref<4x8x1xf32, #tpu.memory_space<vmem>>, vector<1x8x1xf32>
    %165 = vector.shape_cast %164 : vector<1x8x1xf32> to vector<8x1xf32>
    %166 = vector.shape_cast %139 : vector<8x1xf32> to vector<1x8x1xf32>
    tpu.vector_store %arg9[%c3_98, %c0_99, %c0_100], %166 {strides = array<i32>} : memref<4x8x1xf32, #tpu.memory_space<vmem>>, vector<1x8x1xf32>,
    %c0_i32_101 = arith.constant 0 : i32
    %167 = arith.cmpi eq, %arg3, %c0_i32_101 : i32
    %168 = arith.extui %167 : i1 to i32
    %c0_i32_102 = arith.constant 0 : i32
    %169 = arith.cmpi ne, %168, %c0_i32_102 : i32
    scf.if %169 {
      %c0_103 = arith.constant 0 : index
      %c0_104 = arith.constant 0 : index
      %c0_105 = arith.constant 0 : index
      %170 = vector.load %arg11[%c0_103, %c0_104, %c0_105] : memref<4x8x32xf32, #tpu.memory_space<vmem>>, vector<1x8x32xf32>
      %171 = vector.shape_cast %170 : vector<1x8x32xf32> to vector<8x32xf32>
      %c0_106 = arith.constant 0 : index
      %c0_107 = arith.constant 0 : index
      %c0_108 = arith.constant 0 : index
      %172 = vector.load %arg10[%c0_106, %c0_107, %c0_108] : memref<4x8x1xf32, #tpu.memory_space<vmem>>, vector<1x8x1xf32>
      %173 = vector.shape_cast %172 : vector<1x8x1xf32> to vector<8x1xf32>
      %174 = tpu.reciprocal %173 {approx = true} : vector<8x1xf32> -> vector<8x1xf32>
      %175 = vector.broadcast %174 : vector<8x1xf32> to vector<8x32xf32>
      %176 = arith.mulf %171, %175 : vector<8x32xf32>
      %c1_109 = arith.constant 1 : index
      %c0_110 = arith.constant 0 : index
      %c0_111 = arith.constant 0 : index
      %177 = vector.load %arg11[%c1_109, %c0_110, %c0_111] : memref<4x8x32xf32, #tpu.memory_space<vmem>>, vector<1x8x32xf32>
      %178 = vector.shape_cast %177 : vector<1x8x32xf32> to vector<8x32xf32>
      %c1_112 = arith.constant 1 : index
      %c0_113 = arith.constant 0 : index
      %c0_114 = arith.constant 0 : index
      %179 = vector.load %arg10[%c1_112, %c0_113, %c0_114] : memref<4x8x1xf32, #tpu.memory_space<vmem>>, vector<1x8x1xf32>
      %180 = vector.shape_cast %179 : vector<1x8x1xf32> to vector<8x1xf32>
      %181 = tpu.reciprocal %180 {approx = true} : vector<8x1xf32> -> vector<8x1xf32>
      %182 = vector.broadcast %181 : vector<8x1xf32> to vector<8x32xf32>
      %183 = arith.mulf %178, %182 : vector<8x32xf32>
      %c2_115 = arith.constant 2 : index
      %c0_116 = arith.constant 0 : index
      %c0_117 = arith.constant 0 : index
      %184 = vector.load %arg11[%c2_115, %c0_116, %c0_117] : memref<4x8x32xf32, #tpu.memory_space<vmem>>, vector<1x8x32xf32>
      %185 = vector.shape_cast %184 : vector<1x8x32xf32> to vector<8x32xf32>
      %c2_118 = arith.constant 2 : index
      %c0_119 = arith.constant 0 : index
      %c0_120 = arith.constant 0 : index
      %186 = vector.load %arg10[%c2_118, %c0_119, %c0_120] : memref<4x8x1xf32, #tpu.memory_space<vmem>>, vector<1x8x1xf32>
      %187 = vector.shape_cast %186 : vector<1x8x1xf32> to vector<8x1xf32>
      %188 = tpu.reciprocal %187 {approx = true} : vector<8x1xf32> -> vector<8x1xf32>
      %189 = vector.broadcast %188 : vector<8x1xf32> to vector<8x32xf32>
      %190 = arith.mulf %185, %189 : vector<8x32xf32>
      %c3_121 = arith.constant 3 : index
      %c0_122 = arith.constant 0 : index
      %c0_123 = arith.constant 0 : index
      %191 = vector.load %arg11[%c3_121, %c0_122, %c0_123] : memref<4x8x32xf32, #tpu.memory_space<vmem>>, vector<1x8x32xf32>
      %192 = vector.shape_cast %191 : vector<1x8x32xf32> to vector<8x32xf32>
      %c3_124 = arith.constant 3 : index
      %c0_125 = arith.constant 0 : index
      %c0_126 = arith.constant 0 : index
      %193 = vector.load %arg10[%c3_124, %c0_125, %c0_126] : memref<4x8x1xf32, #tpu.memory_space<vmem>>, vector<1x8x1xf32>
      %194 = vector.shape_cast %193 : vector<1x8x1xf32> to vector<8x1xf32>
      %195 = tpu.reciprocal %194 {approx = true} : vector<8x1xf32> -> vector<8x1xf32>
      %196 = vector.broadcast %195 : vector<8x1xf32> to vector<8x32xf32>
      %197 = arith.mulf %192, %196 : vector<8x32xf32>
      %198 = tpu.concatenate %176, %183, %190, %197 in 1 : vector<8x32xf32>, vector<8x32xf32>, vector<8x32xf32>, vector<8x32xf32> -> vector<8x128xf32>
      %199 = arith.truncf %198 : vector<8x128xf32> to vector<8x128xbf16>
      %c0_127 = arith.constant 0 : index
      %c0_128 = arith.constant 0 : index
      %c0_129 = arith.constant 0 : index
      %200 = vector.load %arg8[%c0_127, %c0_128, %c0_129] : memref<1x8x128xbf16, #tpu.memory_space<vmem>>, vector<1x8x128xbf16>
      %201 = vector.shape_cast %200 : vector<1x8x128xbf16> to vector<8x128xbf16>
      %202 = vector.shape_cast %199 : vector<8x128xbf16> to vector<1x8x128xbf16>
      tpu.vector_store %arg8[%c0_127, %c0_128, %c0_129], %202 {strides = array<i32>} : memref<1x8x128xbf16, #tpu.memory_space<vmem>>, vector<1x8x128xbf16>,
    } else {
    }
    return
  }
  func.func @transform_0(%arg0: i32, %arg1: i32, %arg2: i32, %arg3: i32) -> (i32, i32, i32) {
    %c0_i32 = arith.constant 0 : i32
    return %arg0, %arg2, %arg1 : i32, i32, i32
  }
  func.func @transform_1(%arg0: i32, %arg1: i32, %arg2: i32, %arg3: i32) -> (i32, i32, i32) {
    %c0_i32 = arith.constant 0 : i32
    return %arg0, %arg3, %arg1 : i32, i32, i32
  }
  func.func @transform_2(%arg0: i32, %arg1: i32, %arg2: i32, %arg3: i32) -> (i32, i32, i32) {
    %c0_i32 = arith.constant 0 : i32
    return %arg0, %arg3, %arg1 : i32, i32, i32
  }
  func.func @transform_3(%arg0: i32, %arg1: i32, %arg2: i32, %arg3: i32) -> (i32, i32, i32) {
    %c0_i32 = arith.constant 0 : i32
    %c0_i32_0 = arith.constant 0 : i32
    return %arg0, %c0_i32, %arg3 : i32, i32, i32
  }
  func.func @transform_4(%arg0: i32, %arg1: i32, %arg2: i32, %arg3: i32) -> (i32, i32, i32) {
    %c0_i32 = arith.constant 0 : i32
    return %arg0, %arg2, %arg1 : i32, i32, i32
  }
}

module attributes {stable_mosaic.version = 11 : i64} {
  func.func @_split_proj_kernel(%arg0: i32, %arg1: i32, %arg2: memref<16x128xf32, #tpu.memory_space<vmem>>, %arg3: memref<128x256xbf16, #tpu.memory_space<vmem>>, %arg4: memref<1x256xf32, #tpu.memory_space<vmem>>, %arg5: memref<16x128xbf16, #tpu.memory_space<vmem>>, %arg6: memref<16x128xbf16, #tpu.memory_space<vmem>>, %arg7: memref<16x256xf32, #tpu.memory_space<vmem>>) attributes {dimension_semantics = [#tpu.dimension_semantics<parallel>, #tpu.dimension_semantics<arbitrary>], iteration_bounds = array<i64: 1, 1>, scalar_prefetch = 0 : i64, scratch_operands = 1 : i64, tpu.core_type = #tpu.core_type<tc>, window_params = [{transform_indices = @transform_0, window_bounds = array<i64: 16, 128>}, {transform_indices = @transform_1, window_bounds = array<i64: 128, 256>}, {pipeline_mode = #tpu.pipeline_mode<synchronous>, transform_indices = @transform_2, window_bounds = array<i64: 1, 256>}, {transform_indices = @transform_3, window_bounds = array<i64: 16, 128>}, {transform_indices = @transform_4, window_bounds = array<i64: 16, 128>}]} {
    %c0_i32 = arith.constant 0 : i32
    %0 = arith.cmpi eq, %arg1, %c0_i32 : i32
    %1 = arith.extui %0 : i1 to i32
    %c0_i32_0 = arith.constant 0 : i32
    %2 = arith.cmpi ne, %1, %c0_i32_0 : i32
    scf.if %2 {
      %cst_10 = arith.constant 0.000000e+00 : f32
      %13 = vector.broadcast %cst_10 : f32 to vector<16x256xf32>
      %c0_11 = arith.constant 0 : index
      %c0_12 = arith.constant 0 : index
      %14 = vector.load %arg7[%c0_11, %c0_12] : memref<16x256xf32, #tpu.memory_space<vmem>>, vector<16x256xf32>
      tpu.vector_store %arg7[%c0_11, %c0_12], %13 {strides = array<i32>} : memref<16x256xf32, #tpu.memory_space<vmem>>, vector<16x256xf32>,
    } else {
    }
    %c0 = arith.constant 0 : index
    %c0_1 = arith.constant 0 : index
    %3 = vector.load %arg7[%c0, %c0_1] : memref<16x256xf32, #tpu.memory_space<vmem>>, vector<16x256xf32>
    %c0_2 = arith.constant 0 : index
    %c0_3 = arith.constant 0 : index
    %4 = vector.load %arg2[%c0_2, %c0_3] : memref<16x128xf32, #tpu.memory_space<vmem>>, vector<16x128xf32>
    %5 = arith.truncf %4 : vector<16x128xf32> to vector<16x128xbf16>
    %c0_4 = arith.constant 0 : index
    %c0_5 = arith.constant 0 : index
    %6 = vector.load %arg3[%c0_4, %c0_5] : memref<128x256xbf16, #tpu.memory_space<vmem>>, vector<128x256xbf16>
    %cst = arith.constant dense<0.000000e+00> : vector<16x256xf32>
    %7 = tpu.matmul %5, %6, %cst {dimension_numbers = #tpu.dot_dimension_numbers<[1], [0], [0], [1], [0, 0, 1, 1], [], []>} : vector<16x128xbf16>, vector<128x256xbf16>, vector<16x256xf32> -> vector<16x256xf32>
    %8 = arith.addf %3, %7 : vector<16x256xf32>
    %c0_6 = arith.constant 0 : index
    %c0_7 = arith.constant 0 : index
    %9 = vector.load %arg7[%c0_6, %c0_7] : memref<16x256xf32, #tpu.memory_space<vmem>>, vector<16x256xf32>
    tpu.vector_store %arg7[%c0_6, %c0_7], %8 {strides = array<i32>} : memref<16x256xf32, #tpu.memory_space<vmem>>, vector<16x256xf32>,
    %c0_i32_8 = arith.constant 0 : i32
    %10 = arith.cmpi eq, %arg1, %c0_i32_8 : i32
    %11 = arith.extui %10 : i1 to i32
    %c0_i32_9 = arith.constant 0 : i32
    %12 = arith.cmpi ne, %11, %c0_i32_9 : i32
    scf.if %12 {
      %c0_10 = arith.constant 0 : index
      %c0_11 = arith.constant 0 : index
      %13 = vector.load %arg7[%c0_10, %c0_11] : memref<16x256xf32, #tpu.memory_space<vmem>>, vector<16x256xf32>
      %c0_12 = arith.constant 0 : index
      %c0_13 = arith.constant 0 : index
      %14 = vector.load %arg4[%c0_12, %c0_13] : memref<1x256xf32, #tpu.memory_space<vmem>>, vector<1x256xf32>
      %15 = vector.broadcast %14 : vector<1x256xf32> to vector<16x256xf32>
      %16 = arith.addf %13, %15 : vector<16x256xf32>
      %17 = vector.extract_strided_slice %16 {offsets = [0, 0], sizes = [16, 128], strides = [1, 1]} : vector<16x256xf32> to vector<16x128xf32>
      %18 = arith.truncf %17 : vector<16x128xf32> to vector<16x128xbf16>
      %c0_14 = arith.constant 0 : index
      %c0_15 = arith.constant 0 : index
      %19 = vector.load %arg5[%c0_14, %c0_15] : memref<16x128xbf16, #tpu.memory_space<vmem>>, vector<16x128xbf16>
      tpu.vector_store %arg5[%c0_14, %c0_15], %18 {strides = array<i32>} : memref<16x128xbf16, #tpu.memory_space<vmem>>, vector<16x128xbf16>,
      %20 = vector.extract_strided_slice %16 {offsets = [0, 128], sizes = [16, 128], strides = [1, 1]} : vector<16x256xf32> to vector<16x128xf32>
      %21 = arith.truncf %20 : vector<16x128xf32> to vector<16x128xbf16>
      %c0_16 = arith.constant 0 : index
      %c0_17 = arith.constant 0 : index
      %22 = vector.load %arg6[%c0_16, %c0_17] : memref<16x128xbf16, #tpu.memory_space<vmem>>, vector<16x128xbf16>
      tpu.vector_store %arg6[%c0_16, %c0_17], %21 {strides = array<i32>} : memref<16x128xbf16, #tpu.memory_space<vmem>>, vector<16x128xbf16>,
    } else {
    }
    return
  }
  func.func @transform_0(%arg0: i32, %arg1: i32) -> (i32, i32) {
    %c0_i32 = arith.constant 0 : i32
    return %arg0, %arg1 : i32, i32
  }
  func.func @transform_1(%arg0: i32, %arg1: i32) -> (i32, i32) {
    %c0_i32 = arith.constant 0 : i32
    %c0_i32_0 = arith.constant 0 : i32
    return %arg1, %c0_i32 : i32, i32
  }
  func.func @transform_2(%arg0: i32, %arg1: i32) -> (i32, i32) {
    %c0_i32 = arith.constant 0 : i32
    %c0_i32_0 = arith.constant 0 : i32
    %c0_i32_1 = arith.constant 0 : i32
    return %c0_i32, %c0_i32_0 : i32, i32
  }
  func.func @transform_3(%arg0: i32, %arg1: i32) -> (i32, i32) {
    %c0_i32 = arith.constant 0 : i32
    %c0_i32_0 = arith.constant 0 : i32
    return %arg0, %c0_i32 : i32, i32
  }
  func.func @transform_4(%arg0: i32, %arg1: i32) -> (i32, i32) {
    %c0_i32 = arith.constant 0 : i32
    %c0_i32_0 = arith.constant 0 : i32
    return %arg0, %c0_i32 : i32, i32
  }
}

module attributes {stable_mosaic.version = 11 : i64} {
  func.func @_flash_attn_kernel(%arg0: i32, %arg1: i32, %arg2: i32, %arg3: i32, %arg4: memref<1x8x128xbf16, #tpu.memory_space<vmem>>, %arg5: memref<1x8x128xbf16, #tpu.memory_space<vmem>>, %arg6: memref<1x8x128xbf16, #tpu.memory_space<vmem>>, %arg7: memref<1x1x8xi32, #tpu.memory_space<vmem>>, %arg8: memref<1x8x128xbf16, #tpu.memory_space<vmem>>, %arg9: memref<4x8x1xf32, #tpu.memory_space<vmem>>, %arg10: memref<4x8x1xf32, #tpu.memory_space<vmem>>, %arg11: memref<4x8x32xf32, #tpu.memory_space<vmem>>) attributes {dimension_semantics = [#tpu.dimension_semantics<parallel>, #tpu.dimension_semantics<parallel>, #tpu.dimension_semantics<parallel>, #tpu.dimension_semantics<arbitrary>], iteration_bounds = array<i64: 2, 1, 1, 1>, scalar_prefetch = 0 : i64, scratch_operands = 3 : i64, tpu.core_type = #tpu.core_type<tc>, window_params = [{transform_indices = @transform_0, window_bounds = array<i64: 1, 8, 128>}, {transform_indices = @transform_1, window_bounds = array<i64: 1, 8, 128>}, {transform_indices = @transform_2, window_bounds = array<i64: 1, 8, 128>}, {transform_indices = @transform_3, window_bounds = array<i64: 1, 1, 8>}, {transform_indices = @transform_4, window_bounds = array<i64: 1, 8, 128>}]} {
    %c0_i32 = arith.constant 0 : i32
    %0 = arith.cmpi eq, %arg3, %c0_i32 : i32
    %1 = arith.extui %0 : i1 to i32
    %c0_i32_0 = arith.constant 0 : i32
    %2 = arith.cmpi ne, %1, %c0_i32_0 : i32
    scf.if %2 {
      %cst = arith.constant 0xFF800000 : f32
      %12 = vector.broadcast %cst : f32 to vector<4x8x1xf32>
      %c0 = arith.constant 0 : index
      %c0_5 = arith.constant 0 : index
      %c0_6 = arith.constant 0 : index
      %13 = vector.load %arg9[%c0, %c0_5, %c0_6] : memref<4x8x1xf32, #tpu.memory_space<vmem>>, vector<4x8x1xf32>
      tpu.vector_store %arg9[%c0, %c0_5, %c0_6], %12 {strides = array<i32>} : memref<4x8x1xf32, #tpu.memory_space<vmem>>, vector<4x8x1xf32>,
      %cst_7 = arith.constant 0.000000e+00 : f32
      %14 = vector.broadcast %cst_7 : f32 to vector<4x8x1xf32>
      %c0_8 = arith.constant 0 : index
      %c0_9 = arith.constant 0 : index
      %c0_10 = arith.constant 0 : index
      %15 = vector.load %arg10[%c0_8, %c0_9, %c0_10] : memref<4x8x1xf32, #tpu.memory_space<vmem>>, vector<4x8x1xf32>
      tpu.vector_store %arg10[%c0_8, %c0_9, %c0_10], %14 {strides = array<i32>} : memref<4x8x1xf32, #tpu.memory_space<vmem>>, vector<4x8x1xf32>,
      %cst_11 = arith.constant 0.000000e+00 : f32
      %16 = vector.broadcast %cst_11 : f32 to vector<4x8x32xf32>
      %c0_12 = arith.constant 0 : index
      %c0_13 = arith.constant 0 : index
      %c0_14 = arith.constant 0 : index
      %17 = vector.load %arg11[%c0_12, %c0_13, %c0_14] : memref<4x8x32xf32, #tpu.memory_space<vmem>>, vector<4x8x32xf32>
      tpu.vector_store %arg11[%c0_12, %c0_13, %c0_14], %16 {strides = array<i32>} : memref<4x8x32xf32, #tpu.memory_space<vmem>>, vector<4x8x32xf32>,
    } else {
    }
    %c8_i32 = arith.constant 8 : i32
    %3 = arith.muli %arg3, %c8_i32 : i32
    %c8_i32_1 = arith.constant 8 : i32
    %4 = arith.muli %arg2, %c8_i32_1 : i32
    %c7_i32 = arith.constant 7 : i32
    %5 = arith.addi %4, %c7_i32 : i32
    %6 = arith.cmpi sle, %3, %5 : i32
    %7 = arith.extui %6 : i1 to i32
    %c0_i32_2 = arith.constant 0 : i32
    %8 = arith.cmpi ne, %7, %c0_i32_2 : i32
    scf.if %8 {
      %c0 = arith.constant 0 : index
      %c0_5 = arith.constant 0 : index
      %c0_6 = arith.constant 0 : index
      %12 = vector.load %arg4[%c0, %c0_5, %c0_6] : memref<1x8x128xbf16, #tpu.memory_space<vmem>>, vector<1x8x128xbf16>
      %13 = vector.shape_cast %12 : vector<1x8x128xbf16> to vector<8x128xbf16>
      %c0_7 = arith.constant 0 : index
      %c0_8 = arith.constant 0 : index
      %c0_9 = arith.constant 0 : index
      %14 = vector.load %arg5[%c0_7, %c0_8, %c0_9] : memref<1x8x128xbf16, #tpu.memory_space<vmem>>, vector<1x8x128xbf16>
      %15 = vector.shape_cast %14 : vector<1x8x128xbf16> to vector<8x128xbf16>
      %c0_10 = arith.constant 0 : index
      %c0_11 = arith.constant 0 : index
      %c0_12 = arith.constant 0 : index
      %16 = vector.load %arg6[%c0_10, %c0_11, %c0_12] : memref<1x8x128xbf16, #tpu.memory_space<vmem>>, vector<1x8x128xbf16>
      %17 = vector.shape_cast %16 : vector<1x8x128xbf16> to vector<8x128xbf16>
      %c0_13 = arith.constant 0 : index
      %c0_14 = arith.constant 0 : index
      %c0_15 = arith.constant 0 : index
      %18 = vector.load %arg7[%c0_13, %c0_14, %c0_15] : memref<1x1x8xi32, #tpu.memory_space<vmem>>, vector<1x1x8xi32>
      %19 = vector.shape_cast %18 : vector<1x1x8xi32> to vector<1x8xi32>
      %c0_i32_16 = arith.constant 0 : i32
      %20 = vector.broadcast %c0_i32_16 : i32 to vector<1x8xi32>
      %21 = arith.cmpi ne, %19, %20 : vector<1x8xi32>
      %22 = tpu.iota {dimensions = array<i32: 0>} : vector<8x8xi32>
      %c8_i32_17 = arith.constant 8 : i32
      %23 = arith.muli %arg2, %c8_i32_17 : i32
      %24 = vector.broadcast %23 : i32 to vector<8x8xi32>
      %25 = arith.addi %22, %24 : vector<8x8xi32>
      %26 = tpu.iota {dimensions = array<i32: 1>} : vector<8x8xi32>
      %c8_i32_18 = arith.constant 8 : i32
      %27 = arith.muli %arg3, %c8_i32_18 : i32
      %28 = vector.broadcast %27 : i32 to vector<8x8xi32>
      %29 = arith.addi %26, %28 : vector<8x8xi32>
      %30 = arith.cmpi sle, %29, %25 : vector<8x8xi32>
      %31 = vector.broadcast %21 : vector<1x8xi1> to vector<8x8xi1>
      %32 = arith.andi %31, %30 : vector<8x8xi1>
      %33 = vector.extract_strided_slice %13 {offsets = [0, 0], sizes = [8, 32], strides = [1, 1]} : vector<8x128xbf16> to vector<8x32xbf16>
      %34 = vector.extract_strided_slice %15 {offsets = [0, 0], sizes = [8, 32], strides = [1, 1]} : vector<8x128xbf16> to vector<8x32xbf16>
      %35 = vector.extract_strided_slice %17 {offsets = [0, 0], sizes = [8, 32], strides = [1, 1]} : vector<8x128xbf16> to vector<8x32xbf16>
      %cst = arith.constant dense<0.000000e+00> : vector<8x8xf32>
      %36 = tpu.matmul %33, %34, %cst {dimension_numbers = #tpu.dot_dimension_numbers<[1], [1], [0], [0], [0, 0, 1, 0], [], []>} : vector<8x32xbf16>, vector<8x32xbf16>, vector<8x8xf32> -> vector<8x8xf32>
      %cst_19 = arith.constant -1.000000e+09 : f32
      %37 = vector.broadcast %cst_19 : f32 to vector<8x8xf32>
      %38 = arith.select %32, %36, %37 : vector<8x8xi1>, vector<8x8xf32>
      %c0_20 = arith.constant 0 : index
      %c0_21 = arith.constant 0 : index
      %c0_22 = arith.constant 0 : index
      %39 = vector.load %arg9[%c0_20, %c0_21, %c0_22] : memref<4x8x1xf32, #tpu.memory_space<vmem>>, vector<1x8x1xf32>
      %40 = vector.shape_cast %39 : vector<1x8x1xf32> to vector<8x1xf32>
      %cst_23 = arith.constant dense<0xFF800000> : vector<8xf32>
      %41 = vector.multi_reduction <maximumf>, %38, %cst_23 [1] : vector<8x8xf32> to vector<8xf32>
      %42 = vector.shape_cast %41 : vector<8xf32> to vector<8x1xf32>
      %43 = arith.maximumf %40, %42 : vector<8x1xf32>
      %44 = arith.subf %40, %43 : vector<8x1xf32>
      %45 = math.exp %44 : vector<8x1xf32>
      %46 = vector.broadcast %43 : vector<8x1xf32> to vector<8x8xf32>
      %47 = arith.subf %38, %46 : vector<8x8xf32>
      %48 = math.exp %47 : vector<8x8xf32>
      %c0_24 = arith.constant 0 : index
      %c0_25 = arith.constant 0 : index
      %c0_26 = arith.constant 0 : index
      %49 = vector.load %arg10[%c0_24, %c0_25, %c0_26] : memref<4x8x1xf32, #tpu.memory_space<vmem>>, vector<1x8x1xf32>
      %50 = vector.shape_cast %49 : vector<1x8x1xf32> to vector<8x1xf32>
      %51 = arith.mulf %45, %50 : vector<8x1xf32>
      %cst_27 = arith.constant dense<0.000000e+00> : vector<8xf32>
      %52 = vector.multi_reduction <add>, %48, %cst_27 [1] : vector<8x8xf32> to vector<8xf32>
      %53 = vector.shape_cast %52 : vector<8xf32> to vector<8x1xf32>
      %54 = arith.addf %51, %53 : vector<8x1xf32>
      %c0_28 = arith.constant 0 : index
      %c0_29 = arith.constant 0 : index
      %c0_30 = arith.constant 0 : index
      %55 = vector.load %arg10[%c0_28, %c0_29, %c0_30] : memref<4x8x1xf32, #tpu.memory_space<vmem>>, vector<1x8x1xf32>
      %56 = vector.shape_cast %55 : vector<1x8x1xf32> to vector<8x1xf32>
      %57 = vector.shape_cast %54 : vector<8x1xf32> to vector<1x8x1xf32>
      tpu.vector_store %arg10[%c0_28, %c0_29, %c0_30], %57 {strides = array<i32>} : memref<4x8x1xf32, #tpu.memory_space<vmem>>, vector<1x8x1xf32>,
      %c0_31 = arith.constant 0 : index
      %c0_32 = arith.constant 0 : index
      %c0_33 = arith.constant 0 : index
      %58 = vector.load %arg11[%c0_31, %c0_32, %c0_33] : memref<4x8x32xf32, #tpu.memory_space<vmem>>, vector<1x8x32xf32>
      %59 = vector.shape_cast %58 : vector<1x8x32xf32> to vector<8x32xf32>
      %60 = vector.broadcast %45 : vector<8x1xf32> to vector<8x32xf32>
      %61 = arith.mulf %60, %59 : vector<8x32xf32>
      %62 = arith.truncf %48 : vector<8x8xf32> to vector<8x8xbf16>
      %cst_34 = arith.constant dense<0.000000e+00> : vector<8x32xf32>
      %63 = tpu.matmul %62, %35, %cst_34 {dimension_numbers = #tpu.dot_dimension_numbers<[1], [0], [0], [1], [0, 0, 1, 1], [], []>} : vector<8x8xbf16>, vector<8x32xbf16>, vector<8x32xf32> -> vector<8x32xf32>
      %64 = arith.addf %61, %63 : vector<8x32xf32>
      %c0_35 = arith.constant 0 : index
      %c0_36 = arith.constant 0 : index
      %c0_37 = arith.constant 0 : index
      %65 = vector.load %arg11[%c0_35, %c0_36, %c0_37] : memref<4x8x32xf32, #tpu.memory_space<vmem>>, vector<1x8x32xf32>
      %66 = vector.shape_cast %65 : vector<1x8x32xf32> to vector<8x32xf32>
      %67 = vector.shape_cast %64 : vector<8x32xf32> to vector<1x8x32xf32>
      tpu.vector_store %arg11[%c0_35, %c0_36, %c0_37], %67 {strides = array<i32>} : memref<4x8x32xf32, #tpu.memory_space<vmem>>, vector<1x8x32xf32>,
      %c0_38 = arith.constant 0 : index
      %c0_39 = arith.constant 0 : index
      %c0_40 = arith.constant 0 : index
      %68 = vector.load %arg9[%c0_38, %c0_39, %c0_40] : memref<4x8x1xf32, #tpu.memory_space<vmem>>, vector<1x8x1xf32>
      %69 = vector.shape_cast %68 : vector<1x8x1xf32> to vector<8x1xf32>
      %70 = vector.shape_cast %43 : vector<8x1xf32> to vector<1x8x1xf32>
      tpu.vector_store %arg9[%c0_38, %c0_39, %c0_40], %70 {strides = array<i32>} : memref<4x8x1xf32, #tpu.memory_space<vmem>>, vector<1x8x1xf32>,
      %71 = vector.extract_strided_slice %13 {offsets = [0, 32], sizes = [8, 32], strides = [1, 1]} : vector<8x128xbf16> to vector<8x32xbf16>
      %72 = vector.extract_strided_slice %15 {offsets = [0, 32], sizes = [8, 32], strides = [1, 1]} : vector<8x128xbf16> to vector<8x32xbf16>
      %73 = vector.extract_strided_slice %17 {offsets = [0, 32], sizes = [8, 32], strides = [1, 1]} : vector<8x128xbf16> to vector<8x32xbf16>
      %cst_41 = arith.constant dense<0.000000e+00> : vector<8x8xf32>
      %74 = tpu.matmul %71, %72, %cst_41 {dimension_numbers = #tpu.dot_dimension_numbers<[1], [1], [0], [0], [0, 0, 1, 0], [], []>} : vector<8x32xbf16>, vector<8x32xbf16>, vector<8x8xf32> -> vector<8x8xf32>
      %cst_42 = arith.constant -1.000000e+09 : f32
      %75 = vector.broadcast %cst_42 : f32 to vector<8x8xf32>
      %76 = arith.select %32, %74, %75 : vector<8x8xi1>, vector<8x8xf32>
      %c1 = arith.constant 1 : index
      %c0_43 = arith.constant 0 : index
      %c0_44 = arith.constant 0 : index
      %77 = vector.load %arg9[%c1, %c0_43, %c0_44] : memref<4x8x1xf32, #tpu.memory_space<vmem>>, vector<1x8x1xf32>
      %78 = vector.shape_cast %77 : vector<1x8x1xf32> to vector<8x1xf32>
      %cst_45 = arith.constant dense<0xFF800000> : vector<8xf32>
      %79 = vector.multi_reduction <maximumf>, %76, %cst_45 [1] : vector<8x8xf32> to vector<8xf32>
      %80 = vector.shape_cast %79 : vector<8xf32> to vector<8x1xf32>
      %81 = arith.maximumf %78, %80 : vector<8x1xf32>
      %82 = arith.subf %78, %81 : vector<8x1xf32>
      %83 = math.exp %82 : vector<8x1xf32>
      %84 = vector.broadcast %81 : vector<8x1xf32> to vector<8x8xf32>
      %85 = arith.subf %76, %84 : vector<8x8xf32>
      %86 = math.exp %85 : vector<8x8xf32>
      %c1_46 = arith.constant 1 : index
      %c0_47 = arith.constant 0 : index
      %c0_48 = arith.constant 0 : index
      %87 = vector.load %arg10[%c1_46, %c0_47, %c0_48] : memref<4x8x1xf32, #tpu.memory_space<vmem>>, vector<1x8x1xf32>
      %88 = vector.shape_cast %87 : vector<1x8x1xf32> to vector<8x1xf32>
      %89 = arith.mulf %83, %88 : vector<8x1xf32>
      %cst_49 = arith.constant dense<0.000000e+00> : vector<8xf32>
      %90 = vector.multi_reduction <add>, %86, %cst_49 [1] : vector<8x8xf32> to vector<8xf32>
      %91 = vector.shape_cast %90 : vector<8xf32> to vector<8x1xf32>
      %92 = arith.addf %89, %91 : vector<8x1xf32>
      %c1_50 = arith.constant 1 : index
      %c0_51 = arith.constant 0 : index
      %c0_52 = arith.constant 0 : index
      %93 = vector.load %arg10[%c1_50, %c0_51, %c0_52] : memref<4x8x1xf32, #tpu.memory_space<vmem>>, vector<1x8x1xf32>
      %94 = vector.shape_cast %93 : vector<1x8x1xf32> to vector<8x1xf32>
      %95 = vector.shape_cast %92 : vector<8x1xf32> to vector<1x8x1xf32>
      tpu.vector_store %arg10[%c1_50, %c0_51, %c0_52], %95 {strides = array<i32>} : memref<4x8x1xf32, #tpu.memory_space<vmem>>, vector<1x8x1xf32>,
      %c1_53 = arith.constant 1 : index
      %c0_54 = arith.constant 0 : index
      %c0_55 = arith.constant 0 : index
      %96 = vector.load %arg11[%c1_53, %c0_54, %c0_55] : memref<4x8x32xf32, #tpu.memory_space<vmem>>, vector<1x8x32xf32>
      %97 = vector.shape_cast %96 : vector<1x8x32xf32> to vector<8x32xf32>
      %98 = vector.broadcast %83 : vector<8x1xf32> to vector<8x32xf32>
      %99 = arith.mulf %98, %97 : vector<8x32xf32>
      %100 = arith.truncf %86 : vector<8x8xf32> to vector<8x8xbf16>
      %cst_56 = arith.constant dense<0.000000e+00> : vector<8x32xf32>
      %101 = tpu.matmul %100, %73, %cst_56 {dimension_numbers = #tpu.dot_dimension_numbers<[1], [0], [0], [1], [0, 0, 1, 1], [], []>} : vector<8x8xbf16>, vector<8x32xbf16>, vector<8x32xf32> -> vector<8x32xf32>
      %102 = arith.addf %99, %101 : vector<8x32xf32>
      %c1_57 = arith.constant 1 : index
      %c0_58 = arith.constant 0 : index
      %c0_59 = arith.constant 0 : index
      %103 = vector.load %arg11[%c1_57, %c0_58, %c0_59] : memref<4x8x32xf32, #tpu.memory_space<vmem>>, vector<1x8x32xf32>
      %104 = vector.shape_cast %103 : vector<1x8x32xf32> to vector<8x32xf32>
      %105 = vector.shape_cast %102 : vector<8x32xf32> to vector<1x8x32xf32>
      tpu.vector_store %arg11[%c1_57, %c0_58, %c0_59], %105 {strides = array<i32>} : memref<4x8x32xf32, #tpu.memory_space<vmem>>, vector<1x8x32xf32>,
      %c1_60 = arith.constant 1 : index
      %c0_61 = arith.constant 0 : index
      %c0_62 = arith.constant 0 : index
      %106 = vector.load %arg9[%c1_60, %c0_61, %c0_62] : memref<4x8x1xf32, #tpu.memory_space<vmem>>, vector<1x8x1xf32>
      %107 = vector.shape_cast %106 : vector<1x8x1xf32> to vector<8x1xf32>
      %108 = vector.shape_cast %81 : vector<8x1xf32> to vector<1x8x1xf32>
      tpu.vector_store %arg9[%c1_60, %c0_61, %c0_62], %108 {strides = array<i32>} : memref<4x8x1xf32, #tpu.memory_space<vmem>>, vector<1x8x1xf32>,
      %109 = vector.extract_strided_slice %13 {offsets = [0, 64], sizes = [8, 32], strides = [1, 1]} : vector<8x128xbf16> to vector<8x32xbf16>
      %110 = vector.extract_strided_slice %15 {offsets = [0, 64], sizes = [8, 32], strides = [1, 1]} : vector<8x128xbf16> to vector<8x32xbf16>
      %111 = vector.extract_strided_slice %17 {offsets = [0, 64], sizes = [8, 32], strides = [1, 1]} : vector<8x128xbf16> to vector<8x32xbf16>
      %cst_63 = arith.constant dense<0.000000e+00> : vector<8x8xf32>
      %112 = tpu.matmul %109, %110, %cst_63 {dimension_numbers = #tpu.dot_dimension_numbers<[1], [1], [0], [0], [0, 0, 1, 0], [], []>} : vector<8x32xbf16>, vector<8x32xbf16>, vector<8x8xf32> -> vector<8x8xf32>
      %cst_64 = arith.constant -1.000000e+09 : f32
      %113 = vector.broadcast %cst_64 : f32 to vector<8x8xf32>
      %114 = arith.select %32, %112, %113 : vector<8x8xi1>, vector<8x8xf32>
      %c2 = arith.constant 2 : index
      %c0_65 = arith.constant 0 : index
      %c0_66 = arith.constant 0 : index
      %115 = vector.load %arg9[%c2, %c0_65, %c0_66] : memref<4x8x1xf32, #tpu.memory_space<vmem>>, vector<1x8x1xf32>
      %116 = vector.shape_cast %115 : vector<1x8x1xf32> to vector<8x1xf32>
      %cst_67 = arith.constant dense<0xFF800000> : vector<8xf32>
      %117 = vector.multi_reduction <maximumf>, %114, %cst_67 [1] : vector<8x8xf32> to vector<8xf32>
      %118 = vector.shape_cast %117 : vector<8xf32> to vector<8x1xf32>
      %119 = arith.maximumf %116, %118 : vector<8x1xf32>
      %120 = arith.subf %116, %119 : vector<8x1xf32>
      %121 = math.exp %120 : vector<8x1xf32>
      %122 = vector.broadcast %119 : vector<8x1xf32> to vector<8x8xf32>
      %123 = arith.subf %114, %122 : vector<8x8xf32>
      %124 = math.exp %123 : vector<8x8xf32>
      %c2_68 = arith.constant 2 : index
      %c0_69 = arith.constant 0 : index
      %c0_70 = arith.constant 0 : index
      %125 = vector.load %arg10[%c2_68, %c0_69, %c0_70] : memref<4x8x1xf32, #tpu.memory_space<vmem>>, vector<1x8x1xf32>
      %126 = vector.shape_cast %125 : vector<1x8x1xf32> to vector<8x1xf32>
      %127 = arith.mulf %121, %126 : vector<8x1xf32>
      %cst_71 = arith.constant dense<0.000000e+00> : vector<8xf32>
      %128 = vector.multi_reduction <add>, %124, %cst_71 [1] : vector<8x8xf32> to vector<8xf32>
      %129 = vector.shape_cast %128 : vector<8xf32> to vector<8x1xf32>
      %130 = arith.addf %127, %129 : vector<8x1xf32>
      %c2_72 = arith.constant 2 : index
      %c0_73 = arith.constant 0 : index
      %c0_74 = arith.constant 0 : index
      %131 = vector.load %arg10[%c2_72, %c0_73, %c0_74] : memref<4x8x1xf32, #tpu.memory_space<vmem>>, vector<1x8x1xf32>
      %132 = vector.shape_cast %131 : vector<1x8x1xf32> to vector<8x1xf32>
      %133 = vector.shape_cast %130 : vector<8x1xf32> to vector<1x8x1xf32>
      tpu.vector_store %arg10[%c2_72, %c0_73, %c0_74], %133 {strides = array<i32>} : memref<4x8x1xf32, #tpu.memory_space<vmem>>, vector<1x8x1xf32>,
      %c2_75 = arith.constant 2 : index
      %c0_76 = arith.constant 0 : index
      %c0_77 = arith.constant 0 : index
      %134 = vector.load %arg11[%c2_75, %c0_76, %c0_77] : memref<4x8x32xf32, #tpu.memory_space<vmem>>, vector<1x8x32xf32>
      %135 = vector.shape_cast %134 : vector<1x8x32xf32> to vector<8x32xf32>
      %136 = vector.broadcast %121 : vector<8x1xf32> to vector<8x32xf32>
      %137 = arith.mulf %136, %135 : vector<8x32xf32>
      %138 = arith.truncf %124 : vector<8x8xf32> to vector<8x8xbf16>
      %cst_78 = arith.constant dense<0.000000e+00> : vector<8x32xf32>
      %139 = tpu.matmul %138, %111, %cst_78 {dimension_numbers = #tpu.dot_dimension_numbers<[1], [0], [0], [1], [0, 0, 1, 1], [], []>} : vector<8x8xbf16>, vector<8x32xbf16>, vector<8x32xf32> -> vector<8x32xf32>
      %140 = arith.addf %137, %139 : vector<8x32xf32>
      %c2_79 = arith.constant 2 : index
      %c0_80 = arith.constant 0 : index
      %c0_81 = arith.constant 0 : index
      %141 = vector.load %arg11[%c2_79, %c0_80, %c0_81] : memref<4x8x32xf32, #tpu.memory_space<vmem>>, vector<1x8x32xf32>
      %142 = vector.shape_cast %141 : vector<1x8x32xf32> to vector<8x32xf32>
      %143 = vector.shape_cast %140 : vector<8x32xf32> to vector<1x8x32xf32>
      tpu.vector_store %arg11[%c2_79, %c0_80, %c0_81], %143 {strides = array<i32>} : memref<4x8x32xf32, #tpu.memory_space<vmem>>, vector<1x8x32xf32>,
      %c2_82 = arith.constant 2 : index
      %c0_83 = arith.constant 0 : index
      %c0_84 = arith.constant 0 : index
      %144 = vector.load %arg9[%c2_82, %c0_83, %c0_84] : memref<4x8x1xf32, #tpu.memory_space<vmem>>, vector<1x8x1xf32>
      %145 = vector.shape_cast %144 : vector<1x8x1xf32> to vector<8x1xf32>
      %146 = vector.shape_cast %119 : vector<8x1xf32> to vector<1x8x1xf32>
      tpu.vector_store %arg9[%c2_82, %c0_83, %c0_84], %146 {strides = array<i32>} : memref<4x8x1xf32, #tpu.memory_space<vmem>>, vector<1x8x1xf32>,
      %147 = vector.extract_strided_slice %13 {offsets = [0, 96], sizes = [8, 32], strides = [1, 1]} : vector<8x128xbf16> to vector<8x32xbf16>
      %148 = vector.extract_strided_slice %15 {offsets = [0, 96], sizes = [8, 32], strides = [1, 1]} : vector<8x128xbf16> to vector<8x32xbf16>
      %149 = vector.extract_strided_slice %17 {offsets = [0, 96], sizes = [8, 32], strides = [1, 1]} : vector<8x128xbf16> to vector<8x32xbf16>
      %cst_85 = arith.constant dense<0.000000e+00> : vector<8x8xf32>
      %150 = tpu.matmul %147, %148, %cst_85 {dimension_numbers = #tpu.dot_dimension_numbers<[1], [1], [0], [0], [0, 0, 1, 0], [], []>} : vector<8x32xbf16>, vector<8x32xbf16>, vector<8x8xf32> -> vector<8x8xf32>
      %cst_86 = arith.constant -1.000000e+09 : f32
      %151 = vector.broadcast %cst_86 : f32 to vector<8x8xf32>
      %152 = arith.select %32, %150, %151 : vector<8x8xi1>, vector<8x8xf32>
      %c3 = arith.constant 3 : index
      %c0_87 = arith.constant 0 : index
      %c0_88 = arith.constant 0 : index
      %153 = vector.load %arg9[%c3, %c0_87, %c0_88] : memref<4x8x1xf32, #tpu.memory_space<vmem>>, vector<1x8x1xf32>
      %154 = vector.shape_cast %153 : vector<1x8x1xf32> to vector<8x1xf32>
      %cst_89 = arith.constant dense<0xFF800000> : vector<8xf32>
      %155 = vector.multi_reduction <maximumf>, %152, %cst_89 [1] : vector<8x8xf32> to vector<8xf32>
      %156 = vector.shape_cast %155 : vector<8xf32> to vector<8x1xf32>
      %157 = arith.maximumf %154, %156 : vector<8x1xf32>
      %158 = arith.subf %154, %157 : vector<8x1xf32>
      %159 = math.exp %158 : vector<8x1xf32>
      %160 = vector.broadcast %157 : vector<8x1xf32> to vector<8x8xf32>
      %161 = arith.subf %152, %160 : vector<8x8xf32>
      %162 = math.exp %161 : vector<8x8xf32>
      %c3_90 = arith.constant 3 : index
      %c0_91 = arith.constant 0 : index
      %c0_92 = arith.constant 0 : index
      %163 = vector.load %arg10[%c3_90, %c0_91, %c0_92] : memref<4x8x1xf32, #tpu.memory_space<vmem>>, vector<1x8x1xf32>
      %164 = vector.shape_cast %163 : vector<1x8x1xf32> to vector<8x1xf32>
      %165 = arith.mulf %159, %164 : vector<8x1xf32>
      %cst_93 = arith.constant dense<0.000000e+00> : vector<8xf32>
      %166 = vector.multi_reduction <add>, %162, %cst_93 [1] : vector<8x8xf32> to vector<8xf32>
      %167 = vector.shape_cast %166 : vector<8xf32> to vector<8x1xf32>
      %168 = arith.addf %165, %167 : vector<8x1xf32>
      %c3_94 = arith.constant 3 : index
      %c0_95 = arith.constant 0 : index
      %c0_96 = arith.constant 0 : index
      %169 = vector.load %arg10[%c3_94, %c0_95, %c0_96] : memref<4x8x1xf32, #tpu.memory_space<vmem>>, vector<1x8x1xf32>
      %170 = vector.shape_cast %169 : vector<1x8x1xf32> to vector<8x1xf32>
      %171 = vector.shape_cast %168 : vector<8x1xf32> to vector<1x8x1xf32>
      tpu.vector_store %arg10[%c3_94, %c0_95, %c0_96], %171 {strides = array<i32>} : memref<4x8x1xf32, #tpu.memory_space<vmem>>, vector<1x8x1xf32>,
      %c3_97 = arith.constant 3 : index
      %c0_98 = arith.constant 0 : index
      %c0_99 = arith.constant 0 : index
      %172 = vector.load %arg11[%c3_97, %c0_98, %c0_99] : memref<4x8x32xf32, #tpu.memory_space<vmem>>, vector<1x8x32xf32>
      %173 = vector.shape_cast %172 : vector<1x8x32xf32> to vector<8x32xf32>
      %174 = vector.broadcast %159 : vector<8x1xf32> to vector<8x32xf32>
      %175 = arith.mulf %174, %173 : vector<8x32xf32>
      %176 = arith.truncf %162 : vector<8x8xf32> to vector<8x8xbf16>
      %cst_100 = arith.constant dense<0.000000e+00> : vector<8x32xf32>
      %177 = tpu.matmul %176, %149, %cst_100 {dimension_numbers = #tpu.dot_dimension_numbers<[1], [0], [0], [1], [0, 0, 1, 1], [], []>} : vector<8x8xbf16>, vector<8x32xbf16>, vector<8x32xf32> -> vector<8x32xf32>
      %178 = arith.addf %175, %177 : vector<8x32xf32>
      %c3_101 = arith.constant 3 : index
      %c0_102 = arith.constant 0 : index
      %c0_103 = arith.constant 0 : index
      %179 = vector.load %arg11[%c3_101, %c0_102, %c0_103] : memref<4x8x32xf32, #tpu.memory_space<vmem>>, vector<1x8x32xf32>
      %180 = vector.shape_cast %179 : vector<1x8x32xf32> to vector<8x32xf32>
      %181 = vector.shape_cast %178 : vector<8x32xf32> to vector<1x8x32xf32>
      tpu.vector_store %arg11[%c3_101, %c0_102, %c0_103], %181 {strides = array<i32>} : memref<4x8x32xf32, #tpu.memory_space<vmem>>, vector<1x8x32xf32>,
      %c3_104 = arith.constant 3 : index
      %c0_105 = arith.constant 0 : index
      %c0_106 = arith.constant 0 : index
      %182 = vector.load %arg9[%c3_104, %c0_105, %c0_106] : memref<4x8x1xf32, #tpu.memory_space<vmem>>, vector<1x8x1xf32>
      %183 = vector.shape_cast %182 : vector<1x8x1xf32> to vector<8x1xf32>
      %184 = vector.shape_cast %157 : vector<8x1xf32> to vector<1x8x1xf32>
      tpu.vector_store %arg9[%c3_104, %c0_105, %c0_106], %184 {strides = array<i32>} : memref<4x8x1xf32, #tpu.memory_space<vmem>>, vector<1x8x1xf32>,
    } else {
    }
    %c0_i32_3 = arith.constant 0 : i32
    %9 = arith.cmpi eq, %arg3, %c0_i32_3 : i32
    %10 = arith.extui %9 : i1 to i32
    %c0_i32_4 = arith.constant 0 : i32
    %11 = arith.cmpi ne, %10, %c0_i32_4 : i32
    scf.if %11 {
      %c0 = arith.constant 0 : index
      %c0_5 = arith.constant 0 : index
      %c0_6 = arith.constant 0 : index
      %12 = vector.load %arg11[%c0, %c0_5, %c0_6] : memref<4x8x32xf32, #tpu.memory_space<vmem>>, vector<1x8x32xf32>
      %13 = vector.shape_cast %12 : vector<1x8x32xf32> to vector<8x32xf32>
      %c0_7 = arith.constant 0 : index
      %c0_8 = arith.constant 0 : index
      %c0_9 = arith.constant 0 : index
      %14 = vector.load %arg10[%c0_7, %c0_8, %c0_9] : memref<4x8x1xf32, #tpu.memory_space<vmem>>, vector<1x8x1xf32>
      %15 = vector.shape_cast %14 : vector<1x8x1xf32> to vector<8x1xf32>
      %16 = tpu.reciprocal %15 {approx = true} : vector<8x1xf32> -> vector<8x1xf32>
      %17 = vector.broadcast %16 : vector<8x1xf32> to vector<8x32xf32>
      %18 = arith.mulf %13, %17 : vector<8x32xf32>
      %c1 = arith.constant 1 : index
      %c0_10 = arith.constant 0 : index
      %c0_11 = arith.constant 0 : index
      %19 = vector.load %arg11[%c1, %c0_10, %c0_11] : memref<4x8x32xf32, #tpu.memory_space<vmem>>, vector<1x8x32xf32>
      %20 = vector.shape_cast %19 : vector<1x8x32xf32> to vector<8x32xf32>
      %c1_12 = arith.constant 1 : index
      %c0_13 = arith.constant 0 : index
      %c0_14 = arith.constant 0 : index
      %21 = vector.load %arg10[%c1_12, %c0_13, %c0_14] : memref<4x8x1xf32, #tpu.memory_space<vmem>>, vector<1x8x1xf32>
      %22 = vector.shape_cast %21 : vector<1x8x1xf32> to vector<8x1xf32>
      %23 = tpu.reciprocal %22 {approx = true} : vector<8x1xf32> -> vector<8x1xf32>
      %24 = vector.broadcast %23 : vector<8x1xf32> to vector<8x32xf32>
      %25 = arith.mulf %20, %24 : vector<8x32xf32>
      %c2 = arith.constant 2 : index
      %c0_15 = arith.constant 0 : index
      %c0_16 = arith.constant 0 : index
      %26 = vector.load %arg11[%c2, %c0_15, %c0_16] : memref<4x8x32xf32, #tpu.memory_space<vmem>>, vector<1x8x32xf32>
      %27 = vector.shape_cast %26 : vector<1x8x32xf32> to vector<8x32xf32>
      %c2_17 = arith.constant 2 : index
      %c0_18 = arith.constant 0 : index
      %c0_19 = arith.constant 0 : index
      %28 = vector.load %arg10[%c2_17, %c0_18, %c0_19] : memref<4x8x1xf32, #tpu.memory_space<vmem>>, vector<1x8x1xf32>
      %29 = vector.shape_cast %28 : vector<1x8x1xf32> to vector<8x1xf32>
      %30 = tpu.reciprocal %29 {approx = true} : vector<8x1xf32> -> vector<8x1xf32>
      %31 = vector.broadcast %30 : vector<8x1xf32> to vector<8x32xf32>
      %32 = arith.mulf %27, %31 : vector<8x32xf32>
      %c3 = arith.constant 3 : index
      %c0_20 = arith.constant 0 : index
      %c0_21 = arith.constant 0 : index
      %33 = vector.load %arg11[%c3, %c0_20, %c0_21] : memref<4x8x32xf32, #tpu.memory_space<vmem>>, vector<1x8x32xf32>
      %34 = vector.shape_cast %33 : vector<1x8x32xf32> to vector<8x32xf32>
      %c3_22 = arith.constant 3 : index
      %c0_23 = arith.constant 0 : index
      %c0_24 = arith.constant 0 : index
      %35 = vector.load %arg10[%c3_22, %c0_23, %c0_24] : memref<4x8x1xf32, #tpu.memory_space<vmem>>, vector<1x8x1xf32>
      %36 = vector.shape_cast %35 : vector<1x8x1xf32> to vector<8x1xf32>
      %37 = tpu.reciprocal %36 {approx = true} : vector<8x1xf32> -> vector<8x1xf32>
      %38 = vector.broadcast %37 : vector<8x1xf32> to vector<8x32xf32>
      %39 = arith.mulf %34, %38 : vector<8x32xf32>
      %40 = tpu.concatenate %18, %25, %32, %39 in 1 : vector<8x32xf32>, vector<8x32xf32>, vector<8x32xf32>, vector<8x32xf32> -> vector<8x128xf32>
      %41 = arith.truncf %40 : vector<8x128xf32> to vector<8x128xbf16>
      %c0_25 = arith.constant 0 : index
      %c0_26 = arith.constant 0 : index
      %c0_27 = arith.constant 0 : index
      %42 = vector.load %arg8[%c0_25, %c0_26, %c0_27] : memref<1x8x128xbf16, #tpu.memory_space<vmem>>, vector<1x8x128xbf16>
      %43 = vector.shape_cast %42 : vector<1x8x128xbf16> to vector<8x128xbf16>
      %44 = vector.shape_cast %41 : vector<8x128xbf16> to vector<1x8x128xbf16>
      tpu.vector_store %arg8[%c0_25, %c0_26, %c0_27], %44 {strides = array<i32>} : memref<1x8x128xbf16, #tpu.memory_space<vmem>>, vector<1x8x128xbf16>,
    } else {
    }
    return
  }
  func.func @transform_0(%arg0: i32, %arg1: i32, %arg2: i32, %arg3: i32) -> (i32, i32, i32) {
    %c0_i32 = arith.constant 0 : i32
    return %arg0, %arg2, %arg1 : i32, i32, i32
  }
  func.func @transform_1(%arg0: i32, %arg1: i32, %arg2: i32, %arg3: i32) -> (i32, i32, i32) {
    %c0_i32 = arith.constant 0 : i32
    return %arg0, %arg3, %arg1 : i32, i32, i32
  }
  func.func @transform_2(%arg0: i32, %arg1: i32, %arg2: i32, %arg3: i32) -> (i32, i32, i32) {
    %c0_i32 = arith.constant 0 : i32
    return %arg0, %arg3, %arg1 : i32, i32, i32
  }
  func.func @transform_3(%arg0: i32, %arg1: i32, %arg2: i32, %arg3: i32) -> (i32, i32, i32) {
    %c0_i32 = arith.constant 0 : i32
    %c0_i32_0 = arith.constant 0 : i32
    return %arg0, %c0_i32, %arg3 : i32, i32, i32
  }
  func.func @transform_4(%arg0: i32, %arg1: i32, %arg2: i32, %arg3: i32) -> (i32, i32, i32) {
    %c0_i32 = arith.constant 0 : i32
    return %arg0, %arg2, %arg1 : i32, i32, i32
  }
}

module attributes {stable_mosaic.version = 11 : i64} {
  func.func @_matmul_kernel(%arg0: i32, %arg1: i32, %arg2: i32, %arg3: memref<16x128xf32, #tpu.memory_space<vmem>>, %arg4: memref<128x128xbf16, #tpu.memory_space<vmem>>, %arg5: memref<1x128xf32, #tpu.memory_space<vmem>>, %arg6: memref<16x128xbf16, #tpu.memory_space<vmem>>, %arg7: memref<16x128xf32, #tpu.memory_space<vmem>>) attributes {dimension_semantics = [#tpu.dimension_semantics<parallel>, #tpu.dimension_semantics<parallel>, #tpu.dimension_semantics<arbitrary>], iteration_bounds = array<i64: 1, 1, 1>, scalar_prefetch = 0 : i64, scratch_operands = 1 : i64, tpu.core_type = #tpu.core_type<tc>, window_params = [{transform_indices = @transform_0, window_bounds = array<i64: 16, 128>}, {transform_indices = @transform_1, window_bounds = array<i64: 128, 128>}, {transform_indices = @transform_2, window_bounds = array<i64: 1, 128>}, {transform_indices = @transform_3, window_bounds = array<i64: 16, 128>}]} {
    %c0_i32 = arith.constant 0 : i32
    %0 = arith.cmpi eq, %arg2, %c0_i32 : i32
    %1 = arith.extui %0 : i1 to i32
    %c0_i32_0 = arith.constant 0 : i32
    %2 = arith.cmpi ne, %1, %c0_i32_0 : i32
    scf.if %2 {
      %cst_10 = arith.constant 0.000000e+00 : f32
      %13 = vector.broadcast %cst_10 : f32 to vector<16x128xf32>
      %c0_11 = arith.constant 0 : index
      %c0_12 = arith.constant 0 : index
      %14 = vector.load %arg7[%c0_11, %c0_12] : memref<16x128xf32, #tpu.memory_space<vmem>>, vector<16x128xf32>
      tpu.vector_store %arg7[%c0_11, %c0_12], %13 {strides = array<i32>} : memref<16x128xf32, #tpu.memory_space<vmem>>, vector<16x128xf32>,
    } else {
    }
    %c0 = arith.constant 0 : index
    %c0_1 = arith.constant 0 : index
    %3 = vector.load %arg7[%c0, %c0_1] : memref<16x128xf32, #tpu.memory_space<vmem>>, vector<16x128xf32>
    %c0_2 = arith.constant 0 : index
    %c0_3 = arith.constant 0 : index
    %4 = vector.load %arg3[%c0_2, %c0_3] : memref<16x128xf32, #tpu.memory_space<vmem>>, vector<16x128xf32>
    %5 = arith.truncf %4 : vector<16x128xf32> to vector<16x128xbf16>
    %c0_4 = arith.constant 0 : index
    %c0_5 = arith.constant 0 : index
    %6 = vector.load %arg4[%c0_4, %c0_5] : memref<128x128xbf16, #tpu.memory_space<vmem>>, vector<128x128xbf16>
    %cst = arith.constant dense<0.000000e+00> : vector<16x128xf32>
    %7 = tpu.matmul %5, %6, %cst {dimension_numbers = #tpu.dot_dimension_numbers<[1], [0], [0], [1], [0, 0, 1, 1], [], []>} : vector<16x128xbf16>, vector<128x128xbf16>, vector<16x128xf32> -> vector<16x128xf32>
    %8 = arith.addf %3, %7 : vector<16x128xf32>
    %c0_6 = arith.constant 0 : index
    %c0_7 = arith.constant 0 : index
    %9 = vector.load %arg7[%c0_6, %c0_7] : memref<16x128xf32, #tpu.memory_space<vmem>>, vector<16x128xf32>
    tpu.vector_store %arg7[%c0_6, %c0_7], %8 {strides = array<i32>} : memref<16x128xf32, #tpu.memory_space<vmem>>, vector<16x128xf32>,
    %c0_i32_8 = arith.constant 0 : i32
    %10 = arith.cmpi eq, %arg2, %c0_i32_8 : i32
    %11 = arith.extui %10 : i1 to i32
    %c0_i32_9 = arith.constant 0 : i32
    %12 = arith.cmpi ne, %11, %c0_i32_9 : i32
    scf.if %12 {
      %c0_10 = arith.constant 0 : index
      %c0_11 = arith.constant 0 : index
      %13 = vector.load %arg7[%c0_10, %c0_11] : memref<16x128xf32, #tpu.memory_space<vmem>>, vector<16x128xf32>
      %c0_12 = arith.constant 0 : index
      %c0_13 = arith.constant 0 : index
      %14 = vector.load %arg5[%c0_12, %c0_13] : memref<1x128xf32, #tpu.memory_space<vmem>>, vector<1x128xf32>
      %15 = vector.broadcast %14 : vector<1x128xf32> to vector<16x128xf32>
      %16 = arith.addf %13, %15 : vector<16x128xf32>
      %17 = arith.truncf %16 : vector<16x128xf32> to vector<16x128xbf16>
      %c0_14 = arith.constant 0 : index
      %c0_15 = arith.constant 0 : index
      %18 = vector.load %arg6[%c0_14, %c0_15] : memref<16x128xbf16, #tpu.memory_space<vmem>>, vector<16x128xbf16>
      tpu.vector_store %arg6[%c0_14, %c0_15], %17 {strides = array<i32>} : memref<16x128xbf16, #tpu.memory_space<vmem>>, vector<16x128xbf16>,
    } else {
    }
    return
  }
  func.func @transform_0(%arg0: i32, %arg1: i32, %arg2: i32) -> (i32, i32) {
    %c0_i32 = arith.constant 0 : i32
    return %arg0, %arg2 : i32, i32
  }
  func.func @transform_1(%arg0: i32, %arg1: i32, %arg2: i32) -> (i32, i32) {
    %c0_i32 = arith.constant 0 : i32
    return %arg2, %arg1 : i32, i32
  }
  func.func @transform_2(%arg0: i32, %arg1: i32, %arg2: i32) -> (i32, i32) {
    %c0_i32 = arith.constant 0 : i32
    %c0_i32_0 = arith.constant 0 : i32
    return %c0_i32, %arg1 : i32, i32
  }
  func.func @transform_3(%arg0: i32, %arg1: i32, %arg2: i32) -> (i32, i32) {
    %c0_i32 = arith.constant 0 : i32
    return %arg0, %arg1 : i32, i32
  }
}

module attributes {stable_mosaic.version = 11 : i64} {
  func.func @_matmul_kernel(%arg0: i32, %arg1: i32, %arg2: i32, %arg3: memref<16x128xf32, #tpu.memory_space<vmem>>, %arg4: memref<128x32xbf16, #tpu.memory_space<vmem>>, %arg5: memref<1x32xf32, #tpu.memory_space<vmem>>, %arg6: memref<16x32xf32, #tpu.memory_space<vmem>>, %arg7: memref<16x32xf32, #tpu.memory_space<vmem>>) attributes {dimension_semantics = [#tpu.dimension_semantics<parallel>, #tpu.dimension_semantics<parallel>, #tpu.dimension_semantics<arbitrary>], iteration_bounds = array<i64: 1, 1, 1>, scalar_prefetch = 0 : i64, scratch_operands = 1 : i64, tpu.core_type = #tpu.core_type<tc>, window_params = [{transform_indices = @transform_0, window_bounds = array<i64: 16, 128>}, {transform_indices = @transform_1, window_bounds = array<i64: 128, 32>}, {transform_indices = @transform_2, window_bounds = array<i64: 1, 32>}, {transform_indices = @transform_3, window_bounds = array<i64: 16, 32>}]} {
    %c0_i32 = arith.constant 0 : i32
    %0 = arith.cmpi eq, %arg2, %c0_i32 : i32
    %1 = arith.extui %0 : i1 to i32
    %c0_i32_0 = arith.constant 0 : i32
    %2 = arith.cmpi ne, %1, %c0_i32_0 : i32
    scf.if %2 {
      %cst_10 = arith.constant 0.000000e+00 : f32
      %13 = vector.broadcast %cst_10 : f32 to vector<16x32xf32>
      %c0_11 = arith.constant 0 : index
      %c0_12 = arith.constant 0 : index
      %14 = vector.load %arg7[%c0_11, %c0_12] : memref<16x32xf32, #tpu.memory_space<vmem>>, vector<16x32xf32>
      tpu.vector_store %arg7[%c0_11, %c0_12], %13 {strides = array<i32>} : memref<16x32xf32, #tpu.memory_space<vmem>>, vector<16x32xf32>,
    } else {
    }
    %c0 = arith.constant 0 : index
    %c0_1 = arith.constant 0 : index
    %3 = vector.load %arg7[%c0, %c0_1] : memref<16x32xf32, #tpu.memory_space<vmem>>, vector<16x32xf32>
    %c0_2 = arith.constant 0 : index
    %c0_3 = arith.constant 0 : index
    %4 = vector.load %arg3[%c0_2, %c0_3] : memref<16x128xf32, #tpu.memory_space<vmem>>, vector<16x128xf32>
    %5 = arith.truncf %4 : vector<16x128xf32> to vector<16x128xbf16>
    %c0_4 = arith.constant 0 : index
    %c0_5 = arith.constant 0 : index
    %6 = vector.load %arg4[%c0_4, %c0_5] : memref<128x32xbf16, #tpu.memory_space<vmem>>, vector<128x32xbf16>
    %cst = arith.constant dense<0.000000e+00> : vector<16x32xf32>
    %7 = tpu.matmul %5, %6, %cst {dimension_numbers = #tpu.dot_dimension_numbers<[1], [0], [0], [1], [0, 0, 1, 1], [], []>} : vector<16x128xbf16>, vector<128x32xbf16>, vector<16x32xf32> -> vector<16x32xf32>
    %8 = arith.addf %3, %7 : vector<16x32xf32>
    %c0_6 = arith.constant 0 : index
    %c0_7 = arith.constant 0 : index
    %9 = vector.load %arg7[%c0_6, %c0_7] : memref<16x32xf32, #tpu.memory_space<vmem>>, vector<16x32xf32>
    tpu.vector_store %arg7[%c0_6, %c0_7], %8 {strides = array<i32>} : memref<16x32xf32, #tpu.memory_space<vmem>>, vector<16x32xf32>,
    %c0_i32_8 = arith.constant 0 : i32
    %10 = arith.cmpi eq, %arg2, %c0_i32_8 : i32
    %11 = arith.extui %10 : i1 to i32
    %c0_i32_9 = arith.constant 0 : i32
    %12 = arith.cmpi ne, %11, %c0_i32_9 : i32
    scf.if %12 {
      %c0_10 = arith.constant 0 : index
      %c0_11 = arith.constant 0 : index
      %13 = vector.load %arg7[%c0_10, %c0_11] : memref<16x32xf32, #tpu.memory_space<vmem>>, vector<16x32xf32>
      %c0_12 = arith.constant 0 : index
      %c0_13 = arith.constant 0 : index
      %14 = vector.load %arg5[%c0_12, %c0_13] : memref<1x32xf32, #tpu.memory_space<vmem>>, vector<1x32xf32>
      %15 = vector.broadcast %14 : vector<1x32xf32> to vector<16x32xf32>
      %16 = arith.addf %13, %15 : vector<16x32xf32>
      %c0_14 = arith.constant 0 : index
      %c0_15 = arith.constant 0 : index
      %17 = vector.load %arg6[%c0_14, %c0_15] : memref<16x32xf32, #tpu.memory_space<vmem>>, vector<16x32xf32>
      tpu.vector_store %arg6[%c0_14, %c0_15], %16 {strides = array<i32>} : memref<16x32xf32, #tpu.memory_space<vmem>>, vector<16x32xf32>,
    } else {
    }
    return
  }
  func.func @transform_0(%arg0: i32, %arg1: i32, %arg2: i32) -> (i32, i32) {
    %c0_i32 = arith.constant 0 : i32
    return %arg0, %arg2 : i32, i32
  }
  func.func @transform_1(%arg0: i32, %arg1: i32, %arg2: i32) -> (i32, i32) {
    %c0_i32 = arith.constant 0 : i32
    return %arg2, %arg1 : i32, i32
  }
  func.func @transform_2(%arg0: i32, %arg1: i32, %arg2: i32) -> (i32, i32) {
    %c0_i32 = arith.constant 0 : i32
    %c0_i32_0 = arith.constant 0 : i32
    return %c0_i32, %arg1 : i32, i32
  }
  func.func @transform_3(%arg0: i32, %arg1: i32, %arg2: i32) -> (i32, i32) {
    %c0_i32 = arith.constant 0 : i32
    return %arg0, %arg1 : i32, i32
  }
}

</mosaic_0001>

<llo_original>
// kernel: transformer_forward.27
$region0: #{transformer_forward.27}
  #allocation0 [shape = 'u32[]', space=smem, size = 0x4, offset = 0x4, fixed_abs, tag = 'smem constant byte address 0x4 - core index']
  #allocation1 [shape = 'u32[144,128]{1,0:T(1,128)}', space=vmem, size = 0x12000, scoped, tag = 'internal scratch']
  #allocation2 [shape = 'f32[16,128]{1,0:T(8,128)}', space=vmem, size = 0x2000, scoped, tag = 'scratch operand']
  %s0 = inlined_call_operand.vmem [shape: bf16[16,128], index: 0, kind: input, shape index: {}]
  %s1 = inlined_call_operand.vmem [shape: bf16[128,128], index: 1, kind: input, shape index: {}]
  %s2 = inlined_call_operand.vmem [shape: f32[1,128], index: 2, kind: input, shape index: {}]
  %s3 = inlined_call_operand.vmem [shape: f32[16,128], index: 3, kind: input, shape index: {}]
  %s4 = inlined_call_operand.vmem [shape: f32[1,128], index: 4, kind: input, shape index: {}]
  %s5 = inlined_call_operand.vmem [shape: f32[1,128], index: 5, kind: input, shape index: {}]
  %s6 = inlined_call_operand.vmem [shape: f32[16,128], index: 6, kind: output, shape index: {}]
  %s7 = sld [smem:[#allocation0]]
  $region42: #{transformer_forward.27} parent=0
    _
  %s9 = ssub.s32 1, %s7
  %s10 = scalar_select 0, %s9, %s7
  // Predicated region
  $region2: #{transformer_forward.27} parent=0 // pred_check
    _
  $region3: #{transformer_forward.27} parent=0 // pred_check_branch
    %12 = sbr.rel (0) target = $region5
  $region4: #{transformer_forward.27} parent=0 // pred_region
    _
  $region5: #{transformer_forward.27} parent=0 // pred_fallthru
    _
  // Predicated region
  $region6: #{transformer_forward.27} parent=0 // pred_check
    _
  $region7: #{transformer_forward.27} parent=0 // pred_check_branch
    %14 = sbr.rel (0) target = $region9
  $region8: #{transformer_forward.27} parent=0 // pred_region
    _
  $region9: #{transformer_forward.27} parent=0 // pred_fallthru
    _
  // Predicated region
  $region10: #{transformer_forward.27} parent=0 // pred_check
    _
  $region11: #{transformer_forward.27} parent=0 // pred_check_branch
    %16 = sbr.rel (0) target = $region13
  $region12: #{transformer_forward.27} parent=0 // pred_region
    _
  $region13: #{transformer_forward.27} parent=0 // pred_fallthru
    _
  // Predicated region
  $region14: #{transformer_forward.27} parent=0 // pred_check
    _
  $region15: #{transformer_forward.27} parent=0 // pred_check_branch
    %18 = sbr.rel (0) target = $region17
  $region16: #{transformer_forward.27} parent=0 // pred_region
    _
  $region17: #{transformer_forward.27} parent=0 // pred_fallthru
    _
  // Predicated region
  $region18: #{transformer_forward.27} parent=0 // pred_check
    _
  $region19: #{transformer_forward.27} parent=0 // pred_check_branch
    %20 = sbr.rel (0) target = $region21
  $region20: #{transformer_forward.27} parent=0 // pred_region
    _
  $region21: #{transformer_forward.27} parent=0 // pred_fallthru
    _
  // Predicated region
  $region22: #{transformer_forward.27} parent=0 // pred_check
    _
  $region23: #{transformer_forward.27} parent=0 // pred_check_branch
    %22 = sbr.rel (0) target = $region25
  $region24: #{transformer_forward.27} parent=0 // pred_region
    _
  $region25: #{transformer_forward.27} parent=0 // pred_fallthru
    _
  %p24 = scmp.eq.s32.totalorder 0, 0
  // Predicated region
  $region26: #{transformer_forward.27} parent=0 // pred_check
    %p25 = pneg %p24
  $region27: #{transformer_forward.27} parent=0 // pred_check_branch
    %27 = sbr.rel (%p25) target = $region29
  $region28: #{transformer_forward.27} parent=0 // pred_region
    %28 = vst [vmem:[#allocation2] sm:$0xff] 0.0
    %29 = vst [vmem:[#allocation2 + $0x8] sm:$0xff] 0.0
  $region29: #{transformer_forward.27} parent=0 // pred_fallthru
    _
  %v30 = vld [vmem:[#allocation2] sm:$0xff]
  %v31 = vld [vmem:[#allocation2 + $0x8] sm:$0xff]
  %v32 = vld [vmem:[%s0] sm:$0xf]
  %v33 = vld [vmem:[%s0 + $0x4] sm:$0xf]
  %v34 = vld [vmem:[%s1] sm:$0xf]
  %v35 = vld [vmem:[%s1 + $0x4] sm:$0xf]
  %v36 = vld [vmem:[%s1 + $0x8] sm:$0xf]
  %v37 = vld [vmem:[%s1 + $0xc] sm:$0xf]
  %v38 = vld [vmem:[%s1 + $0x10] sm:$0xf]
  %v39 = vld [vmem:[%s1 + $0x14] sm:$0xf]
  %v40 = vld [vmem:[%s1 + $0x18] sm:$0xf]
  %v41 = vld [vmem:[%s1 + $0x1c] sm:$0xf]
  %v42 = vld [vmem:[%s1 + $0x20] sm:$0xf]
  %v43 = vld [vmem:[%s1 + $0x24] sm:$0xf]
  %v44 = vld [vmem:[%s1 + $0x28] sm:$0xf]
  %v45 = vld [vmem:[%s1 + $0x2c] sm:$0xf]
  %v46 = vld [vmem:[%s1 + $0x30] sm:$0xf]
  %v47 = vld [vmem:[%s1 + $0x34] sm:$0xf]
  %v48 = vld [vmem:[%s1 + $0x38] sm:$0xf]
  %v49 = vld [vmem:[%s1 + $0x3c] sm:$0xf]
  %v52 = vunpack.c.l.b16 %v32
  %v53 = vunpack.c.l.b16 %v33
  %v54 = vpack.c.b16 %v53, %v52
  %v72 = vunpack.c.l.b16 %v34
  %v73 = vunpack.c.l.b16 %v35
  %v74 = vunpack.c.l.b16 %v36
  %v75 = vunpack.c.l.b16 %v37
  %v76 = vunpack.c.l.b16 %v38
  %v77 = vunpack.c.l.b16 %v39
  %v78 = vunpack.c.l.b16 %v40
  %v79 = vunpack.c.l.b16 %v41
  %v80 = vunpack.c.l.b16 %v42
  %v81 = vunpack.c.l.b16 %v43
  %v82 = vunpack.c.l.b16 %v44
  %v83 = vunpack.c.l.b16 %v45
  %v84 = vunpack.c.l.b16 %v46
  %v85 = vunpack.c.l.b16 %v47
  %v86 = vunpack.c.l.b16 %v48
  %v87 = vunpack.c.l.b16 %v49
  %v88 = vpack.c.b16 %v73, %v72
  %v89 = vpack.c.b16 %v75, %v74
  %v90 = vpack.c.b16 %v77, %v76
  %v91 = vpack.c.b16 %v79, %v78
  %v92 = vpack.c.b16 %v81, %v80
  %v93 = vpack.c.b16 %v83, %v82
  %v94 = vpack.c.b16 %v85, %v84
  %v95 = vpack.c.b16 %v87, %v86
  %104 = vmatprep.subr.bf16.mxu0 0
  %105 = vmatpush1.bf16.msra.mxu0 %v88
  %106 = vmatprep.subr.bf16.mxu0 0
  %107 = vmatpush1.bf16.msra.mxu0 %v89
  %108 = vmatprep.subr.bf16.mxu0 0
  %109 = vmatpush1.bf16.msra.mxu0 %v90
  %110 = vmatprep.subr.bf16.mxu0 0
  %111 = vmatpush1.bf16.msra.mxu0 %v91
  %112 = vmatprep.subr.bf16.mxu0 0
  %113 = vmatpush1.bf16.msra.mxu0 %v92
  %114 = vmatprep.subr.bf16.mxu0 0
  %115 = vmatpush1.bf16.msra.mxu0 %v93
  %116 = vmatprep.subr.bf16.mxu0 0
  %117 = vmatpush1.bf16.msra.mxu0 %v94
  %118 = vmatprep.subr.bf16.mxu0 0
  %119 = vmatpush1.bf16.msra.mxu0 %v95
  %120 = vmatprep.subr.bf16.mxu0 0
  %121 = vmatpush1.bf16.msra.mxu0 0
  %122 = vmatprep.subr.bf16.mxu0 0
  %123 = vmatpush1.bf16.msra.mxu0 0
  %124 = vmatprep.subr.bf16.mxu0 0
  %125 = vmatpush1.bf16.msra.mxu0 0
  %126 = vmatprep.subr.bf16.mxu0 0
  %127 = vmatpush1.bf16.msra.mxu0 0
  %128 = vmatprep.subr.bf16.mxu0 0
  %129 = vmatpush1.bf16.msra.mxu0 0
  %130 = vmatprep.subr.bf16.mxu0 0
  %131 = vmatpush1.bf16.msra.mxu0 0
  %132 = vmatprep.subr.bf16.mxu0 0
  %133 = vmatpush1.bf16.msra.mxu0 0
  %134 = vmatprep.subr.bf16.mxu0 0
  %135 = vmatpush1.bf16.msra.mxu0 0
  %136 = vmatprep.mubr.bf16.mxu0 0
  %137 = vmatmul.mubr.bf16.gmra.mrb[0].mxu0 %v54
  %v138 = vpop.f32.mrb[0].mxu0
  %v139 = vadd.f32 0.0, %v138
  %v140 = vpop.f32.mrb[0].mxu0
  %v141 = vpop.f32.mrb[0].mxu0
  %v142 = vadd.f32 0.0, %v141
  %v143 = vpop.f32.mrb[0].mxu0
  %144 = vdwg.mxu0
  %v145 = vadd.f32 %v30, %v139
  %v146 = vadd.f32 %v31, %v142
  %147 = vst [vmem:[#allocation2] sm:$0xff] %v145
  %148 = vst [vmem:[#allocation2 + $0x8] sm:$0xff] %v146
  // Predicated region
  $region30: #{transformer_forward.27} parent=0 // pred_check
    %p149 = pneg %p24
  $region31: #{transformer_forward.27} parent=0 // pred_check_branch
    %151 = sbr.rel (%p149) target = $region33
  $region32: #{transformer_forward.27} parent=0 // pred_region
    %v152 = vld [vmem:[#allocation2] sm:$0xff]
    %v153 = vld [vmem:[#allocation2 + $0x8] sm:$0xff]
    %v154 = vld [vmem:[%s2] sm:$0x1]
    %v156 = vlaneseq
    %v157 = vshrl.u32 %v156, 7
    %v158 = vsub.s32 0, %v157
    %v159 = vrot.slane %v154, %v158
    %v161 = vadd.f32 %v152, %v159
    %v162 = vadd.f32 %v153, %v159
    %v163 = vld [vmem:[%s3] sm:$0xff]
    %v164 = vld [vmem:[%s3 + $0x8] sm:$0xff]
    %v165 = vadd.f32 %v161, %v163
    %v166 = vadd.f32 %v162, %v164
    %167 = vadd.xlane.f32.xlu0 %v165
    %v168 = vpop.xlane.xlu0 %167
    %169 = vadd.xlane.f32.xlu0 %v166
    %v170 = vpop.xlane.xlu0 %169
    %v171 = vrcp.pop 128.0
    %v172 = vmul.f32 %v168, %v171
    %v173 = vmul.f32 %v170, %v171
    %v174 = vsub.f32 %v165, %v172
    %v175 = vsub.f32 %v166, %v173
    %v176 = vmul.f32 %v174, %v174
    %v177 = vmul.f32 %v175, %v175
    %178 = vadd.xlane.f32.xlu0 %v176
    %v179 = vpop.xlane.xlu0 %178
    %180 = vadd.xlane.f32.xlu0 %v177
    %v181 = vpop.xlane.xlu0 %180
    %v182 = vmul.f32 %v179, %v171
    %v183 = vmul.f32 %v181, %v171
    %v184 = vadd.f32 %v182, 1e-05
    %v185 = vadd.f32 %v183, 1e-05
    %v186 = vrsqrt.pop %v184
    %v187 = vrsqrt.pop %v185
    %v188 = vmul.f32 %v174, %v186
    %v189 = vmul.f32 %v175, %v187
    %v190 = vld [vmem:[%s4] sm:$0x1]
    %v192 = vlaneseq
    %v193 = vshrl.u32 %v192, 7
    %v194 = vsub.s32 0, %v193
    %v195 = vrot.slane %v190, %v194
    %v197 = vmul.f32 %v188, %v195
    %v198 = vmul.f32 %v189, %v195
    %v199 = vld [vmem:[%s5] sm:$0x1]
    %v201 = vlaneseq
    %v202 = vshrl.u32 %v201, 7
    %v203 = vsub.s32 0, %v202
    %v204 = vrot.slane %v199, %v203
    %v206 = vadd.f32 %v197, %v204
    %v207 = vadd.f32 %v198, %v204
    %208 = vst [vmem:[%s6] sm:$0xff] %v206
    %209 = vst [vmem:[%s6 + $0x8] sm:$0xff] %v207
  $region33: #{transformer_forward.27} parent=0 // pred_fallthru
    _
  // Predicated region
  $region34: #{transformer_forward.27} parent=0 // pred_check
    _
  $region35: #{transformer_forward.27} parent=0 // pred_check_branch
    %211 = sbr.rel (0) target = $region37
  $region36: #{transformer_forward.27} parent=0 // pred_region
    _
  $region37: #{transformer_forward.27} parent=0 // pred_fallthru
    _
  // Predicated region
  $region38: #{transformer_forward.27} parent=0 // pred_check
    _
  $region39: #{transformer_forward.27} parent=0 // pred_check_branch
    %213 = sbr.rel (0) target = $region41
  $region40: #{transformer_forward.27} parent=0 // pred_region
    _
  $region41: #{transformer_forward.27} parent=0 // pred_fallthru
    _

// kernel: transformer_forward.25
$region0: #{transformer_forward.25}
  #allocation0 [shape = 'u32[]', space=smem, size = 0x4, offset = 0x4, fixed_abs, tag = 'smem constant byte address 0x4 - core index']
  #allocation1 [shape = 'u32[144,128]{1,0:T(1,128)}', space=vmem, size = 0x12000, scoped, tag = 'internal scratch']
  #allocation2 [shape = 'f32[16,384]{1,0:T(8,128)}', space=vmem, size = 0x6000, scoped, tag = 'scratch operand']
  %s0 = inlined_call_operand.vmem [shape: f32[16,128], index: 0, kind: input, shape index: {}]
  %s1 = inlined_call_operand.vmem [shape: bf16[128,384], index: 1, kind: input, shape index: {}]
  %s2 = inlined_call_operand.vmem [shape: f32[1,384], index: 2, kind: input, shape index: {}]
  %s3 = inlined_call_operand.vmem [shape: bf16[16,128], index: 3, kind: output, shape index: {0}]
  %s4 = inlined_call_operand.vmem [shape: bf16[16,128], index: 4, kind: output, shape index: {1}]
  %s5 = inlined_call_operand.vmem [shape: bf16[16,128], index: 5, kind: output, shape index: {2}]
  %6 = xla_tuple %s3, %s4, %s5
  %s7 = sld [smem:[#allocation0]]
  $region46: #{transformer_forward.25} parent=0
    _
  %s9 = ssub.s32 1, %s7
  %s10 = scalar_select 0, %s9, %s7
  // Predicated region
  $region2: #{transformer_forward.25} parent=0 // pred_check
    _
  $region3: #{transformer_forward.25} parent=0 // pred_check_branch
    %12 = sbr.rel (0) target = $region5
  $region4: #{transformer_forward.25} parent=0 // pred_region
    _
  $region5: #{transformer_forward.25} parent=0 // pred_fallthru
    _
  // Predicated region
  $region6: #{transformer_forward.25} parent=0 // pred_check
    _
  $region7: #{transformer_forward.25} parent=0 // pred_check_branch
    %14 = sbr.rel (0) target = $region9
  $region8: #{transformer_forward.25} parent=0 // pred_region
    _
  $region9: #{transformer_forward.25} parent=0 // pred_fallthru
    _
  // Predicated region
  $region10: #{transformer_forward.25} parent=0 // pred_check
    _
  $region11: #{transformer_forward.25} parent=0 // pred_check_branch
    %16 = sbr.rel (0) target = $region13
  $region12: #{transformer_forward.25} parent=0 // pred_region
    _
  $region13: #{transformer_forward.25} parent=0 // pred_fallthru
    _
  %p18 = scmp.eq.s32.totalorder 0, 0
  // Predicated region
  $region14: #{transformer_forward.25} parent=0 // pred_check
    %p19 = pneg %p18
  $region15: #{transformer_forward.25} parent=0 // pred_check_branch
    %21 = sbr.rel (%p19) target = $region17
  $region16: #{transformer_forward.25} parent=0 // pred_region
    %22 = vst [vmem:[#allocation2] sm:$0xff] 0.0
    %23 = vst [vmem:[#allocation2 + $0x8] sm:$0xff] 0.0
    %24 = vst [vmem:[#allocation2 + $0x10] sm:$0xff] 0.0
    %25 = vst [vmem:[#allocation2 + $0x18] sm:$0xff] 0.0
    %26 = vst [vmem:[#allocation2 + $0x20] sm:$0xff] 0.0
    %27 = vst [vmem:[#allocation2 + $0x28] sm:$0xff] 0.0
  $region17: #{transformer_forward.25} parent=0 // pred_fallthru
    _
  %v28 = vld [vmem:[#allocation2] sm:$0xff]
  %v29 = vld [vmem:[#allocation2 + $0x8] sm:$0xff]
  %v30 = vld [vmem:[#allocation2 + $0x10] sm:$0xff]
  %v31 = vld [vmem:[#allocation2 + $0x18] sm:$0xff]
  %v32 = vld [vmem:[#allocation2 + $0x20] sm:$0xff]
  %v33 = vld [vmem:[#allocation2 + $0x28] sm:$0xff]
  %v34 = vld [vmem:[%s0] sm:$0xff]
  %v35 = vld [vmem:[%s0 + $0x8] sm:$0xff]
  %v36 = vpack.c.bf16 %v35, %v34
  %v37 = vld [vmem:[%s1] sm:$0xff]
  %v38 = vld [vmem:[%s1 + $0x8] sm:$0xf]
  %v39 = vld [vmem:[%s1 + $0xc] sm:$0xff]
  %v40 = vld [vmem:[%s1 + $0x14] sm:$0xf]
  %v41 = vld [vmem:[%s1 + $0x18] sm:$0xff]
  %v42 = vld [vmem:[%s1 + $0x20] sm:$0xf]
  %v43 = vld [vmem:[%s1 + $0x24] sm:$0xff]
  %v44 = vld [vmem:[%s1 + $0x2c] sm:$0xf]
  %v45 = vld [vmem:[%s1 + $0x30] sm:$0xff]
  %v46 = vld [vmem:[%s1 + $0x38] sm:$0xf]
  %v47 = vld [vmem:[%s1 + $0x3c] sm:$0xff]
  %v48 = vld [vmem:[%s1 + $0x44] sm:$0xf]
  %v49 = vld [vmem:[%s1 + $0x48] sm:$0xff]
  %v50 = vld [vmem:[%s1 + $0x50] sm:$0xf]
  %v51 = vld [vmem:[%s1 + $0x54] sm:$0xff]
  %v52 = vld [vmem:[%s1 + $0x5c] sm:$0xf]
  %v53 = vld [vmem:[%s1 + $0x60] sm:$0xff]
  %v54 = vld [vmem:[%s1 + $0x68] sm:$0xf]
  %v55 = vld [vmem:[%s1 + $0x6c] sm:$0xff]
  %v56 = vld [vmem:[%s1 + $0x74] sm:$0xf]
  %v57 = vld [vmem:[%s1 + $0x78] sm:$0xff]
  %v58 = vld [vmem:[%s1 + $0x80] sm:$0xf]
  %v59 = vld [vmem:[%s1 + $0x84] sm:$0xff]
  %v60 = vld [vmem:[%s1 + $0x8c] sm:$0xf]
  %v61 = vld [vmem:[%s1 + $0x90] sm:$0xff]
  %v62 = vld [vmem:[%s1 + $0x98] sm:$0xf]
  %v63 = vld [vmem:[%s1 + $0x9c] sm:$0xff]
  %v64 = vld [vmem:[%s1 + $0xa4] sm:$0xf]
  %v65 = vld [vmem:[%s1 + $0xa8] sm:$0xff]
  %v66 = vld [vmem:[%s1 + $0xb0] sm:$0xf]
  %v67 = vld [vmem:[%s1 + $0xb4] sm:$0xff]
  %v68 = vld [vmem:[%s1 + $0xbc] sm:$0xf]
  %v101 = vunpack.c.l.b16 %v37
  %v102 = vunpack.c.h.b16 %v37
  %v103 = vunpack.c.l.b16 %v38
  %v104 = vunpack.c.l.b16 %v39
  %v105 = vunpack.c.h.b16 %v39
  %v106 = vunpack.c.l.b16 %v40
  %v107 = vunpack.c.l.b16 %v41
  %v108 = vunpack.c.h.b16 %v41
  %v109 = vunpack.c.l.b16 %v42
  %v110 = vunpack.c.l.b16 %v43
  %v111 = vunpack.c.h.b16 %v43
  %v112 = vunpack.c.l.b16 %v44
  %v113 = vunpack.c.l.b16 %v45
  %v114 = vunpack.c.h.b16 %v45
  %v115 = vunpack.c.l.b16 %v46
  %v116 = vunpack.c.l.b16 %v47
  %v117 = vunpack.c.h.b16 %v47
  %v118 = vunpack.c.l.b16 %v48
  %v119 = vunpack.c.l.b16 %v49
  %v120 = vunpack.c.h.b16 %v49
  %v121 = vunpack.c.l.b16 %v50
  %v122 = vunpack.c.l.b16 %v51
  %v123 = vunpack.c.h.b16 %v51
  %v124 = vunpack.c.l.b16 %v52
  %v125 = vunpack.c.l.b16 %v53
  %v126 = vunpack.c.h.b16 %v53
  %v127 = vunpack.c.l.b16 %v54
  %v128 = vunpack.c.l.b16 %v55
  %v129 = vunpack.c.h.b16 %v55
  %v130 = vunpack.c.l.b16 %v56
  %v131 = vunpack.c.l.b16 %v57
  %v132 = vunpack.c.h.b16 %v57
  %v133 = vunpack.c.l.b16 %v58
  %v134 = vunpack.c.l.b16 %v59
  %v135 = vunpack.c.h.b16 %v59
  %v136 = vunpack.c.l.b16 %v60
  %v137 = vunpack.c.l.b16 %v61
  %v138 = vunpack.c.h.b16 %v61
  %v139 = vunpack.c.l.b16 %v62
  %v140 = vunpack.c.l.b16 %v63
  %v141 = vunpack.c.h.b16 %v63
  %v142 = vunpack.c.l.b16 %v64
  %v143 = vunpack.c.l.b16 %v65
  %v144 = vunpack.c.h.b16 %v65
  %v145 = vunpack.c.l.b16 %v66
  %v146 = vunpack.c.l.b16 %v67
  %v147 = vunpack.c.h.b16 %v67
  %v148 = vunpack.c.l.b16 %v68
  %v149 = vpack.c.b16 %v104, %v101
  %v150 = vpack.c.b16 %v105, %v102
  %v151 = vpack.c.b16 %v106, %v103
  %v152 = vpack.c.b16 %v110, %v107
  %v153 = vpack.c.b16 %v111, %v108
  %v154 = vpack.c.b16 %v112, %v109
  %v155 = vpack.c.b16 %v116, %v113
  %v156 = vpack.c.b16 %v117, %v114
  %v157 = vpack.c.b16 %v118, %v115
  %v158 = vpack.c.b16 %v122, %v119
  %v159 = vpack.c.b16 %v123, %v120
  %v160 = vpack.c.b16 %v124, %v121
  %v161 = vpack.c.b16 %v128, %v125
  %v162 = vpack.c.b16 %v129, %v126
  %v163 = vpack.c.b16 %v130, %v127
  %v164 = vpack.c.b16 %v134, %v131
  %v165 = vpack.c.b16 %v135, %v132
  %v166 = vpack.c.b16 %v136, %v133
  %v167 = vpack.c.b16 %v140, %v137
  %v168 = vpack.c.b16 %v141, %v138
  %v169 = vpack.c.b16 %v142, %v139
  %v170 = vpack.c.b16 %v146, %v143
  %v171 = vpack.c.b16 %v147, %v144
  %v172 = vpack.c.b16 %v148, %v145
  %197 = vmatprep.subr.bf16.mxu0 %v150
  %198 = vmatpush1.bf16.msra.mxu0 %v149
  %199 = vmatprep.subr.bf16.mxu0 %v153
  %200 = vmatpush1.bf16.msra.mxu0 %v152
  %201 = vmatprep.subr.bf16.mxu0 %v156
  %202 = vmatpush1.bf16.msra.mxu0 %v155
  %203 = vmatprep.subr.bf16.mxu0 %v159
  %204 = vmatpush1.bf16.msra.mxu0 %v158
  %205 = vmatprep.subr.bf16.mxu0 %v162
  %206 = vmatpush1.bf16.msra.mxu0 %v161
  %207 = vmatprep.subr.bf16.mxu0 %v165
  %208 = vmatpush1.bf16.msra.mxu0 %v164
  %209 = vmatprep.subr.bf16.mxu0 %v168
  %210 = vmatpush1.bf16.msra.mxu0 %v167
  %211 = vmatprep.subr.bf16.mxu0 %v171
  %212 = vmatpush1.bf16.msra.mxu0 %v170
  %213 = vmatprep.subr.bf16.mxu0 0
  %214 = vmatpush1.bf16.msra.mxu0 0
  %215 = vmatprep.subr.bf16.mxu0 0
  %216 = vmatpush1.bf16.msra.mxu0 0
  %217 = vmatprep.subr.bf16.mxu0 0
  %218 = vmatpush1.bf16.msra.mxu0 0
  %219 = vmatprep.subr.bf16.mxu0 0
  %220 = vmatpush1.bf16.msra.mxu0 0
  %221 = vmatprep.subr.bf16.mxu0 0
  %222 = vmatpush1.bf16.msra.mxu0 0
  %223 = vmatprep.subr.bf16.mxu0 0
  %224 = vmatpush1.bf16.msra.mxu0 0
  %225 = vmatprep.subr.bf16.mxu0 0
  %226 = vmatpush1.bf16.msra.mxu0 0
  %227 = vmatprep.subr.bf16.mxu0 0
  %228 = vmatpush1.bf16.msra.mxu0 0
  %229 = vmatprep.mubr.bf16.mxu0 0
  %230 = vmatmul.mubr.bf16.gmra.mrb[0].mxu0 %v36
  %v231 = vpop.f32.mrb[0].mxu0
  %v232 = vadd.f32 0.0, %v231
  %v233 = vpop.f32.mrb[0].mxu0
  %v234 = vadd.f32 0.0, %v233
  %v235 = vpop.f32.mrb[0].mxu0
  %v236 = vadd.f32 0.0, %v235
  %v237 = vpop.f32.mrb[0].mxu0
  %v238 = vadd.f32 0.0, %v237
  %239 = vdwg.mxu0
  %240 = vmatprep.subr.bf16.mxu0 0
  %241 = vmatpush1.bf16.msra.mxu0 %v151
  %242 = vmatprep.subr.bf16.mxu0 0
  %243 = vmatpush1.bf16.msra.mxu0 %v154
  %244 = vmatprep.subr.bf16.mxu0 0
  %245 = vmatpush1.bf16.msra.mxu0 %v157
  %246 = vmatprep.subr.bf16.mxu0 0
  %247 = vmatpush1.bf16.msra.mxu0 %v160
  %248 = vmatprep.subr.bf16.mxu0 0
  %249 = vmatpush1.bf16.msra.mxu0 %v163
  %250 = vmatprep.subr.bf16.mxu0 0
  %251 = vmatpush1.bf16.msra.mxu0 %v166
  %252 = vmatprep.subr.bf16.mxu0 0
  %253 = vmatpush1.bf16.msra.mxu0 %v169
  %254 = vmatprep.subr.bf16.mxu0 0
  %255 = vmatpush1.bf16.msra.mxu0 %v172
  %256 = vmatprep.subr.bf16.mxu0 0
  %257 = vmatpush1.bf16.msra.mxu0 0
  %258 = vmatprep.subr.bf16.mxu0 0
  %259 = vmatpush1.bf16.msra.mxu0 0
  %260 = vmatprep.subr.bf16.mxu0 0
  %261 = vmatpush1.bf16.msra.mxu0 0
  %262 = vmatprep.subr.bf16.mxu0 0
  %263 = vmatpush1.bf16.msra.mxu0 0
  %264 = vmatprep.subr.bf16.mxu0 0
  %265 = vmatpush1.bf16.msra.mxu0 0
  %266 = vmatprep.subr.bf16.mxu0 0
  %267 = vmatpush1.bf16.msra.mxu0 0
  %268 = vmatprep.subr.bf16.mxu0 0
  %269 = vmatpush1.bf16.msra.mxu0 0
  %270 = vmatprep.subr.bf16.mxu0 0
  %271 = vmatpush1.bf16.msra.mxu0 0
  %272 = vmatprep.mubr.bf16.mxu0 0
  %273 = vmatmul.mubr.bf16.gmra.mrb[0].mxu0 %v36
  %v274 = vpop.f32.mrb[0].mxu0
  %v275 = vadd.f32 0.0, %v274
  %v276 = vpop.f32.mrb[0].mxu0
  %v277 = vpop.f32.mrb[0].mxu0
  %v278 = vadd.f32 0.0, %v277
  %v279 = vpop.f32.mrb[0].mxu0
  %280 = vdwg.mxu0
  %v281 = vadd.f32 %v28, %v232
  %v282 = vadd.f32 %v29, %v234
  %v283 = vadd.f32 %v30, %v275
  %v284 = vadd.f32 %v31, %v236
  %v285 = vadd.f32 %v32, %v238
  %v286 = vadd.f32 %v33, %v278
  %287 = vst [vmem:[#allocation2] sm:$0xff] %v281
  %288 = vst [vmem:[#allocation2 + $0x8] sm:$0xff] %v282
  %289 = vst [vmem:[#allocation2 + $0x10] sm:$0xff] %v283
  %290 = vst [vmem:[#allocation2 + $0x18] sm:$0xff] %v284
  %291 = vst [vmem:[#allocation2 + $0x20] sm:$0xff] %v285
  %292 = vst [vmem:[#allocation2 + $0x28] sm:$0xff] %v286
  // Predicated region
  $region18: #{transformer_forward.25} parent=0 // pred_check
    %p293 = pneg %p18
  $region19: #{transformer_forward.25} parent=0 // pred_check_branch
    %295 = sbr.rel (%p293) target = $region21
  $region20: #{transformer_forward.25} parent=0 // pred_region
    %v296 = vld [vmem:[#allocation2] sm:$0xff]
    %v297 = vld [vmem:[#allocation2 + $0x8] sm:$0xff]
    %v298 = vld [vmem:[#allocation2 + $0x10] sm:$0xff]
    %v299 = vld [vmem:[#allocation2 + $0x18] sm:$0xff]
    %v300 = vld [vmem:[#allocation2 + $0x20] sm:$0xff]
    %v301 = vld [vmem:[#allocation2 + $0x28] sm:$0xff]
    %v302 = vld [vmem:[%s2] sm:$0x7]
    %v304 = vlaneseq
    %v305 = vshrl.u32 %v304, 7
    %v306 = vsub.s32 0, %v305
    %v307 = vrot.slane %v302, %v306
    %v308 = vlaneseq
    %v309 = vshrl.u32 %v308, 7
    %v310 = vsub.s32 1, %v309
    %v311 = vrot.slane %v302, %v310
    %v312 = vlaneseq
    %v313 = vshrl.u32 %v312, 7
    %v314 = vsub.s32 2, %v313
    %v315 = vrot.slane %v302, %v314
    %v319 = vadd.f32 %v296, %v307
    %v320 = vadd.f32 %v297, %v311
    %v321 = vadd.f32 %v298, %v315
    %v322 = vadd.f32 %v299, %v307
    %v323 = vadd.f32 %v300, %v311
    %v324 = vadd.f32 %v301, %v315
    %v325 = vpack.c.bf16 %v322, %v319
    %v327 = vunpack.c.l.b16 %v325
    %v328 = vunpack.c.h.b16 %v325
    %v329 = vpack.c.b16 %v327, %v327
    %v330 = vpack.c.b16 %v328, %v328
    %333 = vst [vmem:[%s3] sm:$0xf] %v329
    %334 = vst [vmem:[%s3 + $0x4] sm:$0xf] %v330
    %v335 = vpack.c.bf16 %v323, %v320
    %v337 = vunpack.c.l.b16 %v335
    %v338 = vunpack.c.h.b16 %v335
    %v339 = vpack.c.b16 %v337, %v337
    %v340 = vpack.c.b16 %v338, %v338
    %343 = vst [vmem:[%s4] sm:$0xf] %v339
    %344 = vst [vmem:[%s4 + $0x4] sm:$0xf] %v340
    %v345 = vpack.c.bf16 %v324, %v321
    %v347 = vunpack.c.l.b16 %v345
    %v348 = vunpack.c.h.b16 %v345
    %v349 = vpack.c.b16 %v347, %v347
    %v350 = vpack.c.b16 %v348, %v348
    %353 = vst [vmem:[%s5] sm:$0xf] %v349
    %354 = vst [vmem:[%s5 + $0x4] sm:$0xf] %v350
  $region21: #{transformer_forward.25} parent=0 // pred_fallthru
    _
  // Predicated region
  $region22: #{transformer_forward.25} parent=0 // pred_check
    _
  $region23: #{transformer_forward.25} parent=0 // pred_check_branch
    %356 = sbr.rel (0) target = $region25
  $region24: #{transformer_forward.25} parent=0 // pred_region
    _
  $region25: #{transformer_forward.25} parent=0 // pred_fallthru
    _
  // Predicated region
  $region26: #{transformer_forward.25} parent=0 // pred_check
    _
  $region27: #{transformer_forward.25} parent=0 // pred_check_branch
    %358 = sbr.rel (0) target = $region29
  $region28: #{transformer_forward.25} parent=0 // pred_region
    _
  $region29: #{transformer_forward.25} parent=0 // pred_fallthru
    _
  // Predicated region
  $region30: #{transformer_forward.25} parent=0 // pred_check
    _
  $region31: #{transformer_forward.25} parent=0 // pred_check_branch
    %360 = sbr.rel (0) target = $region33
  $region32: #{transformer_forward.25} parent=0 // pred_region
    _
  $region33: #{transformer_forward.25} parent=0 // pred_fallthru
    _
  // Predicated region
  $region34: #{transformer_forward.25} parent=0 // pred_check
    _
  $region35: #{transformer_forward.25} parent=0 // pred_check_branch
    %362 = sbr.rel (0) target = $region37
  $region36: #{transformer_forward.25} parent=0 // pred_region
    _
  $region37: #{transformer_forward.25} parent=0 // pred_fallthru
    _
  // Predicated region
  $region38: #{transformer_forward.25} parent=0 // pred_check
    _
  $region39: #{transformer_forward.25} parent=0 // pred_check_branch
    %364 = sbr.rel (0) target = $region41
  $region40: #{transformer_forward.25} parent=0 // pred_region
    _
  $region41: #{transformer_forward.25} parent=0 // pred_fallthru
    _
  // Predicated region
  $region42: #{transformer_forward.25} parent=0 // pred_check
    _
  $region43: #{transformer_forward.25} parent=0 // pred_check_branch
    %366 = sbr.rel (0) target = $region45
  $region44: #{transformer_forward.25} parent=0 // pred_region
    _
  $region45: #{transformer_forward.25} parent=0 // pred_fallthru
    _

// kernel: transformer_forward.28
$region0: #{transformer_forward.28}
  #allocation0 [shape = 'u32[]', space=smem, size = 0x4, offset = 0x4, fixed_abs, tag = 'smem constant byte address 0x4 - core index']
  #allocation1 [shape = 'u32[144,128]{1,0:T(1,128)}', space=vmem, size = 0x12000, scoped, tag = 'internal scratch']
  #allocation2 [shape = 'f32[16,128]{1,0:T(8,128)}', space=vmem, size = 0x2000, scoped, tag = 'scratch operand']
  %s0 = inlined_call_operand.vmem [shape: f32[16,128], index: 0, kind: input, shape index: {}, may-alias: {0,5}]
  %s1 = inlined_call_operand.vmem [shape: bf16[128,256], index: 1, kind: input, shape index: {}]
  %s2 = inlined_call_operand.vmem [shape: f32[1,256], index: 2, kind: input, shape index: {}]
  %s3 = inlined_call_operand.vmem [shape: bf16[256,128], index: 3, kind: input, shape index: {}]
  %s4 = inlined_call_operand.vmem [shape: f32[1,128], index: 4, kind: input, shape index: {}]
  %s5 = inlined_call_operand.vmem [shape: f32[16,128], index: 5, kind: input, shape index: {}, may-alias: {0,5}]
  %s6 = inlined_call_operand.vmem [shape: f32[1,128], index: 6, kind: input, shape index: {}]
  %s7 = inlined_call_operand.vmem [shape: f32[1,128], index: 7, kind: input, shape index: {}]
  %s8 = inlined_call_operand.vmem [shape: f32[16,128], index: 8, kind: output, shape index: {}]
  %s9 = sld [smem:[#allocation0]]
  $region50: #{transformer_forward.28} parent=0
    _
  %s11 = ssub.s32 1, %s9
  %s12 = scalar_select 0, %s11, %s9
  // Predicated region
  $region2: #{transformer_forward.28} parent=0 // pred_check
    _
  $region3: #{transformer_forward.28} parent=0 // pred_check_branch
    %14 = sbr.rel (0) target = $region5
  $region4: #{transformer_forward.28} parent=0 // pred_region
    _
  $region5: #{transformer_forward.28} parent=0 // pred_fallthru
    _
  // Predicated region
  $region6: #{transformer_forward.28} parent=0 // pred_check
    _
  $region7: #{transformer_forward.28} parent=0 // pred_check_branch
    %16 = sbr.rel (0) target = $region9
  $region8: #{transformer_forward.28} parent=0 // pred_region
    _
  $region9: #{transformer_forward.28} parent=0 // pred_fallthru
    _
  // Predicated region
  $region10: #{transformer_forward.28} parent=0 // pred_check
    _
  $region11: #{transformer_forward.28} parent=0 // pred_check_branch
    %18 = sbr.rel (0) target = $region13
  $region12: #{transformer_forward.28} parent=0 // pred_region
    _
  $region13: #{transformer_forward.28} parent=0 // pred_fallthru
    _
  // Predicated region
  $region14: #{transformer_forward.28} parent=0 // pred_check
    _
  $region15: #{transformer_forward.28} parent=0 // pred_check_branch
    %20 = sbr.rel (0) target = $region17
  $region16: #{transformer_forward.28} parent=0 // pred_region
    _
  $region17: #{transformer_forward.28} parent=0 // pred_fallthru
    _
  // Predicated region
  $region18: #{transformer_forward.28} parent=0 // pred_check
    _
  $region19: #{transformer_forward.28} parent=0 // pred_check_branch
    %22 = sbr.rel (0) target = $region21
  $region20: #{transformer_forward.28} parent=0 // pred_region
    _
  $region21: #{transformer_forward.28} parent=0 // pred_fallthru
    _
  // Predicated region
  $region22: #{transformer_forward.28} parent=0 // pred_check
    _
  $region23: #{transformer_forward.28} parent=0 // pred_check_branch
    %24 = sbr.rel (0) target = $region25
  $region24: #{transformer_forward.28} parent=0 // pred_region
    _
  $region25: #{transformer_forward.28} parent=0 // pred_fallthru
    _
  // Predicated region
  $region26: #{transformer_forward.28} parent=0 // pred_check
    _
  $region27: #{transformer_forward.28} parent=0 // pred_check_branch
    %26 = sbr.rel (0) target = $region29
  $region28: #{transformer_forward.28} parent=0 // pred_region
    _
  $region29: #{transformer_forward.28} parent=0 // pred_fallthru
    _
  // Predicated region
  $region30: #{transformer_forward.28} parent=0 // pred_check
    _
  $region31: #{transformer_forward.28} parent=0 // pred_check_branch
    %28 = sbr.rel (0) target = $region33
  $region32: #{transformer_forward.28} parent=0 // pred_region
    _
  $region33: #{transformer_forward.28} parent=0 // pred_fallthru
    _
  %p30 = scmp.eq.s32.totalorder 0, 0
  // Predicated region
  $region34: #{transformer_forward.28} parent=0 // pred_check
    %p31 = pneg %p30
  $region35: #{transformer_forward.28} parent=0 // pred_check_branch
    %33 = sbr.rel (%p31) target = $region37
  $region36: #{transformer_forward.28} parent=0 // pred_region
    %34 = vst [vmem:[#allocation2] sm:$0xff] 0.0
    %35 = vst [vmem:[#allocation2 + $0x8] sm:$0xff] 0.0
  $region37: #{transformer_forward.28} parent=0 // pred_fallthru
    _
  %v36 = vld [vmem:[%s0] sm:$0xff]
  %v37 = vld [vmem:[%s0 + $0x8] sm:$0xff]
  %v38 = vpack.c.bf16 %v37, %v36
  %v39 = vld [vmem:[%s1] sm:$0xff]
  %v40 = vld [vmem:[%s1 + $0x8] sm:$0xff]
  %v41 = vld [vmem:[%s1 + $0x10] sm:$0xff]
  %v42 = vld [vmem:[%s1 + $0x18] sm:$0xff]
  %v43 = vld [vmem:[%s1 + $0x20] sm:$0xff]
  %v44 = vld [vmem:[%s1 + $0x28] sm:$0xff]
  %v45 = vld [vmem:[%s1 + $0x30] sm:$0xff]
  %v46 = vld [vmem:[%s1 + $0x38] sm:$0xff]
  %v47 = vld [vmem:[%s1 + $0x40] sm:$0xff]
  %v48 = vld [vmem:[%s1 + $0x48] sm:$0xff]
  %v49 = vld [vmem:[%s1 + $0x50] sm:$0xff]
  %v50 = vld [vmem:[%s1 + $0x58] sm:$0xff]
  %v51 = vld [vmem:[%s1 + $0x60] sm:$0xff]
  %v52 = vld [vmem:[%s1 + $0x68] sm:$0xff]
  %v53 = vld [vmem:[%s1 + $0x70] sm:$0xff]
  %v54 = vld [vmem:[%s1 + $0x78] sm:$0xff]
  %v55 = vld [vmem:[%s2] sm:$0x3]
  %v57 = vlaneseq
  %v58 = vshrl.u32 %v57, 7
  %v59 = vsub.s32 0, %v58
  %v60 = vrot.slane %v55, %v59
  %v61 = vlaneseq
  %v62 = vshrl.u32 %v61, 7
  %v63 = vsub.s32 1, %v62
  %v64 = vrot.slane %v55, %v63
  %v83 = vunpack.c.l.b16 %v39
  %v84 = vunpack.c.h.b16 %v39
  %v85 = vunpack.c.l.b16 %v40
  %v86 = vunpack.c.h.b16 %v40
  %v87 = vunpack.c.l.b16 %v41
  %v88 = vunpack.c.h.b16 %v41
  %v89 = vunpack.c.l.b16 %v42
  %v90 = vunpack.c.h.b16 %v42
  %v91 = vunpack.c.l.b16 %v43
  %v92 = vunpack.c.h.b16 %v43
  %v93 = vunpack.c.l.b16 %v44
  %v94 = vunpack.c.h.b16 %v44
  %v95 = vunpack.c.l.b16 %v45
  %v96 = vunpack.c.h.b16 %v45
  %v97 = vunpack.c.l.b16 %v46
  %v98 = vunpack.c.h.b16 %v46
  %v99 = vunpack.c.l.b16 %v47
  %v100 = vunpack.c.h.b16 %v47
  %v101 = vunpack.c.l.b16 %v48
  %v102 = vunpack.c.h.b16 %v48
  %v103 = vunpack.c.l.b16 %v49
  %v104 = vunpack.c.h.b16 %v49
  %v105 = vunpack.c.l.b16 %v50
  %v106 = vunpack.c.h.b16 %v50
  %v107 = vunpack.c.l.b16 %v51
  %v108 = vunpack.c.h.b16 %v51
  %v109 = vunpack.c.l.b16 %v52
  %v110 = vunpack.c.h.b16 %v52
  %v111 = vunpack.c.l.b16 %v53
  %v112 = vunpack.c.h.b16 %v53
  %v113 = vunpack.c.l.b16 %v54
  %v114 = vunpack.c.h.b16 %v54
  %v115 = vpack.c.b16 %v85, %v83
  %v116 = vpack.c.b16 %v86, %v84
  %v117 = vpack.c.b16 %v89, %v87
  %v118 = vpack.c.b16 %v90, %v88
  %v119 = vpack.c.b16 %v93, %v91
  %v120 = vpack.c.b16 %v94, %v92
  %v121 = vpack.c.b16 %v97, %v95
  %v122 = vpack.c.b16 %v98, %v96
  %v123 = vpack.c.b16 %v101, %v99
  %v124 = vpack.c.b16 %v102, %v100
  %v125 = vpack.c.b16 %v105, %v103
  %v126 = vpack.c.b16 %v106, %v104
  %v127 = vpack.c.b16 %v109, %v107
  %v128 = vpack.c.b16 %v110, %v108
  %v129 = vpack.c.b16 %v113, %v111
  %v130 = vpack.c.b16 %v114, %v112
  %147 = vmatprep.subr.bf16.mxu0 %v116
  %148 = vmatpush1.bf16.msra.mxu0 %v115
  %149 = vmatprep.subr.bf16.mxu0 %v118
  %150 = vmatpush1.bf16.msra.mxu0 %v117
  %151 = vmatprep.subr.bf16.mxu0 %v120
  %152 = vmatpush1.bf16.msra.mxu0 %v119
  %153 = vmatprep.subr.bf16.mxu0 %v122
  %154 = vmatpush1.bf16.msra.mxu0 %v121
  %155 = vmatprep.subr.bf16.mxu0 %v124
  %156 = vmatpush1.bf16.msra.mxu0 %v123
  %157 = vmatprep.subr.bf16.mxu0 %v126
  %158 = vmatpush1.bf16.msra.mxu0 %v125
  %159 = vmatprep.subr.bf16.mxu0 %v128
  %160 = vmatpush1.bf16.msra.mxu0 %v127
  %161 = vmatprep.subr.bf16.mxu0 %v130
  %162 = vmatpush1.bf16.msra.mxu0 %v129
  %163 = vmatprep.subr.bf16.mxu0 0
  %164 = vmatpush1.bf16.msra.mxu0 0
  %165 = vmatprep.subr.bf16.mxu0 0
  %166 = vmatpush1.bf16.msra.mxu0 0
  %167 = vmatprep.subr.bf16.mxu0 0
  %168 = vmatpush1.bf16.msra.mxu0 0
  %169 = vmatprep.subr.bf16.mxu0 0
  %170 = vmatpush1.bf16.msra.mxu0 0
  %171 = vmatprep.subr.bf16.mxu0 0
  %172 = vmatpush1.bf16.msra.mxu0 0
  %173 = vmatprep.subr.bf16.mxu0 0
  %174 = vmatpush1.bf16.msra.mxu0 0
  %175 = vmatprep.subr.bf16.mxu0 0
  %176 = vmatpush1.bf16.msra.mxu0 0
  %177 = vmatprep.subr.bf16.mxu0 0
  %178 = vmatpush1.bf16.msra.mxu0 0
  %179 = vmatprep.mubr.bf16.mxu0 0
  %180 = vmatmul.mubr.bf16.gmra.mrb[0].mxu0 %v38
  %v181 = vpop.f32.mrb[0].mxu0
  %v182 = vadd.f32 %v60, %v181
  %v183 = vpop.f32.mrb[0].mxu0
  %v184 = vadd.f32 %v64, %v183
  %v185 = vpop.f32.mrb[0].mxu0
  %v186 = vadd.f32 %v60, %v185
  %v187 = vpop.f32.mrb[0].mxu0
  %v188 = vadd.f32 %v64, %v187
  %189 = vdwg.mxu0
  %v190 = vmax.f32 %v182, 0.0
  %v191 = vmax.f32 %v184, 0.0
  %v192 = vmax.f32 %v186, 0.0
  %v193 = vmax.f32 %v188, 0.0
  %v194 = vld [vmem:[#allocation2] sm:$0xff]
  %v195 = vld [vmem:[#allocation2 + $0x8] sm:$0xff]
  %v196 = vpack.c.bf16 %v192, %v190
  %v197 = vpack.c.bf16 %v193, %v191
  %v198 = vld [vmem:[%s3] sm:$0xf]
  %v199 = vld [vmem:[%s3 + $0x4] sm:$0xf]
  %v200 = vld [vmem:[%s3 + $0x8] sm:$0xf]
  %v201 = vld [vmem:[%s3 + $0xc] sm:$0xf]
  %v202 = vld [vmem:[%s3 + $0x10] sm:$0xf]
  %v203 = vld [vmem:[%s3 + $0x14] sm:$0xf]
  %v204 = vld [vmem:[%s3 + $0x18] sm:$0xf]
  %v205 = vld [vmem:[%s3 + $0x1c] sm:$0xf]
  %v206 = vld [vmem:[%s3 + $0x20] sm:$0xf]
  %v207 = vld [vmem:[%s3 + $0x24] sm:$0xf]
  %v208 = vld [vmem:[%s3 + $0x28] sm:$0xf]
  %v209 = vld [vmem:[%s3 + $0x2c] sm:$0xf]
  %v210 = vld [vmem:[%s3 + $0x30] sm:$0xf]
  %v211 = vld [vmem:[%s3 + $0x34] sm:$0xf]
  %v212 = vld [vmem:[%s3 + $0x38] sm:$0xf]
  %v213 = vld [vmem:[%s3 + $0x3c] sm:$0xf]
  %v214 = vld [vmem:[%s3 + $0x40] sm:$0xf]
  %v215 = vld [vmem:[%s3 + $0x44] sm:$0xf]
  %v216 = vld [vmem:[%s3 + $0x48] sm:$0xf]
  %v217 = vld [vmem:[%s3 + $0x4c] sm:$0xf]
  %v218 = vld [vmem:[%s3 + $0x50] sm:$0xf]
  %v219 = vld [vmem:[%s3 + $0x54] sm:$0xf]
  %v220 = vld [vmem:[%s3 + $0x58] sm:$0xf]
  %v221 = vld [vmem:[%s3 + $0x5c] sm:$0xf]
  %v222 = vld [vmem:[%s3 + $0x60] sm:$0xf]
  %v223 = vld [vmem:[%s3 + $0x64] sm:$0xf]
  %v224 = vld [vmem:[%s3 + $0x68] sm:$0xf]
  %v225 = vld [vmem:[%s3 + $0x6c] sm:$0xf]
  %v226 = vld [vmem:[%s3 + $0x70] sm:$0xf]
  %v227 = vld [vmem:[%s3 + $0x74] sm:$0xf]
  %v228 = vld [vmem:[%s3 + $0x78] sm:$0xf]
  %v229 = vld [vmem:[%s3 + $0x7c] sm:$0xf]
  %v262 = vunpack.c.l.b16 %v198
  %v263 = vunpack.c.l.b16 %v199
  %v264 = vunpack.c.l.b16 %v200
  %v265 = vunpack.c.l.b16 %v201
  %v266 = vunpack.c.l.b16 %v202
  %v267 = vunpack.c.l.b16 %v203
  %v268 = vunpack.c.l.b16 %v204
  %v269 = vunpack.c.l.b16 %v205
  %v270 = vunpack.c.l.b16 %v206
  %v271 = vunpack.c.l.b16 %v207
  %v272 = vunpack.c.l.b16 %v208
  %v273 = vunpack.c.l.b16 %v209
  %v274 = vunpack.c.l.b16 %v210
  %v275 = vunpack.c.l.b16 %v211
  %v276 = vunpack.c.l.b16 %v212
  %v277 = vunpack.c.l.b16 %v213
  %v278 = vunpack.c.l.b16 %v214
  %v279 = vunpack.c.l.b16 %v215
  %v280 = vunpack.c.l.b16 %v216
  %v281 = vunpack.c.l.b16 %v217
  %v282 = vunpack.c.l.b16 %v218
  %v283 = vunpack.c.l.b16 %v219
  %v284 = vunpack.c.l.b16 %v220
  %v285 = vunpack.c.l.b16 %v221
  %v286 = vunpack.c.l.b16 %v222
  %v287 = vunpack.c.l.b16 %v223
  %v288 = vunpack.c.l.b16 %v224
  %v289 = vunpack.c.l.b16 %v225
  %v290 = vunpack.c.l.b16 %v226
  %v291 = vunpack.c.l.b16 %v227
  %v292 = vunpack.c.l.b16 %v228
  %v293 = vunpack.c.l.b16 %v229
  %v294 = vpack.c.b16 %v263, %v262
  %v295 = vpack.c.b16 %v265, %v264
  %v296 = vpack.c.b16 %v267, %v266
  %v297 = vpack.c.b16 %v269, %v268
  %v298 = vpack.c.b16 %v271, %v270
  %v299 = vpack.c.b16 %v273, %v272
  %v300 = vpack.c.b16 %v275, %v274
  %v301 = vpack.c.b16 %v277, %v276
  %v302 = vpack.c.b16 %v279, %v278
  %v303 = vpack.c.b16 %v281, %v280
  %v304 = vpack.c.b16 %v283, %v282
  %v305 = vpack.c.b16 %v285, %v284
  %v306 = vpack.c.b16 %v287, %v286
  %v307 = vpack.c.b16 %v289, %v288
  %v308 = vpack.c.b16 %v291, %v290
  %v309 = vpack.c.b16 %v293, %v292
  %326 = vmatprep.subr.bf16.mxu0 0
  %327 = vmatpush1.bf16.msra.mxu0 %v294
  %328 = vmatprep.subr.bf16.mxu0 0
  %329 = vmatpush1.bf16.msra.mxu0 %v295
  %330 = vmatprep.subr.bf16.mxu0 0
  %331 = vmatpush1.bf16.msra.mxu0 %v296
  %332 = vmatprep.subr.bf16.mxu0 0
  %333 = vmatpush1.bf16.msra.mxu0 %v297
  %334 = vmatprep.subr.bf16.mxu0 0
  %335 = vmatpush1.bf16.msra.mxu0 %v298
  %336 = vmatprep.subr.bf16.mxu0 0
  %337 = vmatpush1.bf16.msra.mxu0 %v299
  %338 = vmatprep.subr.bf16.mxu0 0
  %339 = vmatpush1.bf16.msra.mxu0 %v300
  %340 = vmatprep.subr.bf16.mxu0 0
  %341 = vmatpush1.bf16.msra.mxu0 %v301
  %342 = vmatprep.subr.bf16.mxu0 0
  %343 = vmatpush1.bf16.msra.mxu0 %v302
  %344 = vmatprep.subr.bf16.mxu0 0
  %345 = vmatpush1.bf16.msra.mxu0 %v303
  %346 = vmatprep.subr.bf16.mxu0 0
  %347 = vmatpush1.bf16.msra.mxu0 %v304
  %348 = vmatprep.subr.bf16.mxu0 0
  %349 = vmatpush1.bf16.msra.mxu0 %v305
  %350 = vmatprep.subr.bf16.mxu0 0
  %351 = vmatpush1.bf16.msra.mxu0 %v306
  %352 = vmatprep.subr.bf16.mxu0 0
  %353 = vmatpush1.bf16.msra.mxu0 %v307
  %354 = vmatprep.subr.bf16.mxu0 0
  %355 = vmatpush1.bf16.msra.mxu0 %v308
  %356 = vmatprep.subr.bf16.mxu0 0
  %357 = vmatpush1.bf16.msra.mxu0 %v309
  %358 = vmatprep.mubr.bf16.mxu0 %v197
  %359 = vmatmul.mubr.bf16.gmra.mrb[0].mxu0 %v196
  %v360 = vpop.f32.mrb[0].mxu0
  %v361 = vadd.f32 0.0, %v360
  %v362 = vpop.f32.mrb[0].mxu0
  %v363 = vpop.f32.mrb[0].mxu0
  %v364 = vadd.f32 0.0, %v363
  %v365 = vpop.f32.mrb[0].mxu0
  %366 = vdwg.mxu0
  %v367 = vadd.f32 %v194, %v361
  %v368 = vadd.f32 %v195, %v364
  %369 = vst [vmem:[#allocation2] sm:$0xff] %v367
  %370 = vst [vmem:[#allocation2 + $0x8] sm:$0xff] %v368
  // Predicated region
  $region38: #{transformer_forward.28} parent=0 // pred_check
    %p371 = pneg %p30
  $region39: #{transformer_forward.28} parent=0 // pred_check_branch
    %373 = sbr.rel (%p371) target = $region41
  $region40: #{transformer_forward.28} parent=0 // pred_region
    %v374 = vld [vmem:[#allocation2] sm:$0xff]
    %v375 = vld [vmem:[#allocation2 + $0x8] sm:$0xff]
    %v376 = vld [vmem:[%s4] sm:$0x1]
    %v378 = vlaneseq
    %v379 = vshrl.u32 %v378, 7
    %v380 = vsub.s32 0, %v379
    %v381 = vrot.slane %v376, %v380
    %v383 = vadd.f32 %v374, %v381
    %v384 = vadd.f32 %v375, %v381
    %v385 = vld [vmem:[%s5] sm:$0xff]
    %v386 = vld [vmem:[%s5 + $0x8] sm:$0xff]
    %v387 = vadd.f32 %v383, %v385
    %v388 = vadd.f32 %v384, %v386
    %389 = vadd.xlane.f32.xlu0 %v387
    %v390 = vpop.xlane.xlu0 %389
    %391 = vadd.xlane.f32.xlu0 %v388
    %v392 = vpop.xlane.xlu0 %391
    %v393 = vrcp.pop 128.0
    %v394 = vmul.f32 %v390, %v393
    %v395 = vmul.f32 %v392, %v393
    %v396 = vsub.f32 %v387, %v394
    %v397 = vsub.f32 %v388, %v395
    %v398 = vmul.f32 %v396, %v396
    %v399 = vmul.f32 %v397, %v397
    %400 = vadd.xlane.f32.xlu0 %v398
    %v401 = vpop.xlane.xlu0 %400
    %402 = vadd.xlane.f32.xlu0 %v399
    %v403 = vpop.xlane.xlu0 %402
    %v404 = vmul.f32 %v401, %v393
    %v405 = vmul.f32 %v403, %v393
    %v406 = vadd.f32 %v404, 1e-05
    %v407 = vadd.f32 %v405, 1e-05
    %v408 = vrsqrt.pop %v406
    %v409 = vrsqrt.pop %v407
    %v410 = vmul.f32 %v396, %v408
    %v411 = vmul.f32 %v397, %v409
    %v412 = vld [vmem:[%s6] sm:$0x1]
    %v414 = vlaneseq
    %v415 = vshrl.u32 %v414, 7
    %v416 = vsub.s32 0, %v415
    %v417 = vrot.slane %v412, %v416
    %v419 = vmul.f32 %v410, %v417
    %v420 = vmul.f32 %v411, %v417
    %v421 = vld [vmem:[%s7] sm:$0x1]
    %v423 = vlaneseq
    %v424 = vshrl.u32 %v423, 7
    %v425 = vsub.s32 0, %v424
    %v426 = vrot.slane %v421, %v425
    %v428 = vadd.f32 %v419, %v426
    %v429 = vadd.f32 %v420, %v426
    %430 = vst [vmem:[%s8] sm:$0xff] %v428
    %431 = vst [vmem:[%s8 + $0x8] sm:$0xff] %v429
  $region41: #{transformer_forward.28} parent=0 // pred_fallthru
    _
  // Predicated region
  $region42: #{transformer_forward.28} parent=0 // pred_check
    _
  $region43: #{transformer_forward.28} parent=0 // pred_check_branch
    %433 = sbr.rel (0) target = $region45
  $region44: #{transformer_forward.28} parent=0 // pred_region
    _
  $region45: #{transformer_forward.28} parent=0 // pred_fallthru
    _
  // Predicated region
  $region46: #{transformer_forward.28} parent=0 // pred_check
    _
  $region47: #{transformer_forward.28} parent=0 // pred_check_branch
    %435 = sbr.rel (0) target = $region49
  $region48: #{transformer_forward.28} parent=0 // pred_region
    _
  $region49: #{transformer_forward.28} parent=0 // pred_fallthru
    _

// kernel: transformer_forward.26
$region0: #{transformer_forward.26}
  #allocation0 [shape = 'u32[]', space=smem, size = 0x4, offset = 0x4, fixed_abs, tag = 'smem constant byte address 0x4 - core index']
  #allocation1 [shape = 'u32[144,128]{1,0:T(1,128)}', space=vmem, size = 0x12000, scoped, tag = 'internal scratch']
  #allocation2 [shape = 'f32[4,8,1]{2,1,0:T(8,128)}', space=vmem, size = 0x4000, scoped, tag = 'scratch operand']
  #allocation3 [shape = 'f32[4,8,1]{2,1,0:T(8,128)}', space=vmem, size = 0x4000, scoped, tag = 'scratch operand']
  #allocation4 [shape = 'f32[4,8,32]{2,1,0:T(8,128)}', space=vmem, size = 0x4000, scoped, tag = 'scratch operand']
  %s0 = inlined_call_operand.vmem [shape: bf16[2,8,128], index: 0, kind: input, shape index: {}]
  %s1 = inlined_call_operand.vmem [shape: bf16[2,8,128], index: 1, kind: input, shape index: {}]
  %s2 = inlined_call_operand.vmem [shape: bf16[2,8,128], index: 2, kind: input, shape index: {}]
  %s3 = inlined_call_operand.vmem [shape: s32[2,1,8], index: 3, kind: input, shape index: {}]
  %s4 = inlined_call_operand.vmem [shape: bf16[2,8,128], index: 4, kind: output, shape index: {}]
  %s5 = sld [smem:[#allocation0]]
  $region57: #{transformer_forward.26} parent=0
    _
  %s7 = ssub.s32 1, %s5
  %s8 = scalar_select 0, %s7, %s5
  loop: start=0, step=1, limit=4
  $region2: #{transformer_forward.26} parent=0 // loop_pre_header
    _
  $region3: #{transformer_forward.26} parent=0 // loop_header
    %s10 = sphi 0, %s14
    %p11 = scmp.ge.s32.totalorder %s10, 4
    %s17 = sphi 0, %s43
    %s18 = sphi 0, %s39
    %s19 = sphi 0, %s35
    %s20 = sphi 0, %s31
    %s21 = sphi 0, %s17
    %s22 = sphi 0, %s18
    %s23 = sphi 0, %s19
    %s24 = sphi 0, %s20
    %s25 = sphi 0, %s21
    %s26 = sphi 0, %s22
    %s27 = sphi 0, %s23
    %s28 = sphi 0, %s24
    %s50 = sphi 0, %s52
    %s53 = sphi 0, %s50
    %s54 = sphi 0, %s53
    %s70 = sphi 0, %s54
    %s80 = sphi 0, %s82
    %s83 = sphi 0, %s80
    %s84 = sphi 0, %s83
    %s100 = sphi 0, %s84
    %s110 = sphi 0, %s112
    %s113 = sphi 0, %s110
    %s114 = sphi 0, %s113
    %s130 = sphi 0, %s114
    %s138 = sphi 0, %s140
    %s141 = sphi 0, %s138
    %s142 = sphi 0, %s141
    %s158 = sphi 0, %s142
    %s168 = sphi 0, %s170
    %s171 = sphi 0, %s168
    %s172 = sphi 0, %s171
    %s188 = sphi 0, %s172
  $region4: #{transformer_forward.26} parent=0 // loop_header_branch
    %13 = sbr.rel (%p11) target = $region8
  $region5: #{transformer_forward.26} parent=0 // loop_body
    %s15 = ssub.s32 %s10, 1
    %s16 = ssub.s32 %s10, 2
    %s29 = sadd.s32 1, %s20
    %p30 = scmp.ge.s32.totalorder %s29, 1
    %s31 = scalar_select %p30, 0, %s29
    %s32 = sadd.s32 1, %s19
    %s33 = scalar_select %p30, %s32, %s19
    %p34 = scmp.ge.s32.totalorder %s33, 1
    %s35 = scalar_select %p34, 0, %s33
    %s36 = sadd.s32 1, %s18
    %s37 = scalar_select %p34, %s36, %s18
    %p38 = scmp.ge.s32.totalorder %s37, 1
    %s39 = scalar_select %p38, 0, %s37
    %s40 = sadd.s32 1, %s17
    %s41 = scalar_select %p38, %s40, %s17
    %p42 = scmp.ge.s32.totalorder %s41, 2
    %s43 = scalar_select %p42, 0, %s41
    %s44 = ssub.s32 %s17, %s43
    %s45 = ssub.s32 %s19, %s35
    %s46 = sor.u32 %s44, %s45
    %s47 = ssub.s32 %s18, %s39
    %s48 = sor.u32 %s46, %s47
    %p49 = scmp.eq.s32.totalorder %s48, 0
    %s51 = sadd.s32 %s50, 1
    %s52 = scalar_select %p49, %s50, %s51
    %p55 = pneg %p49
    %p56 = scmp.eq.s32.totalorder %s10, 1
    %p57 = por %p55, %p56
    %p58 = scmp.ne.s32.totalorder %s50, %s53
    %p59 = scmp.eq.s32.totalorder %s10, 0
    %p60 = por %p58, %p59
    %p61 = scmp.ne.s32.totalorder %s50, %s53
    %p62 = scmp.eq.s32.totalorder %s15, 1
    %p63 = por %p61, %p62
    %p64 = scmp.ne.s32.totalorder %s53, %s54
    %p65 = scmp.eq.s32.totalorder %s15, 0
    %p66 = por %p64, %p65
    %p67 = scmp.ne.s32.totalorder %s53, %s54
    %p68 = scmp.eq.s32.totalorder %s16, 1
    %p69 = por %p67, %p68
    %p71 = scmp.ne.s32.totalorder %s54, %s70
    %p72 = scmp.eq.s32.totalorder %s16, 0
    %p73 = por %p71, %p72
    %s74 = ssub.s32 %s17, %s43
    %s75 = ssub.s32 %s20, %s31
    %s76 = sor.u32 %s74, %s75
    %s77 = ssub.s32 %s18, %s39
    %s78 = sor.u32 %s76, %s77
    %p79 = scmp.eq.s32.totalorder %s78, 0
    %s81 = sadd.s32 %s80, 1
    %s82 = scalar_select %p79, %s80, %s81
    %p85 = pneg %p79
    %p86 = scmp.eq.s32.totalorder %s10, 1
    %p87 = por %p85, %p86
    %p88 = scmp.ne.s32.totalorder %s80, %s83
    %p89 = scmp.eq.s32.totalorder %s10, 0
    %p90 = por %p88, %p89
    %p91 = scmp.ne.s32.totalorder %s80, %s83
    %p92 = scmp.eq.s32.totalorder %s15, 1
    %p93 = por %p91, %p92
    %p94 = scmp.ne.s32.totalorder %s83, %s84
    %p95 = scmp.eq.s32.totalorder %s15, 0
    %p96 = por %p94, %p95
    %p97 = scmp.ne.s32.totalorder %s83, %s84
    %p98 = scmp.eq.s32.totalorder %s16, 1
    %p99 = por %p97, %p98
    %p101 = scmp.ne.s32.totalorder %s84, %s100
    %p102 = scmp.eq.s32.totalorder %s16, 0
    %p103 = por %p101, %p102
    %s104 = ssub.s32 %s17, %s43
    %s105 = ssub.s32 %s20, %s31
    %s106 = sor.u32 %s104, %s105
    %s107 = ssub.s32 %s18, %s39
    %s108 = sor.u32 %s106, %s107
    %p109 = scmp.eq.s32.totalorder %s108, 0
    %s111 = sadd.s32 %s110, 1
    %s112 = scalar_select %p109, %s110, %s111
    %p115 = pneg %p109
    %p116 = scmp.eq.s32.totalorder %s10, 1
    %p117 = por %p115, %p116
    %p118 = scmp.ne.s32.totalorder %s110, %s113
    %p119 = scmp.eq.s32.totalorder %s10, 0
    %p120 = por %p118, %p119
    %p121 = scmp.ne.s32.totalorder %s110, %s113
    %p122 = scmp.eq.s32.totalorder %s15, 1
    %p123 = por %p121, %p122
    %p124 = scmp.ne.s32.totalorder %s113, %s114
    %p125 = scmp.eq.s32.totalorder %s15, 0
    %p126 = por %p124, %p125
    %p127 = scmp.ne.s32.totalorder %s113, %s114
    %p128 = scmp.eq.s32.totalorder %s16, 1
    %p129 = por %p127, %p128
    %p131 = scmp.ne.s32.totalorder %s114, %s130
    %p132 = scmp.eq.s32.totalorder %s16, 0
    %p133 = por %p131, %p132
    %s134 = ssub.s32 %s17, %s43
    %s135 = ssub.s32 %s20, %s31
    %s136 = sor.u32 %s134, %s135
    %p137 = scmp.eq.s32.totalorder %s136, 0
    %s139 = sadd.s32 %s138, 1
    %s140 = scalar_select %p137, %s138, %s139
    %p143 = pneg %p137
    %p144 = scmp.eq.s32.totalorder %s10, 1
    %p145 = por %p143, %p144
    %p146 = scmp.ne.s32.totalorder %s138, %s141
    %p147 = scmp.eq.s32.totalorder %s10, 0
    %p148 = por %p146, %p147
    %p149 = scmp.ne.s32.totalorder %s138, %s141
    %p150 = scmp.eq.s32.totalorder %s15, 1
    %p151 = por %p149, %p150
    %p152 = scmp.ne.s32.totalorder %s141, %s142
    %p153 = scmp.eq.s32.totalorder %s15, 0
    %p154 = por %p152, %p153
    %p155 = scmp.ne.s32.totalorder %s141, %s142
    %p156 = scmp.eq.s32.totalorder %s16, 1
    %p157 = por %p155, %p156
    %p159 = scmp.ne.s32.totalorder %s142, %s158
    %p160 = scmp.eq.s32.totalorder %s16, 0
    %p161 = por %p159, %p160
    %s162 = ssub.s32 %s17, %s43
    %s163 = ssub.s32 %s19, %s35
    %s164 = sor.u32 %s162, %s163
    %s165 = ssub.s32 %s18, %s39
    %s166 = sor.u32 %s164, %s165
    %p167 = scmp.eq.s32.totalorder %s166, 0
    %s169 = sadd.s32 %s168, 1
    %s170 = scalar_select %p167, %s168, %s169
    %p173 = pneg %p167
    %p174 = scmp.eq.s32.totalorder %s10, 1
    %p175 = por %p173, %p174
    %p176 = scmp.ne.s32.totalorder %s168, %s171
    %p177 = scmp.eq.s32.totalorder %s10, 0
    %p178 = por %p176, %p177
    %p179 = scmp.ne.s32.totalorder %s168, %s171
    %p180 = scmp.eq.s32.totalorder %s15, 1
    %p181 = por %p179, %p180
    %p182 = scmp.ne.s32.totalorder %s171, %s172
    %p183 = scmp.eq.s32.totalorder %s15, 0
    %p184 = por %p182, %p183
    %p185 = scmp.ne.s32.totalorder %s171, %s172
    %p186 = scmp.eq.s32.totalorder %s16, 1
    %p187 = por %p185, %p186
    %p189 = scmp.ne.s32.totalorder %s172, %s188
    %p190 = scmp.eq.s32.totalorder %s16, 0
    %p191 = por %p189, %p190
    %p192 = scmp.le.s32.totalorder 1, %s10
    %p193 = scmp.lt.s32.totalorder %s10, 3
    %p194 = pnand %p192, %p193
    %p195 = pneg %p194
    // Predicated region
    $region9: #{transformer_forward.26} parent=5 // pred_check
      _
    $region10: #{transformer_forward.26} parent=5 // pred_check_branch
      %197 = sbr.rel (%p194) target = $region12
    $region11: #{transformer_forward.26} parent=5 // pred_region
      %s198 = ssub.s32 %s10, 1
    $region12: #{transformer_forward.26} parent=5 // pred_fallthru
      _
    %p199 = scmp.lt.s32.totalorder %s10, 2
    // Predicated region
    $region13: #{transformer_forward.26} parent=5 // pred_check
      %p200 = pneg %p199
    $region14: #{transformer_forward.26} parent=5 // pred_check_branch
      %202 = sbr.rel (%p200) target = $region16
    $region15: #{transformer_forward.26} parent=5 // pred_region
      // Predicated region
      $region17: #{transformer_forward.26} parent=15 // pred_check
        %p203 = pneg %p60
      $region18: #{transformer_forward.26} parent=15 // pred_check_branch
        %205 = sbr.rel (%p203) target = $region20
      $region19: #{transformer_forward.26} parent=15 // pred_region
        %p206 = scmp.lt.s32.totalorder %s17, 1
        %s207 = scalar_select %p206, %s17, 1
        %p208 = scmp.lt.s32.totalorder %s19, 0
        %s209 = scalar_select %p208, %s19, 0
        %p210 = scmp.lt.s32.totalorder %s18, 0
        %s211 = scalar_select %p210, %s18, 0
        %s212 = sadd.s32 %s211, %s209
        %s213 = sadd.s32 %s212, %s207
        %s214 = smul.addr %s213, 4
        %s215 = scalar_lea.vmem %s0, %s214
      $region20: #{transformer_forward.26} parent=15 // pred_fallthru
        _
      // Predicated region
      $region21: #{transformer_forward.26} parent=15 // pred_check
        %p216 = pneg %p90
      $region22: #{transformer_forward.26} parent=15 // pred_check_branch
        %218 = sbr.rel (%p216) target = $region24
      $region23: #{transformer_forward.26} parent=15 // pred_region
        %p219 = scmp.lt.s32.totalorder %s17, 1
        %s220 = scalar_select %p219, %s17, 1
        %p221 = scmp.lt.s32.totalorder %s20, 0
        %s222 = scalar_select %p221, %s20, 0
        %p223 = scmp.lt.s32.totalorder %s18, 0
        %s224 = scalar_select %p223, %s18, 0
        %s225 = sadd.s32 %s224, %s222
        %s226 = sadd.s32 %s225, %s220
        %s227 = smul.addr %s226, 4
        %s228 = scalar_lea.vmem %s1, %s227
      $region24: #{transformer_forward.26} parent=15 // pred_fallthru
        _
      // Predicated region
      $region25: #{transformer_forward.26} parent=15 // pred_check
        %p229 = pneg %p120
      $region26: #{transformer_forward.26} parent=15 // pred_check_branch
        %231 = sbr.rel (%p229) target = $region28
      $region27: #{transformer_forward.26} parent=15 // pred_region
        %p232 = scmp.lt.s32.totalorder %s17, 1
        %s233 = scalar_select %p232, %s17, 1
        %p234 = scmp.lt.s32.totalorder %s20, 0
        %s235 = scalar_select %p234, %s20, 0
        %p236 = scmp.lt.s32.totalorder %s18, 0
        %s237 = scalar_select %p236, %s18, 0
        %s238 = sadd.s32 %s237, %s235
        %s239 = sadd.s32 %s238, %s233
        %s240 = smul.addr %s239, 4
        %s241 = scalar_lea.vmem %s2, %s240
      $region28: #{transformer_forward.26} parent=15 // pred_fallthru
        _
      // Predicated region
      $region29: #{transformer_forward.26} parent=15 // pred_check
        %p242 = pneg %p148
      $region30: #{transformer_forward.26} parent=15 // pred_check_branch
        %244 = sbr.rel (%p242) target = $region32
      $region31: #{transformer_forward.26} parent=15 // pred_region
        %p245 = scmp.lt.s32.totalorder %s17, 1
        %s246 = scalar_select %p245, %s17, 1
        %p247 = scmp.lt.s32.totalorder %s20, 0
        %s248 = scalar_select %p247, %s20, 0
        %s249 = sadd.s32 %s248, %s246
        %s250 = scalar_lea.vmem %s3, %s249
      $region32: #{transformer_forward.26} parent=15 // pred_fallthru
        _
    $region16: #{transformer_forward.26} parent=5 // pred_fallthru
      _
    %p251 = scmp.le.s32.totalorder 1, %s10
    %p252 = scmp.lt.s32.totalorder %s10, 3
    %p253 = pnand %p251, %p252
    %p254 = pneg %p253
    // Predicated region
    $region33: #{transformer_forward.26} parent=5 // pred_check
      _
    $region34: #{transformer_forward.26} parent=5 // pred_check_branch
      %256 = sbr.rel (%p253) target = $region36
    $region35: #{transformer_forward.26} parent=5 // pred_region
      %s257 = ssub.s32 %s10, 1
      %p258 = scmp.lt.s32.totalorder %s21, 1
      %s259 = scalar_select %p258, %s21, 1
      %p260 = scmp.lt.s32.totalorder %s23, 0
      %s261 = scalar_select %p260, %s23, 0
      %p262 = scmp.lt.s32.totalorder %s22, 0
      %s263 = scalar_select %p262, %s22, 0
      %s264 = sadd.s32 %s263, %s261
      %s265 = sadd.s32 %s264, %s259
      %s266 = smul.addr %s265, 4
      %s267 = scalar_lea.vmem %s0, %s266
      %p268 = pneg %p66
      %p269 = pneg %p63
      %p270 = scmp.lt.s32.totalorder %s21, 1
      %s271 = scalar_select %p270, %s21, 1
      %p272 = scmp.lt.s32.totalorder %s24, 0
      %s273 = scalar_select %p272, %s24, 0
      %p274 = scmp.lt.s32.totalorder %s22, 0
      %s275 = scalar_select %p274, %s22, 0
      %s276 = sadd.s32 %s275, %s273
      %s277 = sadd.s32 %s276, %s271
      %s278 = smul.addr %s277, 4
      %s279 = scalar_lea.vmem %s1, %s278
      %p280 = pneg %p96
      %p281 = pneg %p93
      %p282 = scmp.lt.s32.totalorder %s21, 1
      %s283 = scalar_select %p282, %s21, 1
      %p284 = scmp.lt.s32.totalorder %s24, 0
      %s285 = scalar_select %p284, %s24, 0
      %p286 = scmp.lt.s32.totalorder %s22, 0
      %s287 = scalar_select %p286, %s22, 0
      %s288 = sadd.s32 %s287, %s285
      %s289 = sadd.s32 %s288, %s283
      %s290 = smul.addr %s289, 4
      %s291 = scalar_lea.vmem %s2, %s290
      %p292 = pneg %p126
      %p293 = pneg %p123
      %p294 = scmp.lt.s32.totalorder %s21, 1
      %s295 = scalar_select %p294, %s21, 1
      %p296 = scmp.lt.s32.totalorder %s24, 0
      %s297 = scalar_select %p296, %s24, 0
      %s298 = sadd.s32 %s297, %s295
      %s299 = scalar_lea.vmem %s3, %s298
      %p300 = pneg %p154
      %p301 = pneg %p151
      %p302 = pneg %p184
      %p303 = pneg %p181
      %p304 = scmp.lt.s32.totalorder %s21, 1
      %s305 = scalar_select %p304, %s21, 1
      %p306 = scmp.lt.s32.totalorder %s23, 0
      %s307 = scalar_select %p306, %s23, 0
      %p308 = scmp.lt.s32.totalorder %s22, 0
      %s309 = scalar_select %p308, %s22, 0
      %s310 = sadd.s32 %s309, %s307
      %s311 = sadd.s32 %s310, %s305
      %s312 = smul.addr %s311, 4
      %s313 = scalar_lea.vmem %s4, %s312
      %p314 = scmp.lt.s32.totalorder %s21, 1
      %s315 = scalar_select %p314, %s21, 1
      %p316 = scmp.lt.s32.totalorder %s23, 0
      %s317 = scalar_select %p316, %s23, 0
      %p318 = scmp.lt.s32.totalorder %s22, 0
      %s319 = scalar_select %p318, %s22, 0
      %s320 = sadd.s32 %s319, %s317
      %s321 = sadd.s32 %s320, %s315
      %s322 = smul.addr %s321, 4
      %s323 = scalar_lea.vmem %s0, %s322
      %p324 = scmp.lt.s32.totalorder %s21, 1
      %s325 = scalar_select %p324, %s21, 1
      %p326 = scmp.lt.s32.totalorder %s24, 0
      %s327 = scalar_select %p326, %s24, 0
      %p328 = scmp.lt.s32.totalorder %s22, 0
      %s329 = scalar_select %p328, %s22, 0
      %s330 = sadd.s32 %s329, %s327
      %s331 = sadd.s32 %s330, %s325
      %s332 = smul.addr %s331, 4
      %s333 = scalar_lea.vmem %s1, %s332
      %p334 = scmp.lt.s32.totalorder %s21, 1
      %s335 = scalar_select %p334, %s21, 1
      %p336 = scmp.lt.s32.totalorder %s24, 0
      %s337 = scalar_select %p336, %s24, 0
      %p338 = scmp.lt.s32.totalorder %s22, 0
      %s339 = scalar_select %p338, %s22, 0
      %s340 = sadd.s32 %s339, %s337
      %s341 = sadd.s32 %s340, %s335
      %s342 = smul.addr %s341, 4
      %s343 = scalar_lea.vmem %s2, %s342
      %p344 = scmp.lt.s32.totalorder %s21, 1
      %s345 = scalar_select %p344, %s21, 1
      %p346 = scmp.lt.s32.totalorder %s24, 0
      %s347 = scalar_select %p346, %s24, 0
      %s348 = sadd.s32 %s347, %s345
      %s349 = scalar_lea.vmem %s3, %s348
      %p350 = scmp.lt.s32.totalorder %s21, 1
      %s351 = scalar_select %p350, %s21, 1
      %p352 = scmp.lt.s32.totalorder %s23, 0
      %s353 = scalar_select %p352, %s23, 0
      %p354 = scmp.lt.s32.totalorder %s22, 0
      %s355 = scalar_select %p354, %s22, 0
      %s356 = sadd.s32 %s355, %s353
      %s357 = sadd.s32 %s356, %s351
      %s358 = smul.addr %s357, 4
      %s359 = scalar_lea.vmem %s4, %s358
      %p361 = scmp.eq.s32.totalorder %s24, 0
      // Predicated region
      $region37: #{transformer_forward.26} parent=35 // pred_check
        %p362 = pneg %p361
      $region38: #{transformer_forward.26} parent=35 // pred_check_branch
        %364 = sbr.rel (%p362) target = $region40
      $region39: #{transformer_forward.26} parent=35 // pred_region
        %vm365 = vcmask 7168
        %366 = vst.msk [vmem:[#allocation2] sm:$0xff] %vm365, -inf
        %367 = vst.msk [vmem:[#allocation2 + $0x8] sm:$0xff] %vm365, -inf
        %368 = vst.msk [vmem:[#allocation2 + $0x10] sm:$0xff] %vm365, -inf
        %369 = vst.msk [vmem:[#allocation2 + $0x18] sm:$0xff] %vm365, -inf
        %370 = vst.msk [vmem:[#allocation3] sm:$0xff] %vm365, 0.0
        %371 = vst.msk [vmem:[#allocation3 + $0x8] sm:$0xff] %vm365, 0.0
        %372 = vst.msk [vmem:[#allocation3 + $0x10] sm:$0xff] %vm365, 0.0
        %373 = vst.msk [vmem:[#allocation3 + $0x18] sm:$0xff] %vm365, 0.0
        %vm374 = vcmask 261120
        %375 = vst.msk [vmem:[#allocation4] sm:$0xff] %vm374, 0.0
        %376 = vst.msk [vmem:[#allocation4 + $0x8] sm:$0xff] %vm374, 0.0
        %377 = vst.msk [vmem:[#allocation4 + $0x10] sm:$0xff] %vm374, 0.0
        %378 = vst.msk [vmem:[#allocation4 + $0x18] sm:$0xff] %vm374, 0.0
      $region40: #{transformer_forward.26} parent=35 // pred_fallthru
        _
      %v379 = vld [vmem:[%s323] sm:$0xf]
      %v380 = vld [vmem:[%s333] sm:$0xf]
      %v381 = vld [vmem:[%s343] sm:$0xf]
      %v382 = vld [vmem:[%s349] sm:$0x1]
      %vm383 = vcmp.ne.s32.totalorder %v382, 0
      %v384 = vsel %vm383, 1, 0
      %v385 = vlaneseq
      %v386 = vshrl.u32 %v385, 7
      %v387 = vsub.s32 0, %v386
      %v388 = vrot.slane %v384, %v387
      %vm389 = vcmp.eq.s32.totalorder %v388, 1
      %vm390 = vcmask 261120
      %v392 = vsel %vm390, %v379, 0
      %v395 = vsel %vm390, %v380, 0
      %397 = vmatprep.subr.bf16.mxu0 0
      %398 = vmatpush1.bf16.xpose.msra.mxu0 %v395
      %399 = vmatprep.subr.bf16.mxu0 0
      %400 = vmatpush1.bf16.xpose.msra.mxu0 0
      %401 = vmatprep.subr.bf16.mxu0 0
      %402 = vmatpush1.bf16.xpose.msra.mxu0 0
      %403 = vmatprep.subr.bf16.mxu0 0
      %404 = vmatpush1.bf16.xpose.msra.mxu0 0
      %405 = vmatprep.subr.bf16.mxu0 0
      %406 = vmatpush1.bf16.xpose.msra.mxu0 0
      %407 = vmatprep.subr.bf16.mxu0 0
      %408 = vmatpush1.bf16.xpose.msra.mxu0 0
      %409 = vmatprep.subr.bf16.mxu0 0
      %410 = vmatpush1.bf16.xpose.msra.mxu0 0
      %411 = vmatprep.subr.bf16.mxu0 0
      %412 = vmatpush1.bf16.xpose.msra.mxu0 0
      %413 = vmatprep.subr.bf16.mxu0 0
      %414 = vmatpush1.bf16.xpose.msra.mxu0 0
      %415 = vmatprep.subr.bf16.mxu0 0
      %416 = vmatpush1.bf16.xpose.msra.mxu0 0
      %417 = vmatprep.subr.bf16.mxu0 0
      %418 = vmatpush1.bf16.xpose.msra.mxu0 0
      %419 = vmatprep.subr.bf16.mxu0 0
      %420 = vmatpush1.bf16.xpose.msra.mxu0 0
      %421 = vmatprep.subr.bf16.mxu0 0
      %422 = vmatpush1.bf16.xpose.msra.mxu0 0
      %423 = vmatprep.subr.bf16.mxu0 0
      %424 = vmatpush1.bf16.xpose.msra.mxu0 0
      %425 = vmatprep.subr.bf16.mxu0 0
      %426 = vmatpush1.bf16.xpose.msra.mxu0 0
      %427 = vmatprep.subr.bf16.mxu0 0
      %428 = vmatpush1.bf16.xpose.msra.mxu0 0
      %429 = vmatprep.mubr.bf16.mxu0 0
      %430 = vmatmul.mubr.bf16.gmra.mrb[0].mxu0 %v392
      %v431 = vpop.f32.mrb[0].mxu0
      %v432 = vadd.f32 0.0, %v431
      %v433 = vpop.f32.mrb[0].mxu0
      %v434 = vpop.f32.mrb[0].mxu0
      %v435 = vpop.f32.mrb[0].mxu0
      %436 = vdwg.mxu0
      %v437 = vsel %vm389, %v432, -1e+09
      %v438 = vld [vmem:[#allocation2] sm:$0xff]
      %vm439 = vcmask 64512
      %v440 = vsel %vm439, %v437, -inf
      %441 = vmax.xlane.f32.xlu0 %v440
      %v442 = vpop.xlane.xlu0 %441
      %v443 = vmax.f32 %v438, %v442
      %v444 = vsub.f32 %v438, %v443
      %v445 = vmul.f32 %v444, 1.442695
      %v446 = vpow.pop %v445
      %448 = vset.pattern.permute.xlu0 0
      %449 = vperm.xlu0 %448, %v443
      %v450 = vpop.permute.xlu0 %449
      %v452 = vsub.f32 %v437, %v450
      %v453 = vmul.f32 %v452, 1.442695
      %v454 = vpow.pop %v453
      %v455 = vld [vmem:[#allocation3] sm:$0xff]
      %v456 = vmul.f32 %v446, %v455
      %v457 = vsel %vm439, %v454, 0.0
      %458 = vadd.xlane.f32.xlu0 %v457
      %v459 = vpop.xlane.xlu0 %458
      %v460 = vadd.f32 %v456, %v459
      %vm461 = vcmask 7168
      %462 = vst.msk [vmem:[#allocation3] sm:$0xff] %vm461, %v460
      %v463 = vld [vmem:[#allocation4] sm:$0xff]
      %465 = vset.pattern.permute.xlu0 0
      %466 = vperm.xlu0 %465, %v446
      %v467 = vpop.permute.xlu0 %466
      %v469 = vmul.f32 %v467, %v463
      %v470 = vpack.c.bf16 %v454, %v454
      %v472 = vsel %vm439, %v470, 0
      %vm474 = vcmask 1043456
      %v476 = vsel %vm474, %v381, 0
      %478 = vmatprep.subr.bf16.mxu0 0
      %479 = vmatpush1.bf16.msra.mxu0 %v476
      %480 = vmatprep.subr.bf16.mxu0 0
      %481 = vmatpush1.bf16.msra.mxu0 0
      %482 = vmatprep.subr.bf16.mxu0 0
      %483 = vmatpush1.bf16.msra.mxu0 0
      %484 = vmatprep.subr.bf16.mxu0 0
      %485 = vmatpush1.bf16.msra.mxu0 0
      %486 = vmatprep.subr.bf16.mxu0 0
      %487 = vmatpush1.bf16.msra.mxu0 0
      %488 = vmatprep.subr.bf16.mxu0 0
      %489 = vmatpush1.bf16.msra.mxu0 0
      %490 = vmatprep.subr.bf16.mxu0 0
      %491 = vmatpush1.bf16.msra.mxu0 0
      %492 = vmatprep.subr.bf16.mxu0 0
      %493 = vmatpush1.bf16.msra.mxu0 0
      %494 = vmatprep.subr.bf16.mxu0 0
      %495 = vmatpush1.bf16.msra.mxu0 0
      %496 = vmatprep.subr.bf16.mxu0 0
      %497 = vmatpush1.bf16.msra.mxu0 0
      %498 = vmatprep.subr.bf16.mxu0 0
      %499 = vmatpush1.bf16.msra.mxu0 0
      %500 = vmatprep.subr.bf16.mxu0 0
      %501 = vmatpush1.bf16.msra.mxu0 0
      %502 = vmatprep.subr.bf16.mxu0 0
      %503 = vmatpush1.bf16.msra.mxu0 0
      %504 = vmatprep.subr.bf16.mxu0 0
      %505 = vmatpush1.bf16.msra.mxu0 0
      %506 = vmatprep.subr.bf16.mxu0 0
      %507 = vmatpush1.bf16.msra.mxu0 0
      %508 = vmatprep.subr.bf16.mxu0 0
      %509 = vmatpush1.bf16.msra.mxu0 0
      %510 = vmatprep.mubr.bf16.mxu0 0
      %511 = vmatmul.mubr.bf16.gmra.mrb[0].mxu0 %v472
      %v512 = vpop.f32.mrb[0].mxu0
      %v513 = vadd.f32 0.0, %v512
      %v514 = vpop.f32.mrb[0].mxu0
      %v515 = vpop.f32.mrb[0].mxu0
      %v516 = vpop.f32.mrb[0].mxu0
      %517 = vdwg.mxu0
      %v518 = vadd.f32 %v469, %v513
      %519 = vst.msk [vmem:[#allocation4] sm:$0xff] %vm390, %v518
      %520 = vst.msk [vmem:[#allocation2] sm:$0xff] %vm461, %v443
      %v522 = vunpack.c.l.b16 %v379
      %v523 = vpack.c.b16 %v522, %v522
      %524 = vrot.lane.b32.xlu0 %v523, 96
      %v525 = vpop.permute.xlu0 %524
      %v527 = vunpack.c.l.b16 %v380
      %v528 = vpack.c.b16 %v527, %v527
      %529 = vrot.lane.b32.xlu0 %v528, 96
      %v530 = vpop.permute.xlu0 %529
      %v532 = vsel %vm390, %v525, 0
      %v535 = vsel %vm390, %v530, 0
      %537 = vmatprep.subr.bf16.mxu0 0
      %538 = vmatpush1.bf16.xpose.msra.mxu0 %v535
      %539 = vmatprep.subr.bf16.mxu0 0
      %540 = vmatpush1.bf16.xpose.msra.mxu0 0
      %541 = vmatprep.subr.bf16.mxu0 0
      %542 = vmatpush1.bf16.xpose.msra.mxu0 0
      %543 = vmatprep.subr.bf16.mxu0 0
      %544 = vmatpush1.bf16.xpose.msra.mxu0 0
      %545 = vmatprep.subr.bf16.mxu0 0
      %546 = vmatpush1.bf16.xpose.msra.mxu0 0
      %547 = vmatprep.subr.bf16.mxu0 0
      %548 = vmatpush1.bf16.xpose.msra.mxu0 0
      %549 = vmatprep.subr.bf16.mxu0 0
      %550 = vmatpush1.bf16.xpose.msra.mxu0 0
      %551 = vmatprep.subr.bf16.mxu0 0
      %552 = vmatpush1.bf16.xpose.msra.mxu0 0
      %553 = vmatprep.subr.bf16.mxu0 0
      %554 = vmatpush1.bf16.xpose.msra.mxu0 0
      %555 = vmatprep.subr.bf16.mxu0 0
      %556 = vmatpush1.bf16.xpose.msra.mxu0 0
      %557 = vmatprep.subr.bf16.mxu0 0
      %558 = vmatpush1.bf16.xpose.msra.mxu0 0
      %559 = vmatprep.subr.bf16.mxu0 0
      %560 = vmatpush1.bf16.xpose.msra.mxu0 0
      %561 = vmatprep.subr.bf16.mxu0 0
      %562 = vmatpush1.bf16.xpose.msra.mxu0 0
      %563 = vmatprep.subr.bf16.mxu0 0
      %564 = vmatpush1.bf16.xpose.msra.mxu0 0
      %565 = vmatprep.subr.bf16.mxu0 0
      %566 = vmatpush1.bf16.xpose.msra.mxu0 0
      %567 = vmatprep.subr.bf16.mxu0 0
      %568 = vmatpush1.bf16.xpose.msra.mxu0 0
      %569 = vmatprep.mubr.bf16.mxu0 0
      %570 = vmatmul.mubr.bf16.gmra.mrb[0].mxu0 %v532
      %v571 = vpop.f32.mrb[0].mxu0
      %v572 = vadd.f32 0.0, %v571
      %v573 = vpop.f32.mrb[0].mxu0
      %v574 = vpop.f32.mrb[0].mxu0
      %v575 = vpop.f32.mrb[0].mxu0
      %576 = vdwg.mxu0
      %v577 = vsel %vm389, %v572, -1e+09
      %s578 = scalar_lea.vmem [#allocation2], 8
      %v579 = vld [vmem:[%s578] sm:$0xff]
      %v580 = vsel %vm439, %v577, -inf
      %581 = vmax.xlane.f32.xlu0 %v580
      %v582 = vpop.xlane.xlu0 %581
      %v583 = vmax.f32 %v579, %v582
      %v584 = vsub.f32 %v579, %v583
      %v585 = vmul.f32 %v584, 1.442695
      %v586 = vpow.pop %v585
      %588 = vset.pattern.permute.xlu0 0
      %589 = vperm.xlu0 %588, %v583
      %v590 = vpop.permute.xlu0 %589
      %v592 = vsub.f32 %v577, %v590
      %v593 = vmul.f32 %v592, 1.442695
      %v594 = vpow.pop %v593
      %s595 = scalar_lea.vmem [#allocation3], 8
      %v596 = vld [vmem:[%s595] sm:$0xff]
      %v597 = vmul.f32 %v586, %v596
      %v598 = vsel %vm439, %v594, 0.0
      %599 = vadd.xlane.f32.xlu0 %v598
      %v600 = vpop.xlane.xlu0 %599
      %v601 = vadd.f32 %v597, %v600
      %602 = vst.msk [vmem:[%s595] sm:$0xff] %vm461, %v601
      %s603 = scalar_lea.vmem [#allocation4], 8
      %v604 = vld [vmem:[%s603] sm:$0xff]
      %606 = vset.pattern.permute.xlu0 0
      %607 = vperm.xlu0 %606, %v586
      %v608 = vpop.permute.xlu0 %607
      %v610 = vmul.f32 %v608, %v604
      %v611 = vpack.c.bf16 %v594, %v594
      %v613 = vunpack.c.l.b16 %v381
      %v614 = vpack.c.b16 %v613, %v613
      %615 = vrot.lane.b32.xlu0 %v614, 96
      %v616 = vpop.permute.xlu0 %615
      %v618 = vsel %vm439, %v611, 0
      %v621 = vsel %vm474, %v616, 0
      %623 = vmatprep.subr.bf16.mxu0 0
      %624 = vmatpush1.bf16.msra.mxu0 %v621
      %625 = vmatprep.subr.bf16.mxu0 0
      %626 = vmatpush1.bf16.msra.mxu0 0
      %627 = vmatprep.subr.bf16.mxu0 0
      %628 = vmatpush1.bf16.msra.mxu0 0
      %629 = vmatprep.subr.bf16.mxu0 0
      %630 = vmatpush1.bf16.msra.mxu0 0
      %631 = vmatprep.subr.bf16.mxu0 0
      %632 = vmatpush1.bf16.msra.mxu0 0
      %633 = vmatprep.subr.bf16.mxu0 0
      %634 = vmatpush1.bf16.msra.mxu0 0
      %635 = vmatprep.subr.bf16.mxu0 0
      %636 = vmatpush1.bf16.msra.mxu0 0
      %637 = vmatprep.subr.bf16.mxu0 0
      %638 = vmatpush1.bf16.msra.mxu0 0
      %639 = vmatprep.subr.bf16.mxu0 0
      %640 = vmatpush1.bf16.msra.mxu0 0
      %641 = vmatprep.subr.bf16.mxu0 0
      %642 = vmatpush1.bf16.msra.mxu0 0
      %643 = vmatprep.subr.bf16.mxu0 0
      %644 = vmatpush1.bf16.msra.mxu0 0
      %645 = vmatprep.subr.bf16.mxu0 0
      %646 = vmatpush1.bf16.msra.mxu0 0
      %647 = vmatprep.subr.bf16.mxu0 0
      %648 = vmatpush1.bf16.msra.mxu0 0
      %649 = vmatprep.subr.bf16.mxu0 0
      %650 = vmatpush1.bf16.msra.mxu0 0
      %651 = vmatprep.subr.bf16.mxu0 0
      %652 = vmatpush1.bf16.msra.mxu0 0
      %653 = vmatprep.subr.bf16.mxu0 0
      %654 = vmatpush1.bf16.msra.mxu0 0
      %655 = vmatprep.mubr.bf16.mxu0 0
      %656 = vmatmul.mubr.bf16.gmra.mrb[0].mxu0 %v618
      %v657 = vpop.f32.mrb[0].mxu0
      %v658 = vadd.f32 0.0, %v657
      %v659 = vpop.f32.mrb[0].mxu0
      %v660 = vpop.f32.mrb[0].mxu0
      %v661 = vpop.f32.mrb[0].mxu0
      %662 = vdwg.mxu0
      %v663 = vadd.f32 %v610, %v658
      %664 = vst.msk [vmem:[%s603] sm:$0xff] %vm390, %v663
      %665 = vst.msk [vmem:[%s578] sm:$0xff] %vm461, %v583
      %666 = vrot.lane.b32.xlu0 %v523, 64
      %v667 = vpop.permute.xlu0 %666
      %668 = vrot.lane.b32.xlu0 %v528, 64
      %v669 = vpop.permute.xlu0 %668
      %v671 = vsel %vm390, %v667, 0
      %v674 = vsel %vm390, %v669, 0
      %676 = vmatprep.subr.bf16.mxu0 0
      %677 = vmatpush1.bf16.xpose.msra.mxu0 %v674
      %678 = vmatprep.subr.bf16.mxu0 0
      %679 = vmatpush1.bf16.xpose.msra.mxu0 0
      %680 = vmatprep.subr.bf16.mxu0 0
      %681 = vmatpush1.bf16.xpose.msra.mxu0 0
      %682 = vmatprep.subr.bf16.mxu0 0
      %683 = vmatpush1.bf16.xpose.msra.mxu0 0
      %684 = vmatprep.subr.bf16.mxu0 0
      %685 = vmatpush1.bf16.xpose.msra.mxu0 0
      %686 = vmatprep.subr.bf16.mxu0 0
      %687 = vmatpush1.bf16.xpose.msra.mxu0 0
      %688 = vmatprep.subr.bf16.mxu0 0
      %689 = vmatpush1.bf16.xpose.msra.mxu0 0
      %690 = vmatprep.subr.bf16.mxu0 0
      %691 = vmatpush1.bf16.xpose.msra.mxu0 0
      %692 = vmatprep.subr.bf16.mxu0 0
      %693 = vmatpush1.bf16.xpose.msra.mxu0 0
      %694 = vmatprep.subr.bf16.mxu0 0
      %695 = vmatpush1.bf16.xpose.msra.mxu0 0
      %696 = vmatprep.subr.bf16.mxu0 0
      %697 = vmatpush1.bf16.xpose.msra.mxu0 0
      %698 = vmatprep.subr.bf16.mxu0 0
      %699 = vmatpush1.bf16.xpose.msra.mxu0 0
      %700 = vmatprep.subr.bf16.mxu0 0
      %701 = vmatpush1.bf16.xpose.msra.mxu0 0
      %702 = vmatprep.subr.bf16.mxu0 0
      %703 = vmatpush1.bf16.xpose.msra.mxu0 0
      %704 = vmatprep.subr.bf16.mxu0 0
      %705 = vmatpush1.bf16.xpose.msra.mxu0 0
      %706 = vmatprep.subr.bf16.mxu0 0
      %707 = vmatpush1.bf16.xpose.msra.mxu0 0
      %708 = vmatprep.mubr.bf16.mxu0 0
      %709 = vmatmul.mubr.bf16.gmra.mrb[0].mxu0 %v671
      %v710 = vpop.f32.mrb[0].mxu0
      %v711 = vadd.f32 0.0, %v710
      %v712 = vpop.f32.mrb[0].mxu0
      %v713 = vpop.f32.mrb[0].mxu0
      %v714 = vpop.f32.mrb[0].mxu0
      %715 = vdwg.mxu0
      %v716 = vsel %vm389, %v711, -1e+09
      %s717 = scalar_lea.vmem [#allocation2], 16
      %v718 = vld [vmem:[%s717] sm:$0xff]
      %v719 = vsel %vm439, %v716, -inf
      %720 = vmax.xlane.f32.xlu0 %v719
      %v721 = vpop.xlane.xlu0 %720
      %v722 = vmax.f32 %v718, %v721
      %v723 = vsub.f32 %v718, %v722
      %v724 = vmul.f32 %v723, 1.442695
      %v725 = vpow.pop %v724
      %727 = vset.pattern.permute.xlu0 0
      %728 = vperm.xlu0 %727, %v722
      %v729 = vpop.permute.xlu0 %728
      %v731 = vsub.f32 %v716, %v729
      %v732 = vmul.f32 %v731, 1.442695
      %v733 = vpow.pop %v732
      %s734 = scalar_lea.vmem [#allocation3], 16
      %v735 = vld [vmem:[%s734] sm:$0xff]
      %v736 = vmul.f32 %v725, %v735
      %v737 = vsel %vm439, %v733, 0.0
      %738 = vadd.xlane.f32.xlu0 %v737
      %v739 = vpop.xlane.xlu0 %738
      %v740 = vadd.f32 %v736, %v739
      %741 = vst.msk [vmem:[%s734] sm:$0xff] %vm461, %v740
      %s742 = scalar_lea.vmem [#allocation4], 16
      %v743 = vld [vmem:[%s742] sm:$0xff]
      %745 = vset.pattern.permute.xlu0 0
      %746 = vperm.xlu0 %745, %v725
      %v747 = vpop.permute.xlu0 %746
      %v749 = vmul.f32 %v747, %v743
      %v750 = vpack.c.bf16 %v733, %v733
      %751 = vrot.lane.b32.xlu0 %v614, 64
      %v752 = vpop.permute.xlu0 %751
      %v754 = vsel %vm439, %v750, 0
      %v757 = vsel %vm474, %v752, 0
      %759 = vmatprep.subr.bf16.mxu0 0
      %760 = vmatpush1.bf16.msra.mxu0 %v757
      %761 = vmatprep.subr.bf16.mxu0 0
      %762 = vmatpush1.bf16.msra.mxu0 0
      %763 = vmatprep.subr.bf16.mxu0 0
      %764 = vmatpush1.bf16.msra.mxu0 0
      %765 = vmatprep.subr.bf16.mxu0 0
      %766 = vmatpush1.bf16.msra.mxu0 0
      %767 = vmatprep.subr.bf16.mxu0 0
      %768 = vmatpush1.bf16.msra.mxu0 0
      %769 = vmatprep.subr.bf16.mxu0 0
      %770 = vmatpush1.bf16.msra.mxu0 0
      %771 = vmatprep.subr.bf16.mxu0 0
      %772 = vmatpush1.bf16.msra.mxu0 0
      %773 = vmatprep.subr.bf16.mxu0 0
      %774 = vmatpush1.bf16.msra.mxu0 0
      %775 = vmatprep.subr.bf16.mxu0 0
      %776 = vmatpush1.bf16.msra.mxu0 0
      %777 = vmatprep.subr.bf16.mxu0 0
      %778 = vmatpush1.bf16.msra.mxu0 0
      %779 = vmatprep.subr.bf16.mxu0 0
      %780 = vmatpush1.bf16.msra.mxu0 0
      %781 = vmatprep.subr.bf16.mxu0 0
      %782 = vmatpush1.bf16.msra.mxu0 0
      %783 = vmatprep.subr.bf16.mxu0 0
      %784 = vmatpush1.bf16.msra.mxu0 0
      %785 = vmatprep.subr.bf16.mxu0 0
      %786 = vmatpush1.bf16.msra.mxu0 0
      %787 = vmatprep.subr.bf16.mxu0 0
      %788 = vmatpush1.bf16.msra.mxu0 0
      %789 = vmatprep.subr.bf16.mxu0 0
      %790 = vmatpush1.bf16.msra.mxu0 0
      %791 = vmatprep.mubr.bf16.mxu0 0
      %792 = vmatmul.mubr.bf16.gmra.mrb[0].mxu0 %v754
      %v793 = vpop.f32.mrb[0].mxu0
      %v794 = vadd.f32 0.0, %v793
      %v795 = vpop.f32.mrb[0].mxu0
      %v796 = vpop.f32.mrb[0].mxu0
      %v797 = vpop.f32.mrb[0].mxu0
      %798 = vdwg.mxu0
      %v799 = vadd.f32 %v749, %v794
      %800 = vst.msk [vmem:[%s742] sm:$0xff] %vm390, %v799
      %801 = vst.msk [vmem:[%s717] sm:$0xff] %vm461, %v722
      %802 = vrot.lane.b32.xlu0 %v523, 32
      %v803 = vpop.permute.xlu0 %802
      %804 = vrot.lane.b32.xlu0 %v528, 32
      %v805 = vpop.permute.xlu0 %804
      %v807 = vsel %vm390, %v803, 0
      %v810 = vsel %vm390, %v805, 0
      %812 = vmatprep.subr.bf16.mxu0 0
      %813 = vmatpush1.bf16.xpose.msra.mxu0 %v810
      %814 = vmatprep.subr.bf16.mxu0 0
      %815 = vmatpush1.bf16.xpose.msra.mxu0 0
      %816 = vmatprep.subr.bf16.mxu0 0
      %817 = vmatpush1.bf16.xpose.msra.mxu0 0
      %818 = vmatprep.subr.bf16.mxu0 0
      %819 = vmatpush1.bf16.xpose.msra.mxu0 0
      %820 = vmatprep.subr.bf16.mxu0 0
      %821 = vmatpush1.bf16.xpose.msra.mxu0 0
      %822 = vmatprep.subr.bf16.mxu0 0
      %823 = vmatpush1.bf16.xpose.msra.mxu0 0
      %824 = vmatprep.subr.bf16.mxu0 0
      %825 = vmatpush1.bf16.xpose.msra.mxu0 0
      %826 = vmatprep.subr.bf16.mxu0 0
      %827 = vmatpush1.bf16.xpose.msra.mxu0 0
      %828 = vmatprep.subr.bf16.mxu0 0
      %829 = vmatpush1.bf16.xpose.msra.mxu0 0
      %830 = vmatprep.subr.bf16.mxu0 0
      %831 = vmatpush1.bf16.xpose.msra.mxu0 0
      %832 = vmatprep.subr.bf16.mxu0 0
      %833 = vmatpush1.bf16.xpose.msra.mxu0 0
      %834 = vmatprep.subr.bf16.mxu0 0
      %835 = vmatpush1.bf16.xpose.msra.mxu0 0
      %836 = vmatprep.subr.bf16.mxu0 0
      %837 = vmatpush1.bf16.xpose.msra.mxu0 0
      %838 = vmatprep.subr.bf16.mxu0 0
      %839 = vmatpush1.bf16.xpose.msra.mxu0 0
      %840 = vmatprep.subr.bf16.mxu0 0
      %841 = vmatpush1.bf16.xpose.msra.mxu0 0
      %842 = vmatprep.subr.bf16.mxu0 0
      %843 = vmatpush1.bf16.xpose.msra.mxu0 0
      %844 = vmatprep.mubr.bf16.mxu0 0
      %845 = vmatmul.mubr.bf16.gmra.mrb[0].mxu0 %v807
      %v846 = vpop.f32.mrb[0].mxu0
      %v847 = vadd.f32 0.0, %v846
      %v848 = vpop.f32.mrb[0].mxu0
      %v849 = vpop.f32.mrb[0].mxu0
      %v850 = vpop.f32.mrb[0].mxu0
      %851 = vdwg.mxu0
      %v852 = vsel %vm389, %v847, -1e+09
      %s853 = scalar_lea.vmem [#allocation2], 24
      %v854 = vld [vmem:[%s853] sm:$0xff]
      %v855 = vsel %vm439, %v852, -inf
      %856 = vmax.xlane.f32.xlu0 %v855
      %v857 = vpop.xlane.xlu0 %856
      %v858 = vmax.f32 %v854, %v857
      %v859 = vsub.f32 %v854, %v858
      %v860 = vmul.f32 %v859, 1.442695
      %v861 = vpow.pop %v860
      %863 = vset.pattern.permute.xlu0 0
      %864 = vperm.xlu0 %863, %v858
      %v865 = vpop.permute.xlu0 %864
      %v867 = vsub.f32 %v852, %v865
      %v868 = vmul.f32 %v867, 1.442695
      %v869 = vpow.pop %v868
      %s870 = scalar_lea.vmem [#allocation3], 24
      %v871 = vld [vmem:[%s870] sm:$0xff]
      %v872 = vmul.f32 %v861, %v871
      %v873 = vsel %vm439, %v869, 0.0
      %874 = vadd.xlane.f32.xlu0 %v873
      %v875 = vpop.xlane.xlu0 %874
      %v876 = vadd.f32 %v872, %v875
      %877 = vst.msk [vmem:[%s870] sm:$0xff] %vm461, %v876
      %s878 = scalar_lea.vmem [#allocation4], 24
      %v879 = vld [vmem:[%s878] sm:$0xff]
      %881 = vset.pattern.permute.xlu0 0
      %882 = vperm.xlu0 %881, %v861
      %v883 = vpop.permute.xlu0 %882
      %v885 = vmul.f32 %v883, %v879
      %v886 = vpack.c.bf16 %v869, %v869
      %887 = vrot.lane.b32.xlu0 %v614, 32
      %v888 = vpop.permute.xlu0 %887
      %v890 = vsel %vm439, %v886, 0
      %v893 = vsel %vm474, %v888, 0
      %895 = vmatprep.subr.bf16.mxu0 0
      %896 = vmatpush1.bf16.msra.mxu0 %v893
      %897 = vmatprep.subr.bf16.mxu0 0
      %898 = vmatpush1.bf16.msra.mxu0 0
      %899 = vmatprep.subr.bf16.mxu0 0
      %900 = vmatpush1.bf16.msra.mxu0 0
      %901 = vmatprep.subr.bf16.mxu0 0
      %902 = vmatpush1.bf16.msra.mxu0 0
      %903 = vmatprep.subr.bf16.mxu0 0
      %904 = vmatpush1.bf16.msra.mxu0 0
      %905 = vmatprep.subr.bf16.mxu0 0
      %906 = vmatpush1.bf16.msra.mxu0 0
      %907 = vmatprep.subr.bf16.mxu0 0
      %908 = vmatpush1.bf16.msra.mxu0 0
      %909 = vmatprep.subr.bf16.mxu0 0
      %910 = vmatpush1.bf16.msra.mxu0 0
      %911 = vmatprep.subr.bf16.mxu0 0
      %912 = vmatpush1.bf16.msra.mxu0 0
      %913 = vmatprep.subr.bf16.mxu0 0
      %914 = vmatpush1.bf16.msra.mxu0 0
      %915 = vmatprep.subr.bf16.mxu0 0
      %916 = vmatpush1.bf16.msra.mxu0 0
      %917 = vmatprep.subr.bf16.mxu0 0
      %918 = vmatpush1.bf16.msra.mxu0 0
      %919 = vmatprep.subr.bf16.mxu0 0
      %920 = vmatpush1.bf16.msra.mxu0 0
      %921 = vmatprep.subr.bf16.mxu0 0
      %922 = vmatpush1.bf16.msra.mxu0 0
      %923 = vmatprep.subr.bf16.mxu0 0
      %924 = vmatpush1.bf16.msra.mxu0 0
      %925 = vmatprep.subr.bf16.mxu0 0
      %926 = vmatpush1.bf16.msra.mxu0 0
      %927 = vmatprep.mubr.bf16.mxu0 0
      %928 = vmatmul.mubr.bf16.gmra.mrb[0].mxu0 %v890
      %v929 = vpop.f32.mrb[0].mxu0
      %v930 = vadd.f32 0.0, %v929
      %v931 = vpop.f32.mrb[0].mxu0
      %v932 = vpop.f32.mrb[0].mxu0
      %v933 = vpop.f32.mrb[0].mxu0
      %934 = vdwg.mxu0
      %v935 = vadd.f32 %v885, %v930
      %936 = vst.msk [vmem:[%s878] sm:$0xff] %vm390, %v935
      %937 = vst.msk [vmem:[%s853] sm:$0xff] %vm461, %v858
      // Predicated region
      $region41: #{transformer_forward.26} parent=35 // pred_check
        %p938 = pneg %p361
      $region42: #{transformer_forward.26} parent=35 // pred_check_branch
        %940 = sbr.rel (%p938) target = $region44
      $region43: #{transformer_forward.26} parent=35 // pred_region
        %v941 = vld [vmem:[#allocation4] sm:$0xff]
        %v942 = vld [vmem:[#allocation3] sm:$0xff]
        %v943 = vrcp.pop %v942
        %945 = vset.pattern.permute.xlu0 0
        %946 = vperm.xlu0 %945, %v943
        %v947 = vpop.permute.xlu0 %946
        %v949 = vmul.f32 %v941, %v947
        %v950 = vld [vmem:[%s603] sm:$0xff]
        %v951 = vld [vmem:[%s595] sm:$0xff]
        %v952 = vrcp.pop %v951
        %954 = vset.pattern.permute.xlu0 0
        %955 = vperm.xlu0 %954, %v952
        %v956 = vpop.permute.xlu0 %955
        %v958 = vmul.f32 %v950, %v956
        %v959 = vld [vmem:[%s742] sm:$0xff]
        %v960 = vld [vmem:[%s734] sm:$0xff]
        %v961 = vrcp.pop %v960
        %963 = vset.pattern.permute.xlu0 0
        %964 = vperm.xlu0 %963, %v961
        %v965 = vpop.permute.xlu0 %964
        %v967 = vmul.f32 %v959, %v965
        %v968 = vld [vmem:[%s878] sm:$0xff]
        %v969 = vld [vmem:[%s870] sm:$0xff]
        %v970 = vrcp.pop %v969
        %972 = vset.pattern.permute.xlu0 0
        %973 = vperm.xlu0 %972, %v970
        %v974 = vpop.permute.xlu0 %973
        %v976 = vmul.f32 %v968, %v974
        %978 = vrot.lane.b32.xlu0 %v958, 32
        %v979 = vpop.permute.xlu0 %978
        %982 = vrot.lane.b32.xlu0 %v967, 64
        %v983 = vpop.permute.xlu0 %982
        %986 = vrot.lane.b32.xlu0 %v976, 96
        %v987 = vpop.permute.xlu0 %986
        %v989 = vsel %vm390, %v949, %v979
        %vm990 = vcmask 523264
        %v991 = vsel %vm990, %v989, %v983
        %vm992 = vcmask 785408
        %v993 = vsel %vm992, %v991, %v987
        %v994 = vpack.c.bf16 %v993, %v993
        %995 = vst [vmem:[%s359] sm:$0xf] %v994
      $region44: #{transformer_forward.26} parent=35 // pred_fallthru
        _
      %p996 = scmp.lt.s32.totalorder %s21, 1
      %s997 = scalar_select %p996, %s21, 1
      %p998 = scmp.lt.s32.totalorder %s23, 0
      %s999 = scalar_select %p998, %s23, 0
      %p1000 = scmp.lt.s32.totalorder %s22, 0
      %s1001 = scalar_select %p1000, %s22, 0
      %s1002 = sadd.s32 %s1001, %s999
      %s1003 = sadd.s32 %s1002, %s997
      %s1004 = smul.addr %s1003, 4
      %s1005 = scalar_lea.vmem %s4, %s1004
      // Predicated region
      $region45: #{transformer_forward.26} parent=35 // pred_check
        %p1006 = pneg %p181
      $region46: #{transformer_forward.26} parent=35 // pred_check_branch
        %1008 = sbr.rel (%p1006) target = $region48
      $region47: #{transformer_forward.26} parent=35 // pred_region
        _
      $region48: #{transformer_forward.26} parent=35 // pred_fallthru
        _
    $region36: #{transformer_forward.26} parent=5 // pred_fallthru
      _
    %p1009 = scmp.le.s32.totalorder 2, %s10
    // Predicated region
    $region49: #{transformer_forward.26} parent=5 // pred_check
      %p1010 = pneg %p1009
    $region50: #{transformer_forward.26} parent=5 // pred_check_branch
      %1012 = sbr.rel (%p1010) target = $region52
    $region51: #{transformer_forward.26} parent=5 // pred_region
      %s1013 = ssub.s32 %s10, 2
      // Predicated region
      $region53: #{transformer_forward.26} parent=51 // pred_check
        %p1014 = pneg %p187
      $region54: #{transformer_forward.26} parent=51 // pred_check_branch
        %1016 = sbr.rel (%p1014) target = $region56
      $region55: #{transformer_forward.26} parent=51 // pred_region
        %p1017 = scmp.lt.s32.totalorder %s25, 1
        %s1018 = scalar_select %p1017, %s25, 1
        %p1019 = scmp.lt.s32.totalorder %s27, 0
        %s1020 = scalar_select %p1019, %s27, 0
        %p1021 = scmp.lt.s32.totalorder %s26, 0
        %s1022 = scalar_select %p1021, %s26, 0
        %s1023 = sadd.s32 %s1022, %s1020
        %s1024 = sadd.s32 %s1023, %s1018
        %s1025 = smul.addr %s1024, 4
        %s1026 = scalar_lea.vmem %s4, %s1025
      $region56: #{transformer_forward.26} parent=51 // pred_fallthru
        _
    $region52: #{transformer_forward.26} parent=5 // pred_fallthru
      _
  $region6: #{transformer_forward.26} parent=0 // loop_footer
    %s14 = sadd.s32 1, %s10
  $region7: #{transformer_forward.26} parent=0 // loop_footer_branch
    %9 = sbr.rel target = $region3
  $region8: #{transformer_forward.26} parent=0 // loop_exit
    _

// kernel: transformer_forward.45
$region0: #{transformer_forward.45}
  #allocation0 [shape = 'u32[]', space=smem, size = 0x4, offset = 0x4, fixed_abs, tag = 'smem constant byte address 0x4 - core index']
  #allocation1 [shape = 'u32[144,128]{1,0:T(1,128)}', space=vmem, size = 0x12000, scoped, tag = 'internal scratch']
  #allocation2 [shape = 'f32[16,256]{1,0:T(8,128)}', space=vmem, size = 0x4000, scoped, tag = 'scratch operand']
  %s0 = inlined_call_operand.vmem [shape: f32[16,128], index: 0, kind: input, shape index: {}]
  %s1 = inlined_call_operand.vmem [shape: bf16[128,256], index: 1, kind: input, shape index: {}]
  %s2 = inlined_call_operand.vmem [shape: f32[1,256], index: 2, kind: input, shape index: {}]
  %s3 = inlined_call_operand.vmem [shape: bf16[16,128], index: 3, kind: output, shape index: {0}]
  %s4 = inlined_call_operand.vmem [shape: bf16[16,128], index: 4, kind: output, shape index: {1}]
  %5 = xla_tuple %s3, %s4
  %s6 = sld [smem:[#allocation0]]
  $region38: #{transformer_forward.45} parent=0
    _
  %s8 = ssub.s32 1, %s6
  %s9 = scalar_select 0, %s8, %s6
  // Predicated region
  $region2: #{transformer_forward.45} parent=0 // pred_check
    _
  $region3: #{transformer_forward.45} parent=0 // pred_check_branch
    %11 = sbr.rel (0) target = $region5
  $region4: #{transformer_forward.45} parent=0 // pred_region
    _
  $region5: #{transformer_forward.45} parent=0 // pred_fallthru
    _
  // Predicated region
  $region6: #{transformer_forward.45} parent=0 // pred_check
    _
  $region7: #{transformer_forward.45} parent=0 // pred_check_branch
    %13 = sbr.rel (0) target = $region9
  $region8: #{transformer_forward.45} parent=0 // pred_region
    _
  $region9: #{transformer_forward.45} parent=0 // pred_fallthru
    _
  // Predicated region
  $region10: #{transformer_forward.45} parent=0 // pred_check
    _
  $region11: #{transformer_forward.45} parent=0 // pred_check_branch
    %15 = sbr.rel (0) target = $region13
  $region12: #{transformer_forward.45} parent=0 // pred_region
    _
  $region13: #{transformer_forward.45} parent=0 // pred_fallthru
    _
  %p17 = scmp.eq.s32.totalorder 0, 0
  // Predicated region
  $region14: #{transformer_forward.45} parent=0 // pred_check
    %p18 = pneg %p17
  $region15: #{transformer_forward.45} parent=0 // pred_check_branch
    %20 = sbr.rel (%p18) target = $region17
  $region16: #{transformer_forward.45} parent=0 // pred_region
    %21 = vst [vmem:[#allocation2] sm:$0xff] 0.0
    %22 = vst [vmem:[#allocation2 + $0x8] sm:$0xff] 0.0
    %23 = vst [vmem:[#allocation2 + $0x10] sm:$0xff] 0.0
    %24 = vst [vmem:[#allocation2 + $0x18] sm:$0xff] 0.0
  $region17: #{transformer_forward.45} parent=0 // pred_fallthru
    _
  %v25 = vld [vmem:[#allocation2] sm:$0xff]
  %v26 = vld [vmem:[#allocation2 + $0x8] sm:$0xff]
  %v27 = vld [vmem:[#allocation2 + $0x10] sm:$0xff]
  %v28 = vld [vmem:[#allocation2 + $0x18] sm:$0xff]
  %v29 = vld [vmem:[%s0] sm:$0xff]
  %v30 = vld [vmem:[%s0 + $0x8] sm:$0xff]
  %v31 = vpack.c.bf16 %v30, %v29
  %v32 = vld [vmem:[%s1] sm:$0xff]
  %v33 = vld [vmem:[%s1 + $0x8] sm:$0xff]
  %v34 = vld [vmem:[%s1 + $0x10] sm:$0xff]
  %v35 = vld [vmem:[%s1 + $0x18] sm:$0xff]
  %v36 = vld [vmem:[%s1 + $0x20] sm:$0xff]
  %v37 = vld [vmem:[%s1 + $0x28] sm:$0xff]
  %v38 = vld [vmem:[%s1 + $0x30] sm:$0xff]
  %v39 = vld [vmem:[%s1 + $0x38] sm:$0xff]
  %v40 = vld [vmem:[%s1 + $0x40] sm:$0xff]
  %v41 = vld [vmem:[%s1 + $0x48] sm:$0xff]
  %v42 = vld [vmem:[%s1 + $0x50] sm:$0xff]
  %v43 = vld [vmem:[%s1 + $0x58] sm:$0xff]
  %v44 = vld [vmem:[%s1 + $0x60] sm:$0xff]
  %v45 = vld [vmem:[%s1 + $0x68] sm:$0xff]
  %v46 = vld [vmem:[%s1 + $0x70] sm:$0xff]
  %v47 = vld [vmem:[%s1 + $0x78] sm:$0xff]
  %v64 = vunpack.c.l.b16 %v32
  %v65 = vunpack.c.h.b16 %v32
  %v66 = vunpack.c.l.b16 %v33
  %v67 = vunpack.c.h.b16 %v33
  %v68 = vunpack.c.l.b16 %v34
  %v69 = vunpack.c.h.b16 %v34
  %v70 = vunpack.c.l.b16 %v35
  %v71 = vunpack.c.h.b16 %v35
  %v72 = vunpack.c.l.b16 %v36
  %v73 = vunpack.c.h.b16 %v36
  %v74 = vunpack.c.l.b16 %v37
  %v75 = vunpack.c.h.b16 %v37
  %v76 = vunpack.c.l.b16 %v38
  %v77 = vunpack.c.h.b16 %v38
  %v78 = vunpack.c.l.b16 %v39
  %v79 = vunpack.c.h.b16 %v39
  %v80 = vunpack.c.l.b16 %v40
  %v81 = vunpack.c.h.b16 %v40
  %v82 = vunpack.c.l.b16 %v41
  %v83 = vunpack.c.h.b16 %v41
  %v84 = vunpack.c.l.b16 %v42
  %v85 = vunpack.c.h.b16 %v42
  %v86 = vunpack.c.l.b16 %v43
  %v87 = vunpack.c.h.b16 %v43
  %v88 = vunpack.c.l.b16 %v44
  %v89 = vunpack.c.h.b16 %v44
  %v90 = vunpack.c.l.b16 %v45
  %v91 = vunpack.c.h.b16 %v45
  %v92 = vunpack.c.l.b16 %v46
  %v93 = vunpack.c.h.b16 %v46
  %v94 = vunpack.c.l.b16 %v47
  %v95 = vunpack.c.h.b16 %v47
  %v96 = vpack.c.b16 %v66, %v64
  %v97 = vpack.c.b16 %v67, %v65
  %v98 = vpack.c.b16 %v70, %v68
  %v99 = vpack.c.b16 %v71, %v69
  %v100 = vpack.c.b16 %v74, %v72
  %v101 = vpack.c.b16 %v75, %v73
  %v102 = vpack.c.b16 %v78, %v76
  %v103 = vpack.c.b16 %v79, %v77
  %v104 = vpack.c.b16 %v82, %v80
  %v105 = vpack.c.b16 %v83, %v81
  %v106 = vpack.c.b16 %v86, %v84
  %v107 = vpack.c.b16 %v87, %v85
  %v108 = vpack.c.b16 %v90, %v88
  %v109 = vpack.c.b16 %v91, %v89
  %v110 = vpack.c.b16 %v94, %v92
  %v111 = vpack.c.b16 %v95, %v93
  %128 = vmatprep.subr.bf16.mxu0 %v97
  %129 = vmatpush1.bf16.msra.mxu0 %v96
  %130 = vmatprep.subr.bf16.mxu0 %v99
  %131 = vmatpush1.bf16.msra.mxu0 %v98
  %132 = vmatprep.subr.bf16.mxu0 %v101
  %133 = vmatpush1.bf16.msra.mxu0 %v100
  %134 = vmatprep.subr.bf16.mxu0 %v103
  %135 = vmatpush1.bf16.msra.mxu0 %v102
  %136 = vmatprep.subr.bf16.mxu0 %v105
  %137 = vmatpush1.bf16.msra.mxu0 %v104
  %138 = vmatprep.subr.bf16.mxu0 %v107
  %139 = vmatpush1.bf16.msra.mxu0 %v106
  %140 = vmatprep.subr.bf16.mxu0 %v109
  %141 = vmatpush1.bf16.msra.mxu0 %v108
  %142 = vmatprep.subr.bf16.mxu0 %v111
  %143 = vmatpush1.bf16.msra.mxu0 %v110
  %144 = vmatprep.subr.bf16.mxu0 0
  %145 = vmatpush1.bf16.msra.mxu0 0
  %146 = vmatprep.subr.bf16.mxu0 0
  %147 = vmatpush1.bf16.msra.mxu0 0
  %148 = vmatprep.subr.bf16.mxu0 0
  %149 = vmatpush1.bf16.msra.mxu0 0
  %150 = vmatprep.subr.bf16.mxu0 0
  %151 = vmatpush1.bf16.msra.mxu0 0
  %152 = vmatprep.subr.bf16.mxu0 0
  %153 = vmatpush1.bf16.msra.mxu0 0
  %154 = vmatprep.subr.bf16.mxu0 0
  %155 = vmatpush1.bf16.msra.mxu0 0
  %156 = vmatprep.subr.bf16.mxu0 0
  %157 = vmatpush1.bf16.msra.mxu0 0
  %158 = vmatprep.subr.bf16.mxu0 0
  %159 = vmatpush1.bf16.msra.mxu0 0
  %160 = vmatprep.mubr.bf16.mxu0 0
  %161 = vmatmul.mubr.bf16.gmra.mrb[0].mxu0 %v31
  %v162 = vpop.f32.mrb[0].mxu0
  %v163 = vadd.f32 0.0, %v162
  %v164 = vpop.f32.mrb[0].mxu0
  %v165 = vadd.f32 0.0, %v164
  %v166 = vpop.f32.mrb[0].mxu0
  %v167 = vadd.f32 0.0, %v166
  %v168 = vpop.f32.mrb[0].mxu0
  %v169 = vadd.f32 0.0, %v168
  %170 = vdwg.mxu0
  %v171 = vadd.f32 %v25, %v163
  %v172 = vadd.f32 %v26, %v165
  %v173 = vadd.f32 %v27, %v167
  %v174 = vadd.f32 %v28, %v169
  %175 = vst [vmem:[#allocation2] sm:$0xff] %v171
  %176 = vst [vmem:[#allocation2 + $0x8] sm:$0xff] %v172
  %177 = vst [vmem:[#allocation2 + $0x10] sm:$0xff] %v173
  %178 = vst [vmem:[#allocation2 + $0x18] sm:$0xff] %v174
  // Predicated region
  $region18: #{transformer_forward.45} parent=0 // pred_check
    %p179 = pneg %p17
  $region19: #{transformer_forward.45} parent=0 // pred_check_branch
    %181 = sbr.rel (%p179) target = $region21
  $region20: #{transformer_forward.45} parent=0 // pred_region
    %v182 = vld [vmem:[#allocation2] sm:$0xff]
    %v183 = vld [vmem:[#allocation2 + $0x8] sm:$0xff]
    %v184 = vld [vmem:[#allocation2 + $0x10] sm:$0xff]
    %v185 = vld [vmem:[#allocation2 + $0x18] sm:$0xff]
    %v186 = vld [vmem:[%s2] sm:$0x3]
    %v188 = vlaneseq
    %v189 = vshrl.u32 %v188, 7
    %v190 = vsub.s32 0, %v189
    %v191 = vrot.slane %v186, %v190
    %v192 = vlaneseq
    %v193 = vshrl.u32 %v192, 7
    %v194 = vsub.s32 1, %v193
    %v195 = vrot.slane %v186, %v194
    %v198 = vadd.f32 %v182, %v191
    %v199 = vadd.f32 %v183, %v195
    %v200 = vadd.f32 %v184, %v191
    %v201 = vadd.f32 %v185, %v195
    %v202 = vpack.c.bf16 %v200, %v198
    %v204 = vunpack.c.l.b16 %v202
    %v205 = vunpack.c.h.b16 %v202
    %v206 = vpack.c.b16 %v204, %v204
    %v207 = vpack.c.b16 %v205, %v205
    %210 = vst [vmem:[%s3] sm:$0xf] %v206
    %211 = vst [vmem:[%s3 + $0x4] sm:$0xf] %v207
    %v212 = vpack.c.bf16 %v201, %v199
    %v214 = vunpack.c.l.b16 %v212
    %v215 = vunpack.c.h.b16 %v212
    %v216 = vpack.c.b16 %v214, %v214
    %v217 = vpack.c.b16 %v215, %v215
    %220 = vst [vmem:[%s4] sm:$0xf] %v216
    %221 = vst [vmem:[%s4 + $0x4] sm:$0xf] %v217
  $region21: #{transformer_forward.45} parent=0 // pred_fallthru
    _
  // Predicated region
  $region22: #{transformer_forward.45} parent=0 // pred_check
    _
  $region23: #{transformer_forward.45} parent=0 // pred_check_branch
    %223 = sbr.rel (0) target = $region25
  $region24: #{transformer_forward.45} parent=0 // pred_region
    _
  $region25: #{transformer_forward.45} parent=0 // pred_fallthru
    _
  // Predicated region
  $region26: #{transformer_forward.45} parent=0 // pred_check
    _
  $region27: #{transformer_forward.45} parent=0 // pred_check_branch
    %225 = sbr.rel (0) target = $region29
  $region28: #{transformer_forward.45} parent=0 // pred_region
    _
  $region29: #{transformer_forward.45} parent=0 // pred_fallthru
    _
  // Predicated region
  $region30: #{transformer_forward.45} parent=0 // pred_check
    _
  $region31: #{transformer_forward.45} parent=0 // pred_check_branch
    %227 = sbr.rel (0) target = $region33
  $region32: #{transformer_forward.45} parent=0 // pred_region
    _
  $region33: #{transformer_forward.45} parent=0 // pred_fallthru
    _
  // Predicated region
  $region34: #{transformer_forward.45} parent=0 // pred_check
    _
  $region35: #{transformer_forward.45} parent=0 // pred_check_branch
    %229 = sbr.rel (0) target = $region37
  $region36: #{transformer_forward.45} parent=0 // pred_region
    _
  $region37: #{transformer_forward.45} parent=0 // pred_fallthru
    _

// kernel: transformer_forward.36
$region0: #{transformer_forward.36}
  #allocation0 [shape = 'u32[]', space=smem, size = 0x4, offset = 0x4, fixed_abs, tag = 'smem constant byte address 0x4 - core index']
  #allocation1 [shape = 'u32[144,128]{1,0:T(1,128)}', space=vmem, size = 0x12000, scoped, tag = 'internal scratch']
  #allocation2 [shape = 'f32[16,128]{1,0:T(8,128)}', space=vmem, size = 0x2000, scoped, tag = 'scratch operand']
  %s0 = inlined_call_operand.vmem [shape: f32[16,128], index: 0, kind: input, shape index: {}]
  %s1 = inlined_call_operand.vmem [shape: bf16[128,128], index: 1, kind: input, shape index: {}]
  %s2 = inlined_call_operand.vmem [shape: f32[1,128], index: 2, kind: input, shape index: {}]
  %s3 = inlined_call_operand.vmem [shape: bf16[16,128], index: 3, kind: output, shape index: {}]
  %s4 = sld [smem:[#allocation0]]
  $region30: #{transformer_forward.36} parent=0
    _
  %s6 = ssub.s32 1, %s4
  %s7 = scalar_select 0, %s6, %s4
  // Predicated region
  $region2: #{transformer_forward.36} parent=0 // pred_check
    _
  $region3: #{transformer_forward.36} parent=0 // pred_check_branch
    %9 = sbr.rel (0) target = $region5
  $region4: #{transformer_forward.36} parent=0 // pred_region
    _
  $region5: #{transformer_forward.36} parent=0 // pred_fallthru
    _
  // Predicated region
  $region6: #{transformer_forward.36} parent=0 // pred_check
    _
  $region7: #{transformer_forward.36} parent=0 // pred_check_branch
    %11 = sbr.rel (0) target = $region9
  $region8: #{transformer_forward.36} parent=0 // pred_region
    _
  $region9: #{transformer_forward.36} parent=0 // pred_fallthru
    _
  // Predicated region
  $region10: #{transformer_forward.36} parent=0 // pred_check
    _
  $region11: #{transformer_forward.36} parent=0 // pred_check_branch
    %13 = sbr.rel (0) target = $region13
  $region12: #{transformer_forward.36} parent=0 // pred_region
    _
  $region13: #{transformer_forward.36} parent=0 // pred_fallthru
    _
  %p15 = scmp.eq.s32.totalorder 0, 0
  // Predicated region
  $region14: #{transformer_forward.36} parent=0 // pred_check
    %p16 = pneg %p15
  $region15: #{transformer_forward.36} parent=0 // pred_check_branch
    %18 = sbr.rel (%p16) target = $region17
  $region16: #{transformer_forward.36} parent=0 // pred_region
    %19 = vst [vmem:[#allocation2] sm:$0xff] 0.0
    %20 = vst [vmem:[#allocation2 + $0x8] sm:$0xff] 0.0
  $region17: #{transformer_forward.36} parent=0 // pred_fallthru
    _
  %v21 = vld [vmem:[#allocation2] sm:$0xff]
  %v22 = vld [vmem:[#allocation2 + $0x8] sm:$0xff]
  %v23 = vld [vmem:[%s0] sm:$0xff]
  %v24 = vld [vmem:[%s0 + $0x8] sm:$0xff]
  %v25 = vpack.c.bf16 %v24, %v23
  %v26 = vld [vmem:[%s1] sm:$0xf]
  %v27 = vld [vmem:[%s1 + $0x4] sm:$0xf]
  %v28 = vld [vmem:[%s1 + $0x8] sm:$0xf]
  %v29 = vld [vmem:[%s1 + $0xc] sm:$0xf]
  %v30 = vld [vmem:[%s1 + $0x10] sm:$0xf]
  %v31 = vld [vmem:[%s1 + $0x14] sm:$0xf]
  %v32 = vld [vmem:[%s1 + $0x18] sm:$0xf]
  %v33 = vld [vmem:[%s1 + $0x1c] sm:$0xf]
  %v34 = vld [vmem:[%s1 + $0x20] sm:$0xf]
  %v35 = vld [vmem:[%s1 + $0x24] sm:$0xf]
  %v36 = vld [vmem:[%s1 + $0x28] sm:$0xf]
  %v37 = vld [vmem:[%s1 + $0x2c] sm:$0xf]
  %v38 = vld [vmem:[%s1 + $0x30] sm:$0xf]
  %v39 = vld [vmem:[%s1 + $0x34] sm:$0xf]
  %v40 = vld [vmem:[%s1 + $0x38] sm:$0xf]
  %v41 = vld [vmem:[%s1 + $0x3c] sm:$0xf]
  %v58 = vunpack.c.l.b16 %v26
  %v59 = vunpack.c.l.b16 %v27
  %v60 = vunpack.c.l.b16 %v28
  %v61 = vunpack.c.l.b16 %v29
  %v62 = vunpack.c.l.b16 %v30
  %v63 = vunpack.c.l.b16 %v31
  %v64 = vunpack.c.l.b16 %v32
  %v65 = vunpack.c.l.b16 %v33
  %v66 = vunpack.c.l.b16 %v34
  %v67 = vunpack.c.l.b16 %v35
  %v68 = vunpack.c.l.b16 %v36
  %v69 = vunpack.c.l.b16 %v37
  %v70 = vunpack.c.l.b16 %v38
  %v71 = vunpack.c.l.b16 %v39
  %v72 = vunpack.c.l.b16 %v40
  %v73 = vunpack.c.l.b16 %v41
  %v74 = vpack.c.b16 %v59, %v58
  %v75 = vpack.c.b16 %v61, %v60
  %v76 = vpack.c.b16 %v63, %v62
  %v77 = vpack.c.b16 %v65, %v64
  %v78 = vpack.c.b16 %v67, %v66
  %v79 = vpack.c.b16 %v69, %v68
  %v80 = vpack.c.b16 %v71, %v70
  %v81 = vpack.c.b16 %v73, %v72
  %90 = vmatprep.subr.bf16.mxu0 0
  %91 = vmatpush1.bf16.msra.mxu0 %v74
  %92 = vmatprep.subr.bf16.mxu0 0
  %93 = vmatpush1.bf16.msra.mxu0 %v75
  %94 = vmatprep.subr.bf16.mxu0 0
  %95 = vmatpush1.bf16.msra.mxu0 %v76
  %96 = vmatprep.subr.bf16.mxu0 0
  %97 = vmatpush1.bf16.msra.mxu0 %v77
  %98 = vmatprep.subr.bf16.mxu0 0
  %99 = vmatpush1.bf16.msra.mxu0 %v78
  %100 = vmatprep.subr.bf16.mxu0 0
  %101 = vmatpush1.bf16.msra.mxu0 %v79
  %102 = vmatprep.subr.bf16.mxu0 0
  %103 = vmatpush1.bf16.msra.mxu0 %v80
  %104 = vmatprep.subr.bf16.mxu0 0
  %105 = vmatpush1.bf16.msra.mxu0 %v81
  %106 = vmatprep.subr.bf16.mxu0 0
  %107 = vmatpush1.bf16.msra.mxu0 0
  %108 = vmatprep.subr.bf16.mxu0 0
  %109 = vmatpush1.bf16.msra.mxu0 0
  %110 = vmatprep.subr.bf16.mxu0 0
  %111 = vmatpush1.bf16.msra.mxu0 0
  %112 = vmatprep.subr.bf16.mxu0 0
  %113 = vmatpush1.bf16.msra.mxu0 0
  %114 = vmatprep.subr.bf16.mxu0 0
  %115 = vmatpush1.bf16.msra.mxu0 0
  %116 = vmatprep.subr.bf16.mxu0 0
  %117 = vmatpush1.bf16.msra.mxu0 0
  %118 = vmatprep.subr.bf16.mxu0 0
  %119 = vmatpush1.bf16.msra.mxu0 0
  %120 = vmatprep.subr.bf16.mxu0 0
  %121 = vmatpush1.bf16.msra.mxu0 0
  %122 = vmatprep.mubr.bf16.mxu0 0
  %123 = vmatmul.mubr.bf16.gmra.mrb[0].mxu0 %v25
  %v124 = vpop.f32.mrb[0].mxu0
  %v125 = vadd.f32 0.0, %v124
  %v126 = vpop.f32.mrb[0].mxu0
  %v127 = vpop.f32.mrb[0].mxu0
  %v128 = vadd.f32 0.0, %v127
  %v129 = vpop.f32.mrb[0].mxu0
  %130 = vdwg.mxu0
  %v131 = vadd.f32 %v21, %v125
  %v132 = vadd.f32 %v22, %v128
  %133 = vst [vmem:[#allocation2] sm:$0xff] %v131
  %134 = vst [vmem:[#allocation2 + $0x8] sm:$0xff] %v132
  // Predicated region
  $region18: #{transformer_forward.36} parent=0 // pred_check
    %p135 = pneg %p15
  $region19: #{transformer_forward.36} parent=0 // pred_check_branch
    %137 = sbr.rel (%p135) target = $region21
  $region20: #{transformer_forward.36} parent=0 // pred_region
    %v138 = vld [vmem:[#allocation2] sm:$0xff]
    %v139 = vld [vmem:[#allocation2 + $0x8] sm:$0xff]
    %v140 = vld [vmem:[%s2] sm:$0x1]
    %v142 = vlaneseq
    %v143 = vshrl.u32 %v142, 7
    %v144 = vsub.s32 0, %v143
    %v145 = vrot.slane %v140, %v144
    %v147 = vadd.f32 %v138, %v145
    %v148 = vadd.f32 %v139, %v145
    %v149 = vpack.c.bf16 %v148, %v147
    %v151 = vunpack.c.l.b16 %v149
    %v152 = vunpack.c.h.b16 %v149
    %v153 = vpack.c.b16 %v151, %v151
    %v154 = vpack.c.b16 %v152, %v152
    %157 = vst [vmem:[%s3] sm:$0xf] %v153
    %158 = vst [vmem:[%s3 + $0x4] sm:$0xf] %v154
  $region21: #{transformer_forward.36} parent=0 // pred_fallthru
    _
  // Predicated region
  $region22: #{transformer_forward.36} parent=0 // pred_check
    _
  $region23: #{transformer_forward.36} parent=0 // pred_check_branch
    %160 = sbr.rel (0) target = $region25
  $region24: #{transformer_forward.36} parent=0 // pred_region
    _
  $region25: #{transformer_forward.36} parent=0 // pred_fallthru
    _
  // Predicated region
  $region26: #{transformer_forward.36} parent=0 // pred_check
    _
  $region27: #{transformer_forward.36} parent=0 // pred_check_branch
    %162 = sbr.rel (0) target = $region29
  $region28: #{transformer_forward.36} parent=0 // pred_region
    _
  $region29: #{transformer_forward.36} parent=0 // pred_fallthru
    _

// kernel: transformer_forward.49
$region0: #{transformer_forward.49}
  #allocation0 [shape = 'u32[]', space=smem, size = 0x4, offset = 0x4, fixed_abs, tag = 'smem constant byte address 0x4 - core index']
  #allocation1 [shape = 'u32[144,128]{1,0:T(1,128)}', space=vmem, size = 0x12000, scoped, tag = 'internal scratch']
  #allocation2 [shape = 'f32[16,32]{1,0:T(8,128)}', space=vmem, size = 0x2000, scoped, tag = 'scratch operand']
  %s0 = inlined_call_operand.vmem [shape: f32[16,128], index: 0, kind: input, shape index: {}]
  %s1 = inlined_call_operand.vmem [shape: bf16[128,32], index: 1, kind: input, shape index: {}]
  %s2 = inlined_call_operand.vmem [shape: f32[1,32], index: 2, kind: input, shape index: {}]
  %s3 = inlined_call_operand.hbm [shape: f32[16,32], index: 3, kind: output, shape index: {}]
  %s4 = sld [smem:[#allocation0]]
  $region30: #{transformer_forward.49} parent=0
    _
  %s6 = ssub.s32 1, %s4
  %s7 = scalar_select 0, %s6, %s4
  $region1: #{transformer_forward.49} parent=0
    #allocation3 [shape = 'u8[8192]{0}', space=vmem, size = 0x2000, scoped, tag = 'output window, operand 0, single buffered']
    #allocation4 [shape = 's32[1]{0}', space=sflag, size = 0x4, scoped, tag = 'scoped memory for transformer_forward.49']
    %8 = vsyncpa [#allocation4], 0
    // Predicated region
    $region2: #{transformer_forward.49} parent=1 // pred_check
      _
    $region3: #{transformer_forward.49} parent=1 // pred_check_branch
      %10 = sbr.rel (0) target = $region5
    $region4: #{transformer_forward.49} parent=1 // pred_region
      _
    $region5: #{transformer_forward.49} parent=1 // pred_fallthru
      _
    // Predicated region
    $region6: #{transformer_forward.49} parent=1 // pred_check
      _
    $region7: #{transformer_forward.49} parent=1 // pred_check_branch
      %12 = sbr.rel (0) target = $region9
    $region8: #{transformer_forward.49} parent=1 // pred_region
      _
    $region9: #{transformer_forward.49} parent=1 // pred_fallthru
      _
    // Predicated region
    $region10: #{transformer_forward.49} parent=1 // pred_check
      _
    $region11: #{transformer_forward.49} parent=1 // pred_check_branch
      %14 = sbr.rel (0) target = $region13
    $region12: #{transformer_forward.49} parent=1 // pred_region
      _
    $region13: #{transformer_forward.49} parent=1 // pred_fallthru
      _
    %p16 = scmp.eq.s32.totalorder 0, 0
    // Predicated region
    $region14: #{transformer_forward.49} parent=1 // pred_check
      %p17 = pneg %p16
    $region15: #{transformer_forward.49} parent=1 // pred_check_branch
      %19 = sbr.rel (%p17) target = $region17
    $region16: #{transformer_forward.49} parent=1 // pred_region
      %vm20 = vcmask 261120
      %21 = vst.msk [vmem:[#allocation2] sm:$0xff] %vm20, 0.0
      %22 = vst.msk [vmem:[#allocation2 + $0x8] sm:$0xff] %vm20, 0.0
    $region17: #{transformer_forward.49} parent=1 // pred_fallthru
      _
    %v23 = vld [vmem:[#allocation2] sm:$0xff]
    %v24 = vld [vmem:[#allocation2 + $0x8] sm:$0xff]
    %v25 = vld [vmem:[%s0] sm:$0xff]
    %v26 = vld [vmem:[%s0 + $0x8] sm:$0xff]
    %v27 = vpack.c.bf16 %v26, %v25
    %v28 = vld [vmem:[%s1] sm:$0xf]
    %v29 = vld [vmem:[%s1 + $0x4] sm:$0xf]
    %v30 = vld [vmem:[%s1 + $0x8] sm:$0xf]
    %v31 = vld [vmem:[%s1 + $0xc] sm:$0xf]
    %v32 = vld [vmem:[%s1 + $0x10] sm:$0xf]
    %v33 = vld [vmem:[%s1 + $0x14] sm:$0xf]
    %v34 = vld [vmem:[%s1 + $0x18] sm:$0xf]
    %v35 = vld [vmem:[%s1 + $0x1c] sm:$0xf]
    %v36 = vld [vmem:[%s1 + $0x20] sm:$0xf]
    %v37 = vld [vmem:[%s1 + $0x24] sm:$0xf]
    %v38 = vld [vmem:[%s1 + $0x28] sm:$0xf]
    %v39 = vld [vmem:[%s1 + $0x2c] sm:$0xf]
    %v40 = vld [vmem:[%s1 + $0x30] sm:$0xf]
    %v41 = vld [vmem:[%s1 + $0x34] sm:$0xf]
    %v42 = vld [vmem:[%s1 + $0x38] sm:$0xf]
    %v43 = vld [vmem:[%s1 + $0x3c] sm:$0xf]
    %v60 = vunpack.c.l.b16 %v28
    %v61 = vunpack.c.l.b16 %v29
    %v62 = vunpack.c.l.b16 %v30
    %v63 = vunpack.c.l.b16 %v31
    %v64 = vunpack.c.l.b16 %v32
    %v65 = vunpack.c.l.b16 %v33
    %v66 = vunpack.c.l.b16 %v34
    %v67 = vunpack.c.l.b16 %v35
    %v68 = vunpack.c.l.b16 %v36
    %v69 = vunpack.c.l.b16 %v37
    %v70 = vunpack.c.l.b16 %v38
    %v71 = vunpack.c.l.b16 %v39
    %v72 = vunpack.c.l.b16 %v40
    %v73 = vunpack.c.l.b16 %v41
    %v74 = vunpack.c.l.b16 %v42
    %v75 = vunpack.c.l.b16 %v43
    %v76 = vpack.c.b16 %v61, %v60
    %v77 = vpack.c.b16 %v63, %v62
    %v78 = vpack.c.b16 %v65, %v64
    %v79 = vpack.c.b16 %v67, %v66
    %v80 = vpack.c.b16 %v69, %v68
    %v81 = vpack.c.b16 %v71, %v70
    %v82 = vpack.c.b16 %v73, %v72
    %v83 = vpack.c.b16 %v75, %v74
    %92 = vmatprep.subr.bf16.mxu0 0
    %93 = vmatpush1.bf16.msra.mxu0 %v76
    %94 = vmatprep.subr.bf16.mxu0 0
    %95 = vmatpush1.bf16.msra.mxu0 %v77
    %96 = vmatprep.subr.bf16.mxu0 0
    %97 = vmatpush1.bf16.msra.mxu0 %v78
    %98 = vmatprep.subr.bf16.mxu0 0
    %99 = vmatpush1.bf16.msra.mxu0 %v79
    %100 = vmatprep.subr.bf16.mxu0 0
    %101 = vmatpush1.bf16.msra.mxu0 %v80
    %102 = vmatprep.subr.bf16.mxu0 0
    %103 = vmatpush1.bf16.msra.mxu0 %v81
    %104 = vmatprep.subr.bf16.mxu0 0
    %105 = vmatpush1.bf16.msra.mxu0 %v82
    %106 = vmatprep.subr.bf16.mxu0 0
    %107 = vmatpush1.bf16.msra.mxu0 %v83
    %108 = vmatprep.subr.bf16.mxu0 0
    %109 = vmatpush1.bf16.msra.mxu0 0
    %110 = vmatprep.subr.bf16.mxu0 0
    %111 = vmatpush1.bf16.msra.mxu0 0
    %112 = vmatprep.subr.bf16.mxu0 0
    %113 = vmatpush1.bf16.msra.mxu0 0
    %114 = vmatprep.subr.bf16.mxu0 0
    %115 = vmatpush1.bf16.msra.mxu0 0
    %116 = vmatprep.subr.bf16.mxu0 0
    %117 = vmatpush1.bf16.msra.mxu0 0
    %118 = vmatprep.subr.bf16.mxu0 0
    %119 = vmatpush1.bf16.msra.mxu0 0
    %120 = vmatprep.subr.bf16.mxu0 0
    %121 = vmatpush1.bf16.msra.mxu0 0
    %122 = vmatprep.subr.bf16.mxu0 0
    %123 = vmatpush1.bf16.msra.mxu0 0
    %124 = vmatprep.mubr.bf16.mxu0 0
    %125 = vmatmul.mubr.bf16.gmra.mrb[0].mxu0 %v27
    %v126 = vpop.f32.mrb[0].mxu0
    %v127 = vadd.f32 0.0, %v126
    %v128 = vpop.f32.mrb[0].mxu0
    %v129 = vpop.f32.mrb[0].mxu0
    %v130 = vadd.f32 0.0, %v129
    %v131 = vpop.f32.mrb[0].mxu0
    %132 = vdwg.mxu0
    %v133 = vadd.f32 %v23, %v127
    %v134 = vadd.f32 %v24, %v130
    %vm135 = vcmask 261120
    %136 = vst.msk [vmem:[#allocation2] sm:$0xff] %vm135, %v133
    %137 = vst.msk [vmem:[#allocation2 + $0x8] sm:$0xff] %vm135, %v134
    // Predicated region
    $region18: #{transformer_forward.49} parent=1 // pred_check
      %p138 = pneg %p16
    $region19: #{transformer_forward.49} parent=1 // pred_check_branch
      %140 = sbr.rel (%p138) target = $region21
    $region20: #{transformer_forward.49} parent=1 // pred_region
      %v141 = vld [vmem:[#allocation2] sm:$0xff]
      %v142 = vld [vmem:[#allocation2 + $0x8] sm:$0xff]
      %v143 = vld [vmem:[%s2] sm:$0x1]
      %v145 = vlaneseq
      %v146 = vshrl.u32 %v145, 7
      %v147 = vsub.s32 0, %v146
      %v148 = vrot.slane %v143, %v147
      %v150 = vadd.f32 %v141, %v148
      %v151 = vadd.f32 %v142, %v148
      %152 = vst.msk [vmem:[#allocation3] sm:$0xff] %vm135, %v150
      %153 = vst.msk [vmem:[#allocation3 + $0x8] sm:$0xff] %vm135, %v151
    $region21: #{transformer_forward.49} parent=1 // pred_fallthru
      _
    // Predicated region
    $region22: #{transformer_forward.49} parent=1 // pred_check
      _
    $region23: #{transformer_forward.49} parent=1 // pred_check_branch
      %155 = sbr.rel (0) target = $region25
    $region24: #{transformer_forward.49} parent=1 // pred_region
      %s157 = ssub.s32 256, 256
      %158 = vsyncadd [#allocation4], %s157
      %s159 = sshll.u32 [#allocation3], 4
      %s160 = int_to_ptr.vmem [resolvable:$true] %s159
      %165 = dma.vmem_to_hbm [thread:$0]  %s160, 256, %s3, [#allocation4], 128, 128, 8
    $region25: #{transformer_forward.49} parent=1 // pred_fallthru
      _
    // Predicated region
    $region26: #{transformer_forward.49} parent=1 // pred_check
      _
    $region27: #{transformer_forward.49} parent=1 // pred_check_branch
      %167 = sbr.rel (0) target = $region29
    $region28: #{transformer_forward.49} parent=1 // pred_region
      %168 = dma.done [#allocation4], 256
    $region29: #{transformer_forward.49} parent=1 // pred_fallthru
      _
    %169 = vsyncpa [#allocation4], 1

// kernel: transformer_forward.34
$region0: #{transformer_forward.34}
  #allocation0 [shape = 'u32[]', space=smem, size = 0x4, offset = 0x4, fixed_abs, tag = 'smem constant byte address 0x4 - core index']
  #allocation1 [shape = 'u32[144,128]{1,0:T(1,128)}', space=vmem, size = 0x12000, scoped, tag = 'internal scratch']
  #allocation2 [shape = 'f32[4,8,1]{2,1,0:T(8,128)}', space=vmem, size = 0x4000, scoped, tag = 'scratch operand']
  #allocation3 [shape = 'f32[4,8,1]{2,1,0:T(8,128)}', space=vmem, size = 0x4000, scoped, tag = 'scratch operand']
  #allocation4 [shape = 'f32[4,8,32]{2,1,0:T(8,128)}', space=vmem, size = 0x4000, scoped, tag = 'scratch operand']
  %s0 = inlined_call_operand.vmem [shape: bf16[2,8,128], index: 0, kind: input, shape index: {}]
  %s1 = inlined_call_operand.vmem [shape: bf16[2,8,128], index: 1, kind: input, shape index: {}]
  %s2 = inlined_call_operand.vmem [shape: bf16[2,8,128], index: 2, kind: input, shape index: {}]
  %s3 = inlined_call_operand.vmem [shape: s32[2,1,8], index: 3, kind: input, shape index: {}]
  %s4 = inlined_call_operand.vmem [shape: bf16[2,8,128], index: 4, kind: output, shape index: {}]
  %s5 = sld [smem:[#allocation0]]
  $region61: #{transformer_forward.34} parent=0
    _
  %s7 = ssub.s32 1, %s5
  %s8 = scalar_select 0, %s7, %s5
  loop: start=0, step=1, limit=4
  $region2: #{transformer_forward.34} parent=0 // loop_pre_header
    _
  $region3: #{transformer_forward.34} parent=0 // loop_header
    %s10 = sphi 0, %s14
    %p11 = scmp.ge.s32.totalorder %s10, 4
    %s17 = sphi 0, %s43
    %s18 = sphi 0, %s39
    %s19 = sphi 0, %s35
    %s20 = sphi 0, %s31
    %s21 = sphi 0, %s17
    %s22 = sphi 0, %s18
    %s23 = sphi 0, %s19
    %s24 = sphi 0, %s20
    %s25 = sphi 0, %s21
    %s26 = sphi 0, %s22
    %s27 = sphi 0, %s23
    %s28 = sphi 0, %s24
    %s50 = sphi 0, %s52
    %s53 = sphi 0, %s50
    %s54 = sphi 0, %s53
    %s70 = sphi 0, %s54
    %s80 = sphi 0, %s82
    %s83 = sphi 0, %s80
    %s84 = sphi 0, %s83
    %s100 = sphi 0, %s84
    %s110 = sphi 0, %s112
    %s113 = sphi 0, %s110
    %s114 = sphi 0, %s113
    %s130 = sphi 0, %s114
    %s138 = sphi 0, %s140
    %s141 = sphi 0, %s138
    %s142 = sphi 0, %s141
    %s158 = sphi 0, %s142
    %s168 = sphi 0, %s170
    %s171 = sphi 0, %s168
    %s172 = sphi 0, %s171
    %s188 = sphi 0, %s172
  $region4: #{transformer_forward.34} parent=0 // loop_header_branch
    %13 = sbr.rel (%p11) target = $region8
  $region5: #{transformer_forward.34} parent=0 // loop_body
    %s15 = ssub.s32 %s10, 1
    %s16 = ssub.s32 %s10, 2
    %s29 = sadd.s32 1, %s20
    %p30 = scmp.ge.s32.totalorder %s29, 1
    %s31 = scalar_select %p30, 0, %s29
    %s32 = sadd.s32 1, %s19
    %s33 = scalar_select %p30, %s32, %s19
    %p34 = scmp.ge.s32.totalorder %s33, 1
    %s35 = scalar_select %p34, 0, %s33
    %s36 = sadd.s32 1, %s18
    %s37 = scalar_select %p34, %s36, %s18
    %p38 = scmp.ge.s32.totalorder %s37, 1
    %s39 = scalar_select %p38, 0, %s37
    %s40 = sadd.s32 1, %s17
    %s41 = scalar_select %p38, %s40, %s17
    %p42 = scmp.ge.s32.totalorder %s41, 2
    %s43 = scalar_select %p42, 0, %s41
    %s44 = ssub.s32 %s17, %s43
    %s45 = ssub.s32 %s19, %s35
    %s46 = sor.u32 %s44, %s45
    %s47 = ssub.s32 %s18, %s39
    %s48 = sor.u32 %s46, %s47
    %p49 = scmp.eq.s32.totalorder %s48, 0
    %s51 = sadd.s32 %s50, 1
    %s52 = scalar_select %p49, %s50, %s51
    %p55 = pneg %p49
    %p56 = scmp.eq.s32.totalorder %s10, 1
    %p57 = por %p55, %p56
    %p58 = scmp.ne.s32.totalorder %s50, %s53
    %p59 = scmp.eq.s32.totalorder %s10, 0
    %p60 = por %p58, %p59
    %p61 = scmp.ne.s32.totalorder %s50, %s53
    %p62 = scmp.eq.s32.totalorder %s15, 1
    %p63 = por %p61, %p62
    %p64 = scmp.ne.s32.totalorder %s53, %s54
    %p65 = scmp.eq.s32.totalorder %s15, 0
    %p66 = por %p64, %p65
    %p67 = scmp.ne.s32.totalorder %s53, %s54
    %p68 = scmp.eq.s32.totalorder %s16, 1
    %p69 = por %p67, %p68
    %p71 = scmp.ne.s32.totalorder %s54, %s70
    %p72 = scmp.eq.s32.totalorder %s16, 0
    %p73 = por %p71, %p72
    %s74 = ssub.s32 %s17, %s43
    %s75 = ssub.s32 %s20, %s31
    %s76 = sor.u32 %s74, %s75
    %s77 = ssub.s32 %s18, %s39
    %s78 = sor.u32 %s76, %s77
    %p79 = scmp.eq.s32.totalorder %s78, 0
    %s81 = sadd.s32 %s80, 1
    %s82 = scalar_select %p79, %s80, %s81
    %p85 = pneg %p79
    %p86 = scmp.eq.s32.totalorder %s10, 1
    %p87 = por %p85, %p86
    %p88 = scmp.ne.s32.totalorder %s80, %s83
    %p89 = scmp.eq.s32.totalorder %s10, 0
    %p90 = por %p88, %p89
    %p91 = scmp.ne.s32.totalorder %s80, %s83
    %p92 = scmp.eq.s32.totalorder %s15, 1
    %p93 = por %p91, %p92
    %p94 = scmp.ne.s32.totalorder %s83, %s84
    %p95 = scmp.eq.s32.totalorder %s15, 0
    %p96 = por %p94, %p95
    %p97 = scmp.ne.s32.totalorder %s83, %s84
    %p98 = scmp.eq.s32.totalorder %s16, 1
    %p99 = por %p97, %p98
    %p101 = scmp.ne.s32.totalorder %s84, %s100
    %p102 = scmp.eq.s32.totalorder %s16, 0
    %p103 = por %p101, %p102
    %s104 = ssub.s32 %s17, %s43
    %s105 = ssub.s32 %s20, %s31
    %s106 = sor.u32 %s104, %s105
    %s107 = ssub.s32 %s18, %s39
    %s108 = sor.u32 %s106, %s107
    %p109 = scmp.eq.s32.totalorder %s108, 0
    %s111 = sadd.s32 %s110, 1
    %s112 = scalar_select %p109, %s110, %s111
    %p115 = pneg %p109
    %p116 = scmp.eq.s32.totalorder %s10, 1
    %p117 = por %p115, %p116
    %p118 = scmp.ne.s32.totalorder %s110, %s113
    %p119 = scmp.eq.s32.totalorder %s10, 0
    %p120 = por %p118, %p119
    %p121 = scmp.ne.s32.totalorder %s110, %s113
    %p122 = scmp.eq.s32.totalorder %s15, 1
    %p123 = por %p121, %p122
    %p124 = scmp.ne.s32.totalorder %s113, %s114
    %p125 = scmp.eq.s32.totalorder %s15, 0
    %p126 = por %p124, %p125
    %p127 = scmp.ne.s32.totalorder %s113, %s114
    %p128 = scmp.eq.s32.totalorder %s16, 1
    %p129 = por %p127, %p128
    %p131 = scmp.ne.s32.totalorder %s114, %s130
    %p132 = scmp.eq.s32.totalorder %s16, 0
    %p133 = por %p131, %p132
    %s134 = ssub.s32 %s17, %s43
    %s135 = ssub.s32 %s20, %s31
    %s136 = sor.u32 %s134, %s135
    %p137 = scmp.eq.s32.totalorder %s136, 0
    %s139 = sadd.s32 %s138, 1
    %s140 = scalar_select %p137, %s138, %s139
    %p143 = pneg %p137
    %p144 = scmp.eq.s32.totalorder %s10, 1
    %p145 = por %p143, %p144
    %p146 = scmp.ne.s32.totalorder %s138, %s141
    %p147 = scmp.eq.s32.totalorder %s10, 0
    %p148 = por %p146, %p147
    %p149 = scmp.ne.s32.totalorder %s138, %s141
    %p150 = scmp.eq.s32.totalorder %s15, 1
    %p151 = por %p149, %p150
    %p152 = scmp.ne.s32.totalorder %s141, %s142
    %p153 = scmp.eq.s32.totalorder %s15, 0
    %p154 = por %p152, %p153
    %p155 = scmp.ne.s32.totalorder %s141, %s142
    %p156 = scmp.eq.s32.totalorder %s16, 1
    %p157 = por %p155, %p156
    %p159 = scmp.ne.s32.totalorder %s142, %s158
    %p160 = scmp.eq.s32.totalorder %s16, 0
    %p161 = por %p159, %p160
    %s162 = ssub.s32 %s17, %s43
    %s163 = ssub.s32 %s19, %s35
    %s164 = sor.u32 %s162, %s163
    %s165 = ssub.s32 %s18, %s39
    %s166 = sor.u32 %s164, %s165
    %p167 = scmp.eq.s32.totalorder %s166, 0
    %s169 = sadd.s32 %s168, 1
    %s170 = scalar_select %p167, %s168, %s169
    %p173 = pneg %p167
    %p174 = scmp.eq.s32.totalorder %s10, 1
    %p175 = por %p173, %p174
    %p176 = scmp.ne.s32.totalorder %s168, %s171
    %p177 = scmp.eq.s32.totalorder %s10, 0
    %p178 = por %p176, %p177
    %p179 = scmp.ne.s32.totalorder %s168, %s171
    %p180 = scmp.eq.s32.totalorder %s15, 1
    %p181 = por %p179, %p180
    %p182 = scmp.ne.s32.totalorder %s171, %s172
    %p183 = scmp.eq.s32.totalorder %s15, 0
    %p184 = por %p182, %p183
    %p185 = scmp.ne.s32.totalorder %s171, %s172
    %p186 = scmp.eq.s32.totalorder %s16, 1
    %p187 = por %p185, %p186
    %p189 = scmp.ne.s32.totalorder %s172, %s188
    %p190 = scmp.eq.s32.totalorder %s16, 0
    %p191 = por %p189, %p190
    %p192 = scmp.le.s32.totalorder 1, %s10
    %p193 = scmp.lt.s32.totalorder %s10, 3
    %p194 = pnand %p192, %p193
    %p195 = pneg %p194
    // Predicated region
    $region9: #{transformer_forward.34} parent=5 // pred_check
      _
    $region10: #{transformer_forward.34} parent=5 // pred_check_branch
      %197 = sbr.rel (%p194) target = $region12
    $region11: #{transformer_forward.34} parent=5 // pred_region
      %s198 = ssub.s32 %s10, 1
    $region12: #{transformer_forward.34} parent=5 // pred_fallthru
      _
    %p199 = scmp.lt.s32.totalorder %s10, 2
    // Predicated region
    $region13: #{transformer_forward.34} parent=5 // pred_check
      %p200 = pneg %p199
    $region14: #{transformer_forward.34} parent=5 // pred_check_branch
      %202 = sbr.rel (%p200) target = $region16
    $region15: #{transformer_forward.34} parent=5 // pred_region
      // Predicated region
      $region17: #{transformer_forward.34} parent=15 // pred_check
        %p203 = pneg %p60
      $region18: #{transformer_forward.34} parent=15 // pred_check_branch
        %205 = sbr.rel (%p203) target = $region20
      $region19: #{transformer_forward.34} parent=15 // pred_region
        %p206 = scmp.lt.s32.totalorder %s17, 1
        %s207 = scalar_select %p206, %s17, 1
        %p208 = scmp.lt.s32.totalorder %s19, 0
        %s209 = scalar_select %p208, %s19, 0
        %p210 = scmp.lt.s32.totalorder %s18, 0
        %s211 = scalar_select %p210, %s18, 0
        %s212 = sadd.s32 %s211, %s209
        %s213 = sadd.s32 %s212, %s207
        %s214 = smul.addr %s213, 4
        %s215 = scalar_lea.vmem %s0, %s214
      $region20: #{transformer_forward.34} parent=15 // pred_fallthru
        _
      // Predicated region
      $region21: #{transformer_forward.34} parent=15 // pred_check
        %p216 = pneg %p90
      $region22: #{transformer_forward.34} parent=15 // pred_check_branch
        %218 = sbr.rel (%p216) target = $region24
      $region23: #{transformer_forward.34} parent=15 // pred_region
        %p219 = scmp.lt.s32.totalorder %s17, 1
        %s220 = scalar_select %p219, %s17, 1
        %p221 = scmp.lt.s32.totalorder %s20, 0
        %s222 = scalar_select %p221, %s20, 0
        %p223 = scmp.lt.s32.totalorder %s18, 0
        %s224 = scalar_select %p223, %s18, 0
        %s225 = sadd.s32 %s224, %s222
        %s226 = sadd.s32 %s225, %s220
        %s227 = smul.addr %s226, 4
        %s228 = scalar_lea.vmem %s1, %s227
      $region24: #{transformer_forward.34} parent=15 // pred_fallthru
        _
      // Predicated region
      $region25: #{transformer_forward.34} parent=15 // pred_check
        %p229 = pneg %p120
      $region26: #{transformer_forward.34} parent=15 // pred_check_branch
        %231 = sbr.rel (%p229) target = $region28
      $region27: #{transformer_forward.34} parent=15 // pred_region
        %p232 = scmp.lt.s32.totalorder %s17, 1
        %s233 = scalar_select %p232, %s17, 1
        %p234 = scmp.lt.s32.totalorder %s20, 0
        %s235 = scalar_select %p234, %s20, 0
        %p236 = scmp.lt.s32.totalorder %s18, 0
        %s237 = scalar_select %p236, %s18, 0
        %s238 = sadd.s32 %s237, %s235
        %s239 = sadd.s32 %s238, %s233
        %s240 = smul.addr %s239, 4
        %s241 = scalar_lea.vmem %s2, %s240
      $region28: #{transformer_forward.34} parent=15 // pred_fallthru
        _
      // Predicated region
      $region29: #{transformer_forward.34} parent=15 // pred_check
        %p242 = pneg %p148
      $region30: #{transformer_forward.34} parent=15 // pred_check_branch
        %244 = sbr.rel (%p242) target = $region32
      $region31: #{transformer_forward.34} parent=15 // pred_region
        %p245 = scmp.lt.s32.totalorder %s17, 1
        %s246 = scalar_select %p245, %s17, 1
        %p247 = scmp.lt.s32.totalorder %s20, 0
        %s248 = scalar_select %p247, %s20, 0
        %s249 = sadd.s32 %s248, %s246
        %s250 = scalar_lea.vmem %s3, %s249
      $region32: #{transformer_forward.34} parent=15 // pred_fallthru
        _
    $region16: #{transformer_forward.34} parent=5 // pred_fallthru
      _
    %p251 = scmp.le.s32.totalorder 1, %s10
    %p252 = scmp.lt.s32.totalorder %s10, 3
    %p253 = pnand %p251, %p252
    %p254 = pneg %p253
    // Predicated region
    $region33: #{transformer_forward.34} parent=5 // pred_check
      _
    $region34: #{transformer_forward.34} parent=5 // pred_check_branch
      %256 = sbr.rel (%p253) target = $region36
    $region35: #{transformer_forward.34} parent=5 // pred_region
      %s257 = ssub.s32 %s10, 1
      %p258 = scmp.lt.s32.totalorder %s21, 1
      %s259 = scalar_select %p258, %s21, 1
      %p260 = scmp.lt.s32.totalorder %s23, 0
      %s261 = scalar_select %p260, %s23, 0
      %p262 = scmp.lt.s32.totalorder %s22, 0
      %s263 = scalar_select %p262, %s22, 0
      %s264 = sadd.s32 %s263, %s261
      %s265 = sadd.s32 %s264, %s259
      %s266 = smul.addr %s265, 4
      %s267 = scalar_lea.vmem %s0, %s266
      %p268 = pneg %p66
      %p269 = pneg %p63
      %p270 = scmp.lt.s32.totalorder %s21, 1
      %s271 = scalar_select %p270, %s21, 1
      %p272 = scmp.lt.s32.totalorder %s24, 0
      %s273 = scalar_select %p272, %s24, 0
      %p274 = scmp.lt.s32.totalorder %s22, 0
      %s275 = scalar_select %p274, %s22, 0
      %s276 = sadd.s32 %s275, %s273
      %s277 = sadd.s32 %s276, %s271
      %s278 = smul.addr %s277, 4
      %s279 = scalar_lea.vmem %s1, %s278
      %p280 = pneg %p96
      %p281 = pneg %p93
      %p282 = scmp.lt.s32.totalorder %s21, 1
      %s283 = scalar_select %p282, %s21, 1
      %p284 = scmp.lt.s32.totalorder %s24, 0
      %s285 = scalar_select %p284, %s24, 0
      %p286 = scmp.lt.s32.totalorder %s22, 0
      %s287 = scalar_select %p286, %s22, 0
      %s288 = sadd.s32 %s287, %s285
      %s289 = sadd.s32 %s288, %s283
      %s290 = smul.addr %s289, 4
      %s291 = scalar_lea.vmem %s2, %s290
      %p292 = pneg %p126
      %p293 = pneg %p123
      %p294 = scmp.lt.s32.totalorder %s21, 1
      %s295 = scalar_select %p294, %s21, 1
      %p296 = scmp.lt.s32.totalorder %s24, 0
      %s297 = scalar_select %p296, %s24, 0
      %s298 = sadd.s32 %s297, %s295
      %s299 = scalar_lea.vmem %s3, %s298
      %p300 = pneg %p154
      %p301 = pneg %p151
      %p302 = pneg %p184
      %p303 = pneg %p181
      %p304 = scmp.lt.s32.totalorder %s21, 1
      %s305 = scalar_select %p304, %s21, 1
      %p306 = scmp.lt.s32.totalorder %s23, 0
      %s307 = scalar_select %p306, %s23, 0
      %p308 = scmp.lt.s32.totalorder %s22, 0
      %s309 = scalar_select %p308, %s22, 0
      %s310 = sadd.s32 %s309, %s307
      %s311 = sadd.s32 %s310, %s305
      %s312 = smul.addr %s311, 4
      %s313 = scalar_lea.vmem %s4, %s312
      %p314 = scmp.lt.s32.totalorder %s21, 1
      %s315 = scalar_select %p314, %s21, 1
      %p316 = scmp.lt.s32.totalorder %s23, 0
      %s317 = scalar_select %p316, %s23, 0
      %p318 = scmp.lt.s32.totalorder %s22, 0
      %s319 = scalar_select %p318, %s22, 0
      %s320 = sadd.s32 %s319, %s317
      %s321 = sadd.s32 %s320, %s315
      %s322 = smul.addr %s321, 4
      %s323 = scalar_lea.vmem %s0, %s322
      %p324 = scmp.lt.s32.totalorder %s21, 1
      %s325 = scalar_select %p324, %s21, 1
      %p326 = scmp.lt.s32.totalorder %s24, 0
      %s327 = scalar_select %p326, %s24, 0
      %p328 = scmp.lt.s32.totalorder %s22, 0
      %s329 = scalar_select %p328, %s22, 0
      %s330 = sadd.s32 %s329, %s327
      %s331 = sadd.s32 %s330, %s325
      %s332 = smul.addr %s331, 4
      %s333 = scalar_lea.vmem %s1, %s332
      %p334 = scmp.lt.s32.totalorder %s21, 1
      %s335 = scalar_select %p334, %s21, 1
      %p336 = scmp.lt.s32.totalorder %s24, 0
      %s337 = scalar_select %p336, %s24, 0
      %p338 = scmp.lt.s32.totalorder %s22, 0
      %s339 = scalar_select %p338, %s22, 0
      %s340 = sadd.s32 %s339, %s337
      %s341 = sadd.s32 %s340, %s335
      %s342 = smul.addr %s341, 4
      %s343 = scalar_lea.vmem %s2, %s342
      %p344 = scmp.lt.s32.totalorder %s21, 1
      %s345 = scalar_select %p344, %s21, 1
      %p346 = scmp.lt.s32.totalorder %s24, 0
      %s347 = scalar_select %p346, %s24, 0
      %s348 = sadd.s32 %s347, %s345
      %s349 = scalar_lea.vmem %s3, %s348
      %p350 = scmp.lt.s32.totalorder %s21, 1
      %s351 = scalar_select %p350, %s21, 1
      %p352 = scmp.lt.s32.totalorder %s23, 0
      %s353 = scalar_select %p352, %s23, 0
      %p354 = scmp.lt.s32.totalorder %s22, 0
      %s355 = scalar_select %p354, %s22, 0
      %s356 = sadd.s32 %s355, %s353
      %s357 = sadd.s32 %s356, %s351
      %s358 = smul.addr %s357, 4
      %s359 = scalar_lea.vmem %s4, %s358
      %p361 = scmp.eq.s32.totalorder %s24, 0
      // Predicated region
      $region37: #{transformer_forward.34} parent=35 // pred_check
        %p362 = pneg %p361
      $region38: #{transformer_forward.34} parent=35 // pred_check_branch
        %364 = sbr.rel (%p362) target = $region40
      $region39: #{transformer_forward.34} parent=35 // pred_region
        %vm365 = vcmask 7168
        %366 = vst.msk [vmem:[#allocation2] sm:$0xff] %vm365, -inf
        %367 = vst.msk [vmem:[#allocation2 + $0x8] sm:$0xff] %vm365, -inf
        %368 = vst.msk [vmem:[#allocation2 + $0x10] sm:$0xff] %vm365, -inf
        %369 = vst.msk [vmem:[#allocation2 + $0x18] sm:$0xff] %vm365, -inf
        %370 = vst.msk [vmem:[#allocation3] sm:$0xff] %vm365, 0.0
        %371 = vst.msk [vmem:[#allocation3 + $0x8] sm:$0xff] %vm365, 0.0
        %372 = vst.msk [vmem:[#allocation3 + $0x10] sm:$0xff] %vm365, 0.0
        %373 = vst.msk [vmem:[#allocation3 + $0x18] sm:$0xff] %vm365, 0.0
        %vm374 = vcmask 261120
        %375 = vst.msk [vmem:[#allocation4] sm:$0xff] %vm374, 0.0
        %376 = vst.msk [vmem:[#allocation4 + $0x8] sm:$0xff] %vm374, 0.0
        %377 = vst.msk [vmem:[#allocation4 + $0x10] sm:$0xff] %vm374, 0.0
        %378 = vst.msk [vmem:[#allocation4 + $0x18] sm:$0xff] %vm374, 0.0
      $region40: #{transformer_forward.34} parent=35 // pred_fallthru
        _
      %s379 = smul.u32 %s24, 8
      %s380 = smul.u32 %s23, 8
      %s381 = sadd.s32 %s380, 7
      %p382 = scmp.le.s32.totalorder %s379, %s381
      // Predicated region
      $region41: #{transformer_forward.34} parent=35 // pred_check
        %p383 = pneg %p382
      $region42: #{transformer_forward.34} parent=35 // pred_check_branch
        %385 = sbr.rel (%p383) target = $region44
      $region43: #{transformer_forward.34} parent=35 // pred_region
        %v386 = vld [vmem:[%s323] sm:$0xf]
        %v387 = vld [vmem:[%s333] sm:$0xf]
        %v388 = vld [vmem:[%s343] sm:$0xf]
        %v389 = vld [vmem:[%s349] sm:$0x1]
        %vm390 = vcmp.ne.s32.totalorder %v389, 0
        %v391 = vlaneseq
        %v392 = vshrl.u32 %v391, 7
        %v393 = vstv %s380
        %v394 = vadd.s32 %v392, %v393
        %v395 = vlaneseq
        %v396 = vand.u32 %v395, 127
        %v397 = vstv %s379
        %v398 = vadd.s32 %v396, %v397
        %vm399 = vcmp.le.s32.totalorder %v398, %v394
        %v400 = vsel %vm390, 1, 0
        %v401 = vlaneseq
        %v402 = vshrl.u32 %v401, 7
        %v403 = vsub.s32 0, %v402
        %v404 = vrot.slane %v400, %v403
        %vm405 = vcmp.eq.s32.totalorder %v404, 1
        %vm406 = vmand %vm405, %vm399
        %vm407 = vcmask 261120
        %v409 = vsel %vm407, %v386, 0
        %v412 = vsel %vm407, %v387, 0
        %414 = vmatprep.subr.bf16.mxu0 0
        %415 = vmatpush1.bf16.xpose.msra.mxu0 %v412
        %416 = vmatprep.subr.bf16.mxu0 0
        %417 = vmatpush1.bf16.xpose.msra.mxu0 0
        %418 = vmatprep.subr.bf16.mxu0 0
        %419 = vmatpush1.bf16.xpose.msra.mxu0 0
        %420 = vmatprep.subr.bf16.mxu0 0
        %421 = vmatpush1.bf16.xpose.msra.mxu0 0
        %422 = vmatprep.subr.bf16.mxu0 0
        %423 = vmatpush1.bf16.xpose.msra.mxu0 0
        %424 = vmatprep.subr.bf16.mxu0 0
        %425 = vmatpush1.bf16.xpose.msra.mxu0 0
        %426 = vmatprep.subr.bf16.mxu0 0
        %427 = vmatpush1.bf16.xpose.msra.mxu0 0
        %428 = vmatprep.subr.bf16.mxu0 0
        %429 = vmatpush1.bf16.xpose.msra.mxu0 0
        %430 = vmatprep.subr.bf16.mxu0 0
        %431 = vmatpush1.bf16.xpose.msra.mxu0 0
        %432 = vmatprep.subr.bf16.mxu0 0
        %433 = vmatpush1.bf16.xpose.msra.mxu0 0
        %434 = vmatprep.subr.bf16.mxu0 0
        %435 = vmatpush1.bf16.xpose.msra.mxu0 0
        %436 = vmatprep.subr.bf16.mxu0 0
        %437 = vmatpush1.bf16.xpose.msra.mxu0 0
        %438 = vmatprep.subr.bf16.mxu0 0
        %439 = vmatpush1.bf16.xpose.msra.mxu0 0
        %440 = vmatprep.subr.bf16.mxu0 0
        %441 = vmatpush1.bf16.xpose.msra.mxu0 0
        %442 = vmatprep.subr.bf16.mxu0 0
        %443 = vmatpush1.bf16.xpose.msra.mxu0 0
        %444 = vmatprep.subr.bf16.mxu0 0
        %445 = vmatpush1.bf16.xpose.msra.mxu0 0
        %446 = vmatprep.mubr.bf16.mxu0 0
        %447 = vmatmul.mubr.bf16.gmra.mrb[0].mxu0 %v409
        %v448 = vpop.f32.mrb[0].mxu0
        %v449 = vadd.f32 0.0, %v448
        %v450 = vpop.f32.mrb[0].mxu0
        %v451 = vpop.f32.mrb[0].mxu0
        %v452 = vpop.f32.mrb[0].mxu0
        %453 = vdwg.mxu0
        %v454 = vsel %vm406, %v449, -1e+09
        %v455 = vld [vmem:[#allocation2] sm:$0xff]
        %vm456 = vcmask 64512
        %v457 = vsel %vm456, %v454, -inf
        %458 = vmax.xlane.f32.xlu0 %v457
        %v459 = vpop.xlane.xlu0 %458
        %v460 = vmax.f32 %v455, %v459
        %v461 = vsub.f32 %v455, %v460
        %v462 = vmul.f32 %v461, 1.442695
        %v463 = vpow.pop %v462
        %465 = vset.pattern.permute.xlu0 0
        %466 = vperm.xlu0 %465, %v460
        %v467 = vpop.permute.xlu0 %466
        %v469 = vsub.f32 %v454, %v467
        %v470 = vmul.f32 %v469, 1.442695
        %v471 = vpow.pop %v470
        %v472 = vld [vmem:[#allocation3] sm:$0xff]
        %v473 = vmul.f32 %v463, %v472
        %v474 = vsel %vm456, %v471, 0.0
        %475 = vadd.xlane.f32.xlu0 %v474
        %v476 = vpop.xlane.xlu0 %475
        %v477 = vadd.f32 %v473, %v476
        %vm478 = vcmask 7168
        %479 = vst.msk [vmem:[#allocation3] sm:$0xff] %vm478, %v477
        %v480 = vld [vmem:[#allocation4] sm:$0xff]
        %482 = vset.pattern.permute.xlu0 0
        %483 = vperm.xlu0 %482, %v463
        %v484 = vpop.permute.xlu0 %483
        %v486 = vmul.f32 %v484, %v480
        %v487 = vpack.c.bf16 %v471, %v471
        %v489 = vsel %vm456, %v487, 0
        %vm491 = vcmask 1043456
        %v493 = vsel %vm491, %v388, 0
        %495 = vmatprep.subr.bf16.mxu0 0
        %496 = vmatpush1.bf16.msra.mxu0 %v493
        %497 = vmatprep.subr.bf16.mxu0 0
        %498 = vmatpush1.bf16.msra.mxu0 0
        %499 = vmatprep.subr.bf16.mxu0 0
        %500 = vmatpush1.bf16.msra.mxu0 0
        %501 = vmatprep.subr.bf16.mxu0 0
        %502 = vmatpush1.bf16.msra.mxu0 0
        %503 = vmatprep.subr.bf16.mxu0 0
        %504 = vmatpush1.bf16.msra.mxu0 0
        %505 = vmatprep.subr.bf16.mxu0 0
        %506 = vmatpush1.bf16.msra.mxu0 0
        %507 = vmatprep.subr.bf16.mxu0 0
        %508 = vmatpush1.bf16.msra.mxu0 0
        %509 = vmatprep.subr.bf16.mxu0 0
        %510 = vmatpush1.bf16.msra.mxu0 0
        %511 = vmatprep.subr.bf16.mxu0 0
        %512 = vmatpush1.bf16.msra.mxu0 0
        %513 = vmatprep.subr.bf16.mxu0 0
        %514 = vmatpush1.bf16.msra.mxu0 0
        %515 = vmatprep.subr.bf16.mxu0 0
        %516 = vmatpush1.bf16.msra.mxu0 0
        %517 = vmatprep.subr.bf16.mxu0 0
        %518 = vmatpush1.bf16.msra.mxu0 0
        %519 = vmatprep.subr.bf16.mxu0 0
        %520 = vmatpush1.bf16.msra.mxu0 0
        %521 = vmatprep.subr.bf16.mxu0 0
        %522 = vmatpush1.bf16.msra.mxu0 0
        %523 = vmatprep.subr.bf16.mxu0 0
        %524 = vmatpush1.bf16.msra.mxu0 0
        %525 = vmatprep.subr.bf16.mxu0 0
        %526 = vmatpush1.bf16.msra.mxu0 0
        %527 = vmatprep.mubr.bf16.mxu0 0
        %528 = vmatmul.mubr.bf16.gmra.mrb[0].mxu0 %v489
        %v529 = vpop.f32.mrb[0].mxu0
        %v530 = vadd.f32 0.0, %v529
        %v531 = vpop.f32.mrb[0].mxu0
        %v532 = vpop.f32.mrb[0].mxu0
        %v533 = vpop.f32.mrb[0].mxu0
        %534 = vdwg.mxu0
        %v535 = vadd.f32 %v486, %v530
        %536 = vst.msk [vmem:[#allocation4] sm:$0xff] %vm407, %v535
        %537 = vst.msk [vmem:[#allocation2] sm:$0xff] %vm478, %v460
        %v539 = vunpack.c.l.b16 %v386
        %v540 = vpack.c.b16 %v539, %v539
        %541 = vrot.lane.b32.xlu0 %v540, 96
        %v542 = vpop.permute.xlu0 %541
        %v544 = vunpack.c.l.b16 %v387
        %v545 = vpack.c.b16 %v544, %v544
        %546 = vrot.lane.b32.xlu0 %v545, 96
        %v547 = vpop.permute.xlu0 %546
        %v549 = vsel %vm407, %v542, 0
        %v552 = vsel %vm407, %v547, 0
        %554 = vmatprep.subr.bf16.mxu0 0
        %555 = vmatpush1.bf16.xpose.msra.mxu0 %v552
        %556 = vmatprep.subr.bf16.mxu0 0
        %557 = vmatpush1.bf16.xpose.msra.mxu0 0
        %558 = vmatprep.subr.bf16.mxu0 0
        %559 = vmatpush1.bf16.xpose.msra.mxu0 0
        %560 = vmatprep.subr.bf16.mxu0 0
        %561 = vmatpush1.bf16.xpose.msra.mxu0 0
        %562 = vmatprep.subr.bf16.mxu0 0
        %563 = vmatpush1.bf16.xpose.msra.mxu0 0
        %564 = vmatprep.subr.bf16.mxu0 0
        %565 = vmatpush1.bf16.xpose.msra.mxu0 0
        %566 = vmatprep.subr.bf16.mxu0 0
        %567 = vmatpush1.bf16.xpose.msra.mxu0 0
        %568 = vmatprep.subr.bf16.mxu0 0
        %569 = vmatpush1.bf16.xpose.msra.mxu0 0
        %570 = vmatprep.subr.bf16.mxu0 0
        %571 = vmatpush1.bf16.xpose.msra.mxu0 0
        %572 = vmatprep.subr.bf16.mxu0 0
        %573 = vmatpush1.bf16.xpose.msra.mxu0 0
        %574 = vmatprep.subr.bf16.mxu0 0
        %575 = vmatpush1.bf16.xpose.msra.mxu0 0
        %576 = vmatprep.subr.bf16.mxu0 0
        %577 = vmatpush1.bf16.xpose.msra.mxu0 0
        %578 = vmatprep.subr.bf16.mxu0 0
        %579 = vmatpush1.bf16.xpose.msra.mxu0 0
        %580 = vmatprep.subr.bf16.mxu0 0
        %581 = vmatpush1.bf16.xpose.msra.mxu0 0
        %582 = vmatprep.subr.bf16.mxu0 0
        %583 = vmatpush1.bf16.xpose.msra.mxu0 0
        %584 = vmatprep.subr.bf16.mxu0 0
        %585 = vmatpush1.bf16.xpose.msra.mxu0 0
        %586 = vmatprep.mubr.bf16.mxu0 0
        %587 = vmatmul.mubr.bf16.gmra.mrb[0].mxu0 %v549
        %v588 = vpop.f32.mrb[0].mxu0
        %v589 = vadd.f32 0.0, %v588
        %v590 = vpop.f32.mrb[0].mxu0
        %v591 = vpop.f32.mrb[0].mxu0
        %v592 = vpop.f32.mrb[0].mxu0
        %593 = vdwg.mxu0
        %v594 = vsel %vm406, %v589, -1e+09
        %s595 = scalar_lea.vmem [#allocation2], 8
        %v596 = vld [vmem:[%s595] sm:$0xff]
        %v597 = vsel %vm456, %v594, -inf
        %598 = vmax.xlane.f32.xlu0 %v597
        %v599 = vpop.xlane.xlu0 %598
        %v600 = vmax.f32 %v596, %v599
        %v601 = vsub.f32 %v596, %v600
        %v602 = vmul.f32 %v601, 1.442695
        %v603 = vpow.pop %v602
        %605 = vset.pattern.permute.xlu0 0
        %606 = vperm.xlu0 %605, %v600
        %v607 = vpop.permute.xlu0 %606
        %v609 = vsub.f32 %v594, %v607
        %v610 = vmul.f32 %v609, 1.442695
        %v611 = vpow.pop %v610
        %s612 = scalar_lea.vmem [#allocation3], 8
        %v613 = vld [vmem:[%s612] sm:$0xff]
        %v614 = vmul.f32 %v603, %v613
        %v615 = vsel %vm456, %v611, 0.0
        %616 = vadd.xlane.f32.xlu0 %v615
        %v617 = vpop.xlane.xlu0 %616
        %v618 = vadd.f32 %v614, %v617
        %619 = vst.msk [vmem:[%s612] sm:$0xff] %vm478, %v618
        %s620 = scalar_lea.vmem [#allocation4], 8
        %v621 = vld [vmem:[%s620] sm:$0xff]
        %623 = vset.pattern.permute.xlu0 0
        %624 = vperm.xlu0 %623, %v603
        %v625 = vpop.permute.xlu0 %624
        %v627 = vmul.f32 %v625, %v621
        %v628 = vpack.c.bf16 %v611, %v611
        %v630 = vunpack.c.l.b16 %v388
        %v631 = vpack.c.b16 %v630, %v630
        %632 = vrot.lane.b32.xlu0 %v631, 96
        %v633 = vpop.permute.xlu0 %632
        %v635 = vsel %vm456, %v628, 0
        %v638 = vsel %vm491, %v633, 0
        %640 = vmatprep.subr.bf16.mxu0 0
        %641 = vmatpush1.bf16.msra.mxu0 %v638
        %642 = vmatprep.subr.bf16.mxu0 0
        %643 = vmatpush1.bf16.msra.mxu0 0
        %644 = vmatprep.subr.bf16.mxu0 0
        %645 = vmatpush1.bf16.msra.mxu0 0
        %646 = vmatprep.subr.bf16.mxu0 0
        %647 = vmatpush1.bf16.msra.mxu0 0
        %648 = vmatprep.subr.bf16.mxu0 0
        %649 = vmatpush1.bf16.msra.mxu0 0
        %650 = vmatprep.subr.bf16.mxu0 0
        %651 = vmatpush1.bf16.msra.mxu0 0
        %652 = vmatprep.subr.bf16.mxu0 0
        %653 = vmatpush1.bf16.msra.mxu0 0
        %654 = vmatprep.subr.bf16.mxu0 0
        %655 = vmatpush1.bf16.msra.mxu0 0
        %656 = vmatprep.subr.bf16.mxu0 0
        %657 = vmatpush1.bf16.msra.mxu0 0
        %658 = vmatprep.subr.bf16.mxu0 0
        %659 = vmatpush1.bf16.msra.mxu0 0
        %660 = vmatprep.subr.bf16.mxu0 0
        %661 = vmatpush1.bf16.msra.mxu0 0
        %662 = vmatprep.subr.bf16.mxu0 0
        %663 = vmatpush1.bf16.msra.mxu0 0
        %664 = vmatprep.subr.bf16.mxu0 0
        %665 = vmatpush1.bf16.msra.mxu0 0
        %666 = vmatprep.subr.bf16.mxu0 0
        %667 = vmatpush1.bf16.msra.mxu0 0
        %668 = vmatprep.subr.bf16.mxu0 0
        %669 = vmatpush1.bf16.msra.mxu0 0
        %670 = vmatprep.subr.bf16.mxu0 0
        %671 = vmatpush1.bf16.msra.mxu0 0
        %672 = vmatprep.mubr.bf16.mxu0 0
        %673 = vmatmul.mubr.bf16.gmra.mrb[0].mxu0 %v635
        %v674 = vpop.f32.mrb[0].mxu0
        %v675 = vadd.f32 0.0, %v674
        %v676 = vpop.f32.mrb[0].mxu0
        %v677 = vpop.f32.mrb[0].mxu0
        %v678 = vpop.f32.mrb[0].mxu0
        %679 = vdwg.mxu0
        %v680 = vadd.f32 %v627, %v675
        %681 = vst.msk [vmem:[%s620] sm:$0xff] %vm407, %v680
        %682 = vst.msk [vmem:[%s595] sm:$0xff] %vm478, %v600
        %683 = vrot.lane.b32.xlu0 %v540, 64
        %v684 = vpop.permute.xlu0 %683
        %685 = vrot.lane.b32.xlu0 %v545, 64
        %v686 = vpop.permute.xlu0 %685
        %v688 = vsel %vm407, %v684, 0
        %v691 = vsel %vm407, %v686, 0
        %693 = vmatprep.subr.bf16.mxu0 0
        %694 = vmatpush1.bf16.xpose.msra.mxu0 %v691
        %695 = vmatprep.subr.bf16.mxu0 0
        %696 = vmatpush1.bf16.xpose.msra.mxu0 0
        %697 = vmatprep.subr.bf16.mxu0 0
        %698 = vmatpush1.bf16.xpose.msra.mxu0 0
        %699 = vmatprep.subr.bf16.mxu0 0
        %700 = vmatpush1.bf16.xpose.msra.mxu0 0
        %701 = vmatprep.subr.bf16.mxu0 0
        %702 = vmatpush1.bf16.xpose.msra.mxu0 0
        %703 = vmatprep.subr.bf16.mxu0 0
        %704 = vmatpush1.bf16.xpose.msra.mxu0 0
        %705 = vmatprep.subr.bf16.mxu0 0
        %706 = vmatpush1.bf16.xpose.msra.mxu0 0
        %707 = vmatprep.subr.bf16.mxu0 0
        %708 = vmatpush1.bf16.xpose.msra.mxu0 0
        %709 = vmatprep.subr.bf16.mxu0 0
        %710 = vmatpush1.bf16.xpose.msra.mxu0 0
        %711 = vmatprep.subr.bf16.mxu0 0
        %712 = vmatpush1.bf16.xpose.msra.mxu0 0
        %713 = vmatprep.subr.bf16.mxu0 0
        %714 = vmatpush1.bf16.xpose.msra.mxu0 0
        %715 = vmatprep.subr.bf16.mxu0 0
        %716 = vmatpush1.bf16.xpose.msra.mxu0 0
        %717 = vmatprep.subr.bf16.mxu0 0
        %718 = vmatpush1.bf16.xpose.msra.mxu0 0
        %719 = vmatprep.subr.bf16.mxu0 0
        %720 = vmatpush1.bf16.xpose.msra.mxu0 0
        %721 = vmatprep.subr.bf16.mxu0 0
        %722 = vmatpush1.bf16.xpose.msra.mxu0 0
        %723 = vmatprep.subr.bf16.mxu0 0
        %724 = vmatpush1.bf16.xpose.msra.mxu0 0
        %725 = vmatprep.mubr.bf16.mxu0 0
        %726 = vmatmul.mubr.bf16.gmra.mrb[0].mxu0 %v688
        %v727 = vpop.f32.mrb[0].mxu0
        %v728 = vadd.f32 0.0, %v727
        %v729 = vpop.f32.mrb[0].mxu0
        %v730 = vpop.f32.mrb[0].mxu0
        %v731 = vpop.f32.mrb[0].mxu0
        %732 = vdwg.mxu0
        %v733 = vsel %vm406, %v728, -1e+09
        %s734 = scalar_lea.vmem [#allocation2], 16
        %v735 = vld [vmem:[%s734] sm:$0xff]
        %v736 = vsel %vm456, %v733, -inf
        %737 = vmax.xlane.f32.xlu0 %v736
        %v738 = vpop.xlane.xlu0 %737
        %v739 = vmax.f32 %v735, %v738
        %v740 = vsub.f32 %v735, %v739
        %v741 = vmul.f32 %v740, 1.442695
        %v742 = vpow.pop %v741
        %744 = vset.pattern.permute.xlu0 0
        %745 = vperm.xlu0 %744, %v739
        %v746 = vpop.permute.xlu0 %745
        %v748 = vsub.f32 %v733, %v746
        %v749 = vmul.f32 %v748, 1.442695
        %v750 = vpow.pop %v749
        %s751 = scalar_lea.vmem [#allocation3], 16
        %v752 = vld [vmem:[%s751] sm:$0xff]
        %v753 = vmul.f32 %v742, %v752
        %v754 = vsel %vm456, %v750, 0.0
        %755 = vadd.xlane.f32.xlu0 %v754
        %v756 = vpop.xlane.xlu0 %755
        %v757 = vadd.f32 %v753, %v756
        %758 = vst.msk [vmem:[%s751] sm:$0xff] %vm478, %v757
        %s759 = scalar_lea.vmem [#allocation4], 16
        %v760 = vld [vmem:[%s759] sm:$0xff]
        %762 = vset.pattern.permute.xlu0 0
        %763 = vperm.xlu0 %762, %v742
        %v764 = vpop.permute.xlu0 %763
        %v766 = vmul.f32 %v764, %v760
        %v767 = vpack.c.bf16 %v750, %v750
        %768 = vrot.lane.b32.xlu0 %v631, 64
        %v769 = vpop.permute.xlu0 %768
        %v771 = vsel %vm456, %v767, 0
        %v774 = vsel %vm491, %v769, 0
        %776 = vmatprep.subr.bf16.mxu0 0
        %777 = vmatpush1.bf16.msra.mxu0 %v774
        %778 = vmatprep.subr.bf16.mxu0 0
        %779 = vmatpush1.bf16.msra.mxu0 0
        %780 = vmatprep.subr.bf16.mxu0 0
        %781 = vmatpush1.bf16.msra.mxu0 0
        %782 = vmatprep.subr.bf16.mxu0 0
        %783 = vmatpush1.bf16.msra.mxu0 0
        %784 = vmatprep.subr.bf16.mxu0 0
        %785 = vmatpush1.bf16.msra.mxu0 0
        %786 = vmatprep.subr.bf16.mxu0 0
        %787 = vmatpush1.bf16.msra.mxu0 0
        %788 = vmatprep.subr.bf16.mxu0 0
        %789 = vmatpush1.bf16.msra.mxu0 0
        %790 = vmatprep.subr.bf16.mxu0 0
        %791 = vmatpush1.bf16.msra.mxu0 0
        %792 = vmatprep.subr.bf16.mxu0 0
        %793 = vmatpush1.bf16.msra.mxu0 0
        %794 = vmatprep.subr.bf16.mxu0 0
        %795 = vmatpush1.bf16.msra.mxu0 0
        %796 = vmatprep.subr.bf16.mxu0 0
        %797 = vmatpush1.bf16.msra.mxu0 0
        %798 = vmatprep.subr.bf16.mxu0 0
        %799 = vmatpush1.bf16.msra.mxu0 0
        %800 = vmatprep.subr.bf16.mxu0 0
        %801 = vmatpush1.bf16.msra.mxu0 0
        %802 = vmatprep.subr.bf16.mxu0 0
        %803 = vmatpush1.bf16.msra.mxu0 0
        %804 = vmatprep.subr.bf16.mxu0 0
        %805 = vmatpush1.bf16.msra.mxu0 0
        %806 = vmatprep.subr.bf16.mxu0 0
        %807 = vmatpush1.bf16.msra.mxu0 0
        %808 = vmatprep.mubr.bf16.mxu0 0
        %809 = vmatmul.mubr.bf16.gmra.mrb[0].mxu0 %v771
        %v810 = vpop.f32.mrb[0].mxu0
        %v811 = vadd.f32 0.0, %v810
        %v812 = vpop.f32.mrb[0].mxu0
        %v813 = vpop.f32.mrb[0].mxu0
        %v814 = vpop.f32.mrb[0].mxu0
        %815 = vdwg.mxu0
        %v816 = vadd.f32 %v766, %v811
        %817 = vst.msk [vmem:[%s759] sm:$0xff] %vm407, %v816
        %818 = vst.msk [vmem:[%s734] sm:$0xff] %vm478, %v739
        %819 = vrot.lane.b32.xlu0 %v540, 32
        %v820 = vpop.permute.xlu0 %819
        %821 = vrot.lane.b32.xlu0 %v545, 32
        %v822 = vpop.permute.xlu0 %821
        %v824 = vsel %vm407, %v820, 0
        %v827 = vsel %vm407, %v822, 0
        %829 = vmatprep.subr.bf16.mxu0 0
        %830 = vmatpush1.bf16.xpose.msra.mxu0 %v827
        %831 = vmatprep.subr.bf16.mxu0 0
        %832 = vmatpush1.bf16.xpose.msra.mxu0 0
        %833 = vmatprep.subr.bf16.mxu0 0
        %834 = vmatpush1.bf16.xpose.msra.mxu0 0
        %835 = vmatprep.subr.bf16.mxu0 0
        %836 = vmatpush1.bf16.xpose.msra.mxu0 0
        %837 = vmatprep.subr.bf16.mxu0 0
        %838 = vmatpush1.bf16.xpose.msra.mxu0 0
        %839 = vmatprep.subr.bf16.mxu0 0
        %840 = vmatpush1.bf16.xpose.msra.mxu0 0
        %841 = vmatprep.subr.bf16.mxu0 0
        %842 = vmatpush1.bf16.xpose.msra.mxu0 0
        %843 = vmatprep.subr.bf16.mxu0 0
        %844 = vmatpush1.bf16.xpose.msra.mxu0 0
        %845 = vmatprep.subr.bf16.mxu0 0
        %846 = vmatpush1.bf16.xpose.msra.mxu0 0
        %847 = vmatprep.subr.bf16.mxu0 0
        %848 = vmatpush1.bf16.xpose.msra.mxu0 0
        %849 = vmatprep.subr.bf16.mxu0 0
        %850 = vmatpush1.bf16.xpose.msra.mxu0 0
        %851 = vmatprep.subr.bf16.mxu0 0
        %852 = vmatpush1.bf16.xpose.msra.mxu0 0
        %853 = vmatprep.subr.bf16.mxu0 0
        %854 = vmatpush1.bf16.xpose.msra.mxu0 0
        %855 = vmatprep.subr.bf16.mxu0 0
        %856 = vmatpush1.bf16.xpose.msra.mxu0 0
        %857 = vmatprep.subr.bf16.mxu0 0
        %858 = vmatpush1.bf16.xpose.msra.mxu0 0
        %859 = vmatprep.subr.bf16.mxu0 0
        %860 = vmatpush1.bf16.xpose.msra.mxu0 0
        %861 = vmatprep.mubr.bf16.mxu0 0
        %862 = vmatmul.mubr.bf16.gmra.mrb[0].mxu0 %v824
        %v863 = vpop.f32.mrb[0].mxu0
        %v864 = vadd.f32 0.0, %v863
        %v865 = vpop.f32.mrb[0].mxu0
        %v866 = vpop.f32.mrb[0].mxu0
        %v867 = vpop.f32.mrb[0].mxu0
        %868 = vdwg.mxu0
        %v869 = vsel %vm406, %v864, -1e+09
        %s870 = scalar_lea.vmem [#allocation2], 24
        %v871 = vld [vmem:[%s870] sm:$0xff]
        %v872 = vsel %vm456, %v869, -inf
        %873 = vmax.xlane.f32.xlu0 %v872
        %v874 = vpop.xlane.xlu0 %873
        %v875 = vmax.f32 %v871, %v874
        %v876 = vsub.f32 %v871, %v875
        %v877 = vmul.f32 %v876, 1.442695
        %v878 = vpow.pop %v877
        %880 = vset.pattern.permute.xlu0 0
        %881 = vperm.xlu0 %880, %v875
        %v882 = vpop.permute.xlu0 %881
        %v884 = vsub.f32 %v869, %v882
        %v885 = vmul.f32 %v884, 1.442695
        %v886 = vpow.pop %v885
        %s887 = scalar_lea.vmem [#allocation3], 24
        %v888 = vld [vmem:[%s887] sm:$0xff]
        %v889 = vmul.f32 %v878, %v888
        %v890 = vsel %vm456, %v886, 0.0
        %891 = vadd.xlane.f32.xlu0 %v890
        %v892 = vpop.xlane.xlu0 %891
        %v893 = vadd.f32 %v889, %v892
        %894 = vst.msk [vmem:[%s887] sm:$0xff] %vm478, %v893
        %s895 = scalar_lea.vmem [#allocation4], 24
        %v896 = vld [vmem:[%s895] sm:$0xff]
        %898 = vset.pattern.permute.xlu0 0
        %899 = vperm.xlu0 %898, %v878
        %v900 = vpop.permute.xlu0 %899
        %v902 = vmul.f32 %v900, %v896
        %v903 = vpack.c.bf16 %v886, %v886
        %904 = vrot.lane.b32.xlu0 %v631, 32
        %v905 = vpop.permute.xlu0 %904
        %v907 = vsel %vm456, %v903, 0
        %v910 = vsel %vm491, %v905, 0
        %912 = vmatprep.subr.bf16.mxu0 0
        %913 = vmatpush1.bf16.msra.mxu0 %v910
        %914 = vmatprep.subr.bf16.mxu0 0
        %915 = vmatpush1.bf16.msra.mxu0 0
        %916 = vmatprep.subr.bf16.mxu0 0
        %917 = vmatpush1.bf16.msra.mxu0 0
        %918 = vmatprep.subr.bf16.mxu0 0
        %919 = vmatpush1.bf16.msra.mxu0 0
        %920 = vmatprep.subr.bf16.mxu0 0
        %921 = vmatpush1.bf16.msra.mxu0 0
        %922 = vmatprep.subr.bf16.mxu0 0
        %923 = vmatpush1.bf16.msra.mxu0 0
        %924 = vmatprep.subr.bf16.mxu0 0
        %925 = vmatpush1.bf16.msra.mxu0 0
        %926 = vmatprep.subr.bf16.mxu0 0
        %927 = vmatpush1.bf16.msra.mxu0 0
        %928 = vmatprep.subr.bf16.mxu0 0
        %929 = vmatpush1.bf16.msra.mxu0 0
        %930 = vmatprep.subr.bf16.mxu0 0
        %931 = vmatpush1.bf16.msra.mxu0 0
        %932 = vmatprep.subr.bf16.mxu0 0
        %933 = vmatpush1.bf16.msra.mxu0 0
        %934 = vmatprep.subr.bf16.mxu0 0
        %935 = vmatpush1.bf16.msra.mxu0 0
        %936 = vmatprep.subr.bf16.mxu0 0
        %937 = vmatpush1.bf16.msra.mxu0 0
        %938 = vmatprep.subr.bf16.mxu0 0
        %939 = vmatpush1.bf16.msra.mxu0 0
        %940 = vmatprep.subr.bf16.mxu0 0
        %941 = vmatpush1.bf16.msra.mxu0 0
        %942 = vmatprep.subr.bf16.mxu0 0
        %943 = vmatpush1.bf16.msra.mxu0 0
        %944 = vmatprep.mubr.bf16.mxu0 0
        %945 = vmatmul.mubr.bf16.gmra.mrb[0].mxu0 %v907
        %v946 = vpop.f32.mrb[0].mxu0
        %v947 = vadd.f32 0.0, %v946
        %v948 = vpop.f32.mrb[0].mxu0
        %v949 = vpop.f32.mrb[0].mxu0
        %v950 = vpop.f32.mrb[0].mxu0
        %951 = vdwg.mxu0
        %v952 = vadd.f32 %v902, %v947
        %953 = vst.msk [vmem:[%s895] sm:$0xff] %vm407, %v952
        %954 = vst.msk [vmem:[%s870] sm:$0xff] %vm478, %v875
      $region44: #{transformer_forward.34} parent=35 // pred_fallthru
        _
      // Predicated region
      $region45: #{transformer_forward.34} parent=35 // pred_check
        %p955 = pneg %p361
      $region46: #{transformer_forward.34} parent=35 // pred_check_branch
        %957 = sbr.rel (%p955) target = $region48
      $region47: #{transformer_forward.34} parent=35 // pred_region
        %v958 = vld [vmem:[#allocation4] sm:$0xff]
        %v959 = vld [vmem:[#allocation3] sm:$0xff]
        %v960 = vrcp.pop %v959
        %962 = vset.pattern.permute.xlu0 0
        %963 = vperm.xlu0 %962, %v960
        %v964 = vpop.permute.xlu0 %963
        %v966 = vmul.f32 %v958, %v964
        %s967 = scalar_lea.vmem [#allocation4], 8
        %v968 = vld [vmem:[%s967] sm:$0xff]
        %s969 = scalar_lea.vmem [#allocation3], 8
        %v970 = vld [vmem:[%s969] sm:$0xff]
        %v971 = vrcp.pop %v970
        %973 = vset.pattern.permute.xlu0 0
        %974 = vperm.xlu0 %973, %v971
        %v975 = vpop.permute.xlu0 %974
        %v977 = vmul.f32 %v968, %v975
        %s978 = scalar_lea.vmem [#allocation4], 16
        %v979 = vld [vmem:[%s978] sm:$0xff]
        %s980 = scalar_lea.vmem [#allocation3], 16
        %v981 = vld [vmem:[%s980] sm:$0xff]
        %v982 = vrcp.pop %v981
        %984 = vset.pattern.permute.xlu0 0
        %985 = vperm.xlu0 %984, %v982
        %v986 = vpop.permute.xlu0 %985
        %v988 = vmul.f32 %v979, %v986
        %s989 = scalar_lea.vmem [#allocation4], 24
        %v990 = vld [vmem:[%s989] sm:$0xff]
        %s991 = scalar_lea.vmem [#allocation3], 24
        %v992 = vld [vmem:[%s991] sm:$0xff]
        %v993 = vrcp.pop %v992
        %995 = vset.pattern.permute.xlu0 0
        %996 = vperm.xlu0 %995, %v993
        %v997 = vpop.permute.xlu0 %996
        %v999 = vmul.f32 %v990, %v997
        %1001 = vrot.lane.b32.xlu0 %v977, 32
        %v1002 = vpop.permute.xlu0 %1001
        %1005 = vrot.lane.b32.xlu0 %v988, 64
        %v1006 = vpop.permute.xlu0 %1005
        %1009 = vrot.lane.b32.xlu0 %v999, 96
        %v1010 = vpop.permute.xlu0 %1009
        %vm1012 = vcmask 261120
        %v1013 = vsel %vm1012, %v966, %v1002
        %vm1014 = vcmask 523264
        %v1015 = vsel %vm1014, %v1013, %v1006
        %vm1016 = vcmask 785408
        %v1017 = vsel %vm1016, %v1015, %v1010
        %v1018 = vpack.c.bf16 %v1017, %v1017
        %1019 = vst [vmem:[%s359] sm:$0xf] %v1018
      $region48: #{transformer_forward.34} parent=35 // pred_fallthru
        _
      %p1020 = scmp.lt.s32.totalorder %s21, 1
      %s1021 = scalar_select %p1020, %s21, 1
      %p1022 = scmp.lt.s32.totalorder %s23, 0
      %s1023 = scalar_select %p1022, %s23, 0
      %p1024 = scmp.lt.s32.totalorder %s22, 0
      %s1025 = scalar_select %p1024, %s22, 0
      %s1026 = sadd.s32 %s1025, %s1023
      %s1027 = sadd.s32 %s1026, %s1021
      %s1028 = smul.addr %s1027, 4
      %s1029 = scalar_lea.vmem %s4, %s1028
      // Predicated region
      $region49: #{transformer_forward.34} parent=35 // pred_check
        %p1030 = pneg %p181
      $region50: #{transformer_forward.34} parent=35 // pred_check_branch
        %1032 = sbr.rel (%p1030) target = $region52
      $region51: #{transformer_forward.34} parent=35 // pred_region
        _
      $region52: #{transformer_forward.34} parent=35 // pred_fallthru
        _
    $region36: #{transformer_forward.34} parent=5 // pred_fallthru
      _
    %p1033 = scmp.le.s32.totalorder 2, %s10
    // Predicated region
    $region53: #{transformer_forward.34} parent=5 // pred_check
      %p1034 = pneg %p1033
    $region54: #{transformer_forward.34} parent=5 // pred_check_branch
      %1036 = sbr.rel (%p1034) target = $region56
    $region55: #{transformer_forward.34} parent=5 // pred_region
      %s1037 = ssub.s32 %s10, 2
      // Predicated region
      $region57: #{transformer_forward.34} parent=55 // pred_check
        %p1038 = pneg %p187
      $region58: #{transformer_forward.34} parent=55 // pred_check_branch
        %1040 = sbr.rel (%p1038) target = $region60
      $region59: #{transformer_forward.34} parent=55 // pred_region
        %p1041 = scmp.lt.s32.totalorder %s25, 1
        %s1042 = scalar_select %p1041, %s25, 1
        %p1043 = scmp.lt.s32.totalorder %s27, 0
        %s1044 = scalar_select %p1043, %s27, 0
        %p1045 = scmp.lt.s32.totalorder %s26, 0
        %s1046 = scalar_select %p1045, %s26, 0
        %s1047 = sadd.s32 %s1046, %s1044
        %s1048 = sadd.s32 %s1047, %s1042
        %s1049 = smul.addr %s1048, 4
        %s1050 = scalar_lea.vmem %s4, %s1049
      $region60: #{transformer_forward.34} parent=55 // pred_fallthru
        _
    $region56: #{transformer_forward.34} parent=5 // pred_fallthru
      _
  $region6: #{transformer_forward.34} parent=0 // loop_footer
    %s14 = sadd.s32 1, %s10
  $region7: #{transformer_forward.34} parent=0 // loop_footer_branch
    %9 = sbr.rel target = $region3
  $region8: #{transformer_forward.34} parent=0 // loop_exit
    _

</llo_original>
